<compile_context>
chip_gen: v7x
topology: tpu7x:2x2x1
jax: 0.10.0
libtpu: 0.0.40
codegen_flags: <defaults>
</compile_context>

<pallas_src>
import jax
import jax.numpy as jnp
import numpy as np
from jax.experimental import pallas as pl
from jax.experimental.pallas import tpu as pltpu

# --- sizes (dim kept from module; entity/relation counts scaled down for the demo) ---
DIM = 128          # dim_size in the PyTorch module
E_SIZE = 64        # scaled down from 6884
R_SIZE = 8         # scaled down from 990
NUM_BASES = 2
NUM_BLOCKS = 4
NUM_EDGES = 256
BLK = DIM // NUM_BLOCKS   # per-block channel width for conv2

HI = jax.lax.Precision.HIGHEST


# ---------------------------------------------------------------------------
# Fused encoder kernel: two RGCN layers (dense per-relation weights, already
# basis-composed / block-diagonally packed) + ReLUs, single grid step.
#   layer(x) = relu( sum_r (adj_r @ x) @ W_r + x @ root + bias )
# ---------------------------------------------------------------------------
def _encoder_kernel(adj_ref, x0_ref, w1_ref, root1_ref, b1_ref,
                    w2_ref, root2_ref, b2_ref, out_ref,
                    aggf_scr, aggl_scr, x1_scr):
    N = adj_ref.shape[1]
    R = adj_ref.shape[0] // N
    D = out_ref.shape[1]

    def rgcn_layer(x_bf, w_cat_ref, root_ref, bias_ref):
        # (1) aggregate ALL relations in one MXU pass: [R*N, N] @ [N, D] -> [R*N, D]
        aggf_scr[...] = jnp.dot(adj_ref[...], x_bf,
                                preferred_element_type=jnp.float32)
        # (2) restack the relation axis onto lanes: agg_lanes[n, r*D + d] = agg[r, n, d]
        #     (static, 128-lane / 64-sublane aligned copies into VMEM scratch)
        for r in range(R):
            aggl_scr[:, r * D:(r + 1) * D] = (
                aggf_scr[r * N:(r + 1) * N, :].astype(jnp.bfloat16))
        # (3) relation-summed weight application as one K = R*D contraction
        msg = jnp.dot(aggl_scr[...], w_cat_ref[...],
                      preferred_element_type=jnp.float32)
        out = (msg
               + jnp.dot(x_bf, root_ref[...], preferred_element_type=jnp.float32)
               + bias_ref[...])
        return jnp.maximum(out, 0.0)

    # conv1 (+ ReLU); keep the intermediate resident in VMEM scratch (no HBM trip)
    x1_scr[...] = rgcn_layer(x0_ref[...], w1_ref, root1_ref, b1_ref)
    # conv2 (+ ReLU)
    out_ref[...] = rgcn_layer(x1_scr[...].astype(jnp.bfloat16),
                              w2_ref, root2_ref, b2_ref)


def pack_block_diagonal(w_blocks):
    """[R, B, C, C] block weights -> dense block-diagonal [R, B*C, B*C]."""
    R, B, C, _ = w_blocks.shape
    D = B * C
    w = jnp.zeros((R, D, D), w_blocks.dtype)
    for b in range(B):
        w = w.at[:, b * C:(b + 1) * C, b * C:(b + 1) * C].set(w_blocks[:, b])
    return w


@jax.jit
def encoder_forward(params, adj):
    R, N, _ = adj.shape
    D = params["emb"].shape[1]

    # conv1 weights come from basis decomposition: W_r = sum_b comp[r, b] * bases[b]
    w1_cat = jnp.einsum("rb,bio->rio", params["comp"], params["bases"],
                        precision=HI).reshape(R * D, D)
    # conv2 block weights packed block-diagonally, then relation-stacked on sublanes
    w2_cat = pack_block_diagonal(params["w2"]).reshape(R * D, D)

    # bf16 MXU operands (f32 accumulation inside the kernel); biases stay f32.
    adj_flat = adj.reshape(R * N, N).astype(jnp.bfloat16)
    x0 = params["emb"].astype(jnp.bfloat16)
    w1_cat = w1_cat.astype(jnp.bfloat16)
    w2_cat = w2_cat.astype(jnp.bfloat16)
    root1 = params["root1"].astype(jnp.bfloat16)
    root2 = params["root2"].astype(jnp.bfloat16)
    b1 = params["bias1"].reshape(1, D).astype(jnp.float32)
    b2 = params["bias2"].reshape(1, D).astype(jnp.float32)

    flops = 2 * (2 * R * N * N * D + 2 * N * (R * D) * D + 2 * N * D * D)
    bytes_accessed = (2 * (adj_flat.size + x0.size + w1_cat.size + w2_cat.size
                           + root1.size + root2.size)
                      + 4 * (b1.size + b2.size + N * D))

    full2d = lambda: pl.BlockSpec((-1, -1), lambda i: (0, 0))  # placeholder (unused)

    def spec(a):
        return pl.BlockSpec(a.shape, lambda i: (0, 0))

    return pl.pallas_call(
        _encoder_kernel,
        out_shape=jax.ShapeDtypeStruct((N, D), jnp.float32),
        grid=(1,),
        in_specs=[spec(adj_flat), spec(x0), spec(w1_cat), spec(root1), spec(b1),
                  spec(w2_cat), spec(root2), spec(b2)],
        out_specs=pl.BlockSpec((N, D), lambda i: (0, 0)),
        scratch_shapes=[
            pltpu.VMEM((R * N, D), jnp.float32),    # agg, relation-stacked on rows
            pltpu.VMEM((N, R * D), jnp.bfloat16),   # agg, relation-stacked on lanes
            pltpu.VMEM((N, D), jnp.float32),        # ReLU'd conv1 output x1
        ],
        compiler_params=pltpu.CompilerParams(dimension_semantics=("arbitrary",)),
        cost_estimate=pl.CostEstimate(flops=flops, transcendentals=0,
                                      bytes_accessed=bytes_accessed),
    )(adj_flat, x0, w1_cat, root1, b1, w2_cat, root2, b2)


# ---------------------------------------------------------------------------
# Glue: dense mean-normalized adjacency (== PyG scatter-mean aggregation per relation).
# TODO(synk): sparse scatter-mean over (edge_index, edge_type) done in plain JAX.
# ---------------------------------------------------------------------------
def build_adjacency(edge_index, edge_type, num_nodes, num_relations):
    src = edge_index[0]
    dst = edge_index[1]
    counts = jnp.zeros((num_relations, num_nodes, num_nodes), jnp.float32)
    counts = counts.at[edge_type, dst, src].add(1.0)
    deg = counts.sum(axis=-1, keepdims=True)
    adj = jnp.where(deg > 0, counts / jnp.where(deg > 0, deg, 1.0), 0.0)
    return adj


# Pure-JAX reference implementing the same RGCN math, with the same bf16-rounded
# MXU operands as the kernel (f32 accumulation), so the comparison isolates
# kernel correctness rather than bf16 rounding.
def reference_forward(params, adj):
    R, N, _ = adj.shape
    D = params["emb"].shape[1]
    rnd = lambda a: a.astype(jnp.bfloat16).astype(jnp.float32)

    adj_f = rnd(adj)
    x0 = rnd(params["emb"])
    w1 = rnd(jnp.einsum("rb,bio->rio", params["comp"], params["bases"], precision=HI))
    w2 = rnd(params["w2"])
    root1 = rnd(params["root1"])
    root2 = rnd(params["root2"])
    b1 = params["bias1"]
    b2 = params["bias2"]

    agg1 = rnd(jnp.einsum("rij,jd->rid", adj_f, x0, precision=HI))
    out1 = (jnp.einsum("rid,rdo->io", agg1, w1, precision=HI)
            + jnp.dot(x0, root1, precision=HI) + b1)
    x1 = rnd(jnp.maximum(out1, 0.0))

    agg2 = rnd(jnp.einsum("rij,jd->rid", adj_f, x1, precision=HI))
    agg2 = agg2.reshape(R, N, NUM_BLOCKS, BLK)
    out2 = (jnp.einsum("rnbc,rbcd->nbd", agg2, w2, precision=HI).reshape(N, D)
            + jnp.dot(x1, root2, precision=HI) + b2)
    return jnp.maximum(out2, 0.0)


if __name__ == "__main__":
    key = jax.random.PRNGKey(0)
    (k_emb, k_bases, k_comp, k_root1, k_b1,
     k_w2, k_root2, k_b2, k_ei, k_et) = jax.random.split(key, 10)

    params = {
        # nn.Embedding(e_size, dim) weight, indexed with arange(e_size) => full table
        "emb": jax.random.normal(k_emb, (E_SIZE, DIM), jnp.float32),
        # RGCNConv(dim, dim, num_relations, num_bases=2)
        "bases": jax.random.normal(k_bases, (NUM_BASES, DIM, DIM), jnp.float32) / np.sqrt(DIM),
        "comp": jax.random.normal(k_comp, (R_SIZE, NUM_BASES), jnp.float32) / np.sqrt(NUM_BASES),
        "root1": jax.random.normal(k_root1, (DIM, DIM), jnp.float32) / np.sqrt(DIM),
        "bias1": 0.1 * jax.random.normal(k_b1, (DIM,), jnp.float32),
        # RGCNConv(dim, dim, num_relations, num_blocks=4)
        "w2": jax.random.normal(k_w2, (R_SIZE, NUM_BLOCKS, BLK, BLK), jnp.float32) / np.sqrt(BLK),
        "root2": jax.random.normal(k_root2, (DIM, DIM), jnp.float32) / np.sqrt(DIM),
        "bias2": 0.1 * jax.random.normal(k_b2, (DIM,), jnp.float32),
    }

    edge_index = jax.random.randint(k_ei, (2, NUM_EDGES), 0, E_SIZE, dtype=jnp.int32)
    edge_type = jax.random.randint(k_et, (NUM_EDGES,), 0, R_SIZE, dtype=jnp.int32)

    adj = build_adjacency(edge_index, edge_type, E_SIZE, R_SIZE)

    out = jax.block_until_ready(encoder_forward(params, adj))
    ref = jax.block_until_ready(reference_forward(params, adj))
    np.testing.assert_allclose(np.asarray(out), np.asarray(ref), rtol=1e-2, atol=1e-2)

    print("KERNEL_OK")
</pallas_src>

<mosaic_0001>
module attributes {stable_mosaic.version = 11 : i64} {
  func.func @_encoder_kernel(%arg0: i32, %arg1: memref<512x64xbf16, #tpu.memory_space<vmem>>, %arg2: memref<64x128xbf16, #tpu.memory_space<vmem>>, %arg3: memref<1024x128xbf16, #tpu.memory_space<vmem>>, %arg4: memref<128x128xbf16, #tpu.memory_space<vmem>>, %arg5: memref<1x128xf32, #tpu.memory_space<vmem>>, %arg6: memref<1024x128xbf16, #tpu.memory_space<vmem>>, %arg7: memref<128x128xbf16, #tpu.memory_space<vmem>>, %arg8: memref<1x128xf32, #tpu.memory_space<vmem>>, %arg9: memref<64x128xf32, #tpu.memory_space<vmem>>, %arg10: memref<512x128xf32, #tpu.memory_space<vmem>>, %arg11: memref<64x1024xbf16, #tpu.memory_space<vmem>>, %arg12: memref<64x128xf32, #tpu.memory_space<vmem>>) attributes {dimension_semantics = [#tpu.dimension_semantics<arbitrary>], iteration_bounds = array<i64: 1>, scalar_prefetch = 0 : i64, scratch_operands = 3 : i64, tpu.core_type = #tpu.core_type<tc>, window_params = [{pipeline_mode = #tpu.pipeline_mode<synchronous>, transform_indices = @transform_0, window_bounds = array<i64: 512, 64>}, {pipeline_mode = #tpu.pipeline_mode<synchronous>, transform_indices = @transform_1, window_bounds = array<i64: 64, 128>}, {pipeline_mode = #tpu.pipeline_mode<synchronous>, transform_indices = @transform_2, window_bounds = array<i64: 1024, 128>}, {pipeline_mode = #tpu.pipeline_mode<synchronous>, transform_indices = @transform_3, window_bounds = array<i64: 128, 128>}, {pipeline_mode = #tpu.pipeline_mode<synchronous>, transform_indices = @transform_4, window_bounds = array<i64: 1, 128>}, {pipeline_mode = #tpu.pipeline_mode<synchronous>, transform_indices = @transform_5, window_bounds = array<i64: 1024, 128>}, {pipeline_mode = #tpu.pipeline_mode<synchronous>, transform_indices = @transform_6, window_bounds = array<i64: 128, 128>}, {pipeline_mode = #tpu.pipeline_mode<synchronous>, transform_indices = @transform_7, window_bounds = array<i64: 1, 128>}, {pipeline_mode = #tpu.pipeline_mode<synchronous>, transform_indices = @transform_8, window_bounds = array<i64: 64, 128>}]} {
    %c0 = arith.constant 0 : index
    %c0_0 = arith.constant 0 : index
    %0 = vector.load %arg2[%c0, %c0_0] : memref<64x128xbf16, #tpu.memory_space<vmem>>, vector<64x128xbf16>
    %c0_1 = arith.constant 0 : index
    %c0_2 = arith.constant 0 : index
    %1 = vector.load %arg1[%c0_1, %c0_2] : memref<512x64xbf16, #tpu.memory_space<vmem>>, vector<512x64xbf16>
    %cst = arith.constant dense<0.000000e+00> : vector<512x128xf32>
    %2 = tpu.matmul %1, %0, %cst {dimension_numbers = #tpu.dot_dimension_numbers<[1], [0], [0], [1], [0, 0, 1, 1], [], []>} : vector<512x64xbf16>, vector<64x128xbf16>, vector<512x128xf32> -> vector<512x128xf32>
    %c0_3 = arith.constant 0 : index
    %c0_4 = arith.constant 0 : index
    %3 = vector.load %arg10[%c0_3, %c0_4] : memref<512x128xf32, #tpu.memory_space<vmem>>, vector<512x128xf32>
    tpu.vector_store %arg10[%c0_3, %c0_4], %2 {strides = array<i32>} : memref<512x128xf32, #tpu.memory_space<vmem>>, vector<512x128xf32>,
    %c0_5 = arith.constant 0 : index
    %c0_6 = arith.constant 0 : index
    %4 = vector.load %arg10[%c0_5, %c0_6] : memref<512x128xf32, #tpu.memory_space<vmem>>, vector<64x128xf32>
    %5 = arith.truncf %4 : vector<64x128xf32> to vector<64x128xbf16>
    %c0_7 = arith.constant 0 : index
    %c0_8 = arith.constant 0 : index
    %6 = vector.load %arg11[%c0_7, %c0_8] : memref<64x1024xbf16, #tpu.memory_space<vmem>>, vector<64x128xbf16>
    tpu.vector_store %arg11[%c0_7, %c0_8], %5 {strides = array<i32>} : memref<64x1024xbf16, #tpu.memory_space<vmem>>, vector<64x128xbf16>,
    %c64 = arith.constant 64 : index
    %c0_9 = arith.constant 0 : index
    %7 = vector.load %arg10[%c64, %c0_9] : memref<512x128xf32, #tpu.memory_space<vmem>>, vector<64x128xf32>
    %8 = arith.truncf %7 : vector<64x128xf32> to vector<64x128xbf16>
    %c0_10 = arith.constant 0 : index
    %c128 = arith.constant 128 : index
    %9 = vector.load %arg11[%c0_10, %c128] : memref<64x1024xbf16, #tpu.memory_space<vmem>>, vector<64x128xbf16>
    tpu.vector_store %arg11[%c0_10, %c128], %8 {strides = array<i32>} : memref<64x1024xbf16, #tpu.memory_space<vmem>>, vector<64x128xbf16>,
    %c128_11 = arith.constant 128 : index
    %c0_12 = arith.constant 0 : index
    %10 = vector.load %arg10[%c128_11, %c0_12] : memref<512x128xf32, #tpu.memory_space<vmem>>, vector<64x128xf32>
    %11 = arith.truncf %10 : vector<64x128xf32> to vector<64x128xbf16>
    %c0_13 = arith.constant 0 : index
    %c256 = arith.constant 256 : index
    %12 = vector.load %arg11[%c0_13, %c256] : memref<64x1024xbf16, #tpu.memory_space<vmem>>, vector<64x128xbf16>
    tpu.vector_store %arg11[%c0_13, %c256], %11 {strides = array<i32>} : memref<64x1024xbf16, #tpu.memory_space<vmem>>, vector<64x128xbf16>,
    %c192 = arith.constant 192 : index
    %c0_14 = arith.constant 0 : index
    %13 = vector.load %arg10[%c192, %c0_14] : memref<512x128xf32, #tpu.memory_space<vmem>>, vector<64x128xf32>
    %14 = arith.truncf %13 : vector<64x128xf32> to vector<64x128xbf16>
    %c0_15 = arith.constant 0 : index
    %c384 = arith.constant 384 : index
    %15 = vector.load %arg11[%c0_15, %c384] : memref<64x1024xbf16, #tpu.memory_space<vmem>>, vector<64x128xbf16>
    tpu.vector_store %arg11[%c0_15, %c384], %14 {strides = array<i32>} : memref<64x1024xbf16, #tpu.memory_space<vmem>>, vector<64x128xbf16>,
    %c256_16 = arith.constant 256 : index
    %c0_17 = arith.constant 0 : index
    %16 = vector.load %arg10[%c256_16, %c0_17] : memref<512x128xf32, #tpu.memory_space<vmem>>, vector<64x128xf32>
    %17 = arith.truncf %16 : vector<64x128xf32> to vector<64x128xbf16>
    %c0_18 = arith.constant 0 : index
    %c512 = arith.constant 512 : index
    %18 = vector.load %arg11[%c0_18, %c512] : memref<64x1024xbf16, #tpu.memory_space<vmem>>, vector<64x128xbf16>
    tpu.vector_store %arg11[%c0_18, %c512], %17 {strides = array<i32>} : memref<64x1024xbf16, #tpu.memory_space<vmem>>, vector<64x128xbf16>,
    %c320 = arith.constant 320 : index
    %c0_19 = arith.constant 0 : index
    %19 = vector.load %arg10[%c320, %c0_19] : memref<512x128xf32, #tpu.memory_space<vmem>>, vector<64x128xf32>
    %20 = arith.truncf %19 : vector<64x128xf32> to vector<64x128xbf16>
    %c0_20 = arith.constant 0 : index
    %c640 = arith.constant 640 : index
    %21 = vector.load %arg11[%c0_20, %c640] : memref<64x1024xbf16, #tpu.memory_space<vmem>>, vector<64x128xbf16>
    tpu.vector_store %arg11[%c0_20, %c640], %20 {strides = array<i32>} : memref<64x1024xbf16, #tpu.memory_space<vmem>>, vector<64x128xbf16>,
    %c384_21 = arith.constant 384 : index
    %c0_22 = arith.constant 0 : index
    %22 = vector.load %arg10[%c384_21, %c0_22] : memref<512x128xf32, #tpu.memory_space<vmem>>, vector<64x128xf32>
    %23 = arith.truncf %22 : vector<64x128xf32> to vector<64x128xbf16>
    %c0_23 = arith.constant 0 : index
    %c768 = arith.constant 768 : index
    %24 = vector.load %arg11[%c0_23, %c768] : memref<64x1024xbf16, #tpu.memory_space<vmem>>, vector<64x128xbf16>
    tpu.vector_store %arg11[%c0_23, %c768], %23 {strides = array<i32>} : memref<64x1024xbf16, #tpu.memory_space<vmem>>, vector<64x128xbf16>,
    %c448 = arith.constant 448 : index
    %c0_24 = arith.constant 0 : index
    %25 = vector.load %arg10[%c448, %c0_24] : memref<512x128xf32, #tpu.memory_space<vmem>>, vector<64x128xf32>
    %26 = arith.truncf %25 : vector<64x128xf32> to vector<64x128xbf16>
    %c0_25 = arith.constant 0 : index
    %c896 = arith.constant 896 : index
    %27 = vector.load %arg11[%c0_25, %c896] : memref<64x1024xbf16, #tpu.memory_space<vmem>>, vector<64x128xbf16>
    tpu.vector_store %arg11[%c0_25, %c896], %26 {strides = array<i32>} : memref<64x1024xbf16, #tpu.memory_space<vmem>>, vector<64x128xbf16>,
    %c0_26 = arith.constant 0 : index
    %c0_27 = arith.constant 0 : index
    %28 = vector.load %arg11[%c0_26, %c0_27] : memref<64x1024xbf16, #tpu.memory_space<vmem>>, vector<64x1024xbf16>
    %c0_28 = arith.constant 0 : index
    %c0_29 = arith.constant 0 : index
    %29 = vector.load %arg3[%c0_28, %c0_29] : memref<1024x128xbf16, #tpu.memory_space<vmem>>, vector<1024x128xbf16>
    %cst_30 = arith.constant dense<0.000000e+00> : vector<64x128xf32>
    %30 = tpu.matmul %28, %29, %cst_30 {dimension_numbers = #tpu.dot_dimension_numbers<[1], [0], [0], [1], [0, 0, 1, 1], [], []>} : vector<64x1024xbf16>, vector<1024x128xbf16>, vector<64x128xf32> -> vector<64x128xf32>
    %c0_31 = arith.constant 0 : index
    %c0_32 = arith.constant 0 : index
    %31 = vector.load %arg4[%c0_31, %c0_32] : memref<128x128xbf16, #tpu.memory_space<vmem>>, vector<128x128xbf16>
    %cst_33 = arith.constant dense<0.000000e+00> : vector<64x128xf32>
    %32 = tpu.matmul %0, %31, %cst_33 {dimension_numbers = #tpu.dot_dimension_numbers<[1], [0], [0], [1], [0, 0, 1, 1], [], []>} : vector<64x128xbf16>, vector<128x128xbf16>, vector<64x128xf32> -> vector<64x128xf32>
    %33 = arith.addf %30, %32 : vector<64x128xf32>
    %c0_34 = arith.constant 0 : index
    %c0_35 = arith.constant 0 : index
    %34 = vector.load %arg5[%c0_34, %c0_35] : memref<1x128xf32, #tpu.memory_space<vmem>>, vector<1x128xf32>
    %35 = vector.broadcast %34 : vector<1x128xf32> to vector<64x128xf32>
    %36 = arith.addf %33, %35 : vector<64x128xf32>
    %cst_36 = arith.constant 0.000000e+00 : f32
    %37 = vector.broadcast %cst_36 : f32 to vector<64x128xf32>
    %38 = arith.maximumf %36, %37 : vector<64x128xf32>
    %c0_37 = arith.constant 0 : index
    %c0_38 = arith.constant 0 : index
    %39 = vector.load %arg12[%c0_37, %c0_38] : memref<64x128xf32, #tpu.memory_space<vmem>>, vector<64x128xf32>
    tpu.vector_store %arg12[%c0_37, %c0_38], %38 {strides = array<i32>} : memref<64x128xf32, #tpu.memory_space<vmem>>, vector<64x128xf32>,
    %c0_39 = arith.constant 0 : index
    %c0_40 = arith.constant 0 : index
    %40 = vector.load %arg12[%c0_39, %c0_40] : memref<64x128xf32, #tpu.memory_space<vmem>>, vector<64x128xf32>
    %41 = arith.truncf %40 : vector<64x128xf32> to vector<64x128xbf16>
    %c0_41 = arith.constant 0 : index
    %c0_42 = arith.constant 0 : index
    %42 = vector.load %arg1[%c0_41, %c0_42] : memref<512x64xbf16, #tpu.memory_space<vmem>>, vector<512x64xbf16>
    %cst_43 = arith.constant dense<0.000000e+00> : vector<512x128xf32>
    %43 = tpu.matmul %42, %41, %cst_43 {dimension_numbers = #tpu.dot_dimension_numbers<[1], [0], [0], [1], [0, 0, 1, 1], [], []>} : vector<512x64xbf16>, vector<64x128xbf16>, vector<512x128xf32> -> vector<512x128xf32>
    %c0_44 = arith.constant 0 : index
    %c0_45 = arith.constant 0 : index
    %44 = vector.load %arg10[%c0_44, %c0_45] : memref<512x128xf32, #tpu.memory_space<vmem>>, vector<512x128xf32>
    tpu.vector_store %arg10[%c0_44, %c0_45], %43 {strides = array<i32>} : memref<512x128xf32, #tpu.memory_space<vmem>>, vector<512x128xf32>,
    %c0_46 = arith.constant 0 : index
    %c0_47 = arith.constant 0 : index
    %45 = vector.load %arg10[%c0_46, %c0_47] : memref<512x128xf32, #tpu.memory_space<vmem>>, vector<64x128xf32>
    %46 = arith.truncf %45 : vector<64x128xf32> to vector<64x128xbf16>
    %c0_48 = arith.constant 0 : index
    %c0_49 = arith.constant 0 : index
    %47 = vector.load %arg11[%c0_48, %c0_49] : memref<64x1024xbf16, #tpu.memory_space<vmem>>, vector<64x128xbf16>
    tpu.vector_store %arg11[%c0_48, %c0_49], %46 {strides = array<i32>} : memref<64x1024xbf16, #tpu.memory_space<vmem>>, vector<64x128xbf16>,
    %c64_50 = arith.constant 64 : index
    %c0_51 = arith.constant 0 : index
    %48 = vector.load %arg10[%c64_50, %c0_51] : memref<512x128xf32, #tpu.memory_space<vmem>>, vector<64x128xf32>
    %49 = arith.truncf %48 : vector<64x128xf32> to vector<64x128xbf16>
    %c0_52 = arith.constant 0 : index
    %c128_53 = arith.constant 128 : index
    %50 = vector.load %arg11[%c0_52, %c128_53] : memref<64x1024xbf16, #tpu.memory_space<vmem>>, vector<64x128xbf16>
    tpu.vector_store %arg11[%c0_52, %c128_53], %49 {strides = array<i32>} : memref<64x1024xbf16, #tpu.memory_space<vmem>>, vector<64x128xbf16>,
    %c128_54 = arith.constant 128 : index
    %c0_55 = arith.constant 0 : index
    %51 = vector.load %arg10[%c128_54, %c0_55] : memref<512x128xf32, #tpu.memory_space<vmem>>, vector<64x128xf32>
    %52 = arith.truncf %51 : vector<64x128xf32> to vector<64x128xbf16>
    %c0_56 = arith.constant 0 : index
    %c256_57 = arith.constant 256 : index
    %53 = vector.load %arg11[%c0_56, %c256_57] : memref<64x1024xbf16, #tpu.memory_space<vmem>>, vector<64x128xbf16>
    tpu.vector_store %arg11[%c0_56, %c256_57], %52 {strides = array<i32>} : memref<64x1024xbf16, #tpu.memory_space<vmem>>, vector<64x128xbf16>,
    %c192_58 = arith.constant 192 : index
    %c0_59 = arith.constant 0 : index
    %54 = vector.load %arg10[%c192_58, %c0_59] : memref<512x128xf32, #tpu.memory_space<vmem>>, vector<64x128xf32>
    %55 = arith.truncf %54 : vector<64x128xf32> to vector<64x128xbf16>
    %c0_60 = arith.constant 0 : index
    %c384_61 = arith.constant 384 : index
    %56 = vector.load %arg11[%c0_60, %c384_61] : memref<64x1024xbf16, #tpu.memory_space<vmem>>, vector<64x128xbf16>
    tpu.vector_store %arg11[%c0_60, %c384_61], %55 {strides = array<i32>} : memref<64x1024xbf16, #tpu.memory_space<vmem>>, vector<64x128xbf16>,
    %c256_62 = arith.constant 256 : index
    %c0_63 = arith.constant 0 : index
    %57 = vector.load %arg10[%c256_62, %c0_63] : memref<512x128xf32, #tpu.memory_space<vmem>>, vector<64x128xf32>
    %58 = arith.truncf %57 : vector<64x128xf32> to vector<64x128xbf16>
    %c0_64 = arith.constant 0 : index
    %c512_65 = arith.constant 512 : index
    %59 = vector.load %arg11[%c0_64, %c512_65] : memref<64x1024xbf16, #tpu.memory_space<vmem>>, vector<64x128xbf16>
    tpu.vector_store %arg11[%c0_64, %c512_65], %58 {strides = array<i32>} : memref<64x1024xbf16, #tpu.memory_space<vmem>>, vector<64x128xbf16>,
    %c320_66 = arith.constant 320 : index
    %c0_67 = arith.constant 0 : index
    %60 = vector.load %arg10[%c320_66, %c0_67] : memref<512x128xf32, #tpu.memory_space<vmem>>, vector<64x128xf32>
    %61 = arith.truncf %60 : vector<64x128xf32> to vector<64x128xbf16>
    %c0_68 = arith.constant 0 : index
    %c640_69 = arith.constant 640 : index
    %62 = vector.load %arg11[%c0_68, %c640_69] : memref<64x1024xbf16, #tpu.memory_space<vmem>>, vector<64x128xbf16>
    tpu.vector_store %arg11[%c0_68, %c640_69], %61 {strides = array<i32>} : memref<64x1024xbf16, #tpu.memory_space<vmem>>, vector<64x128xbf16>,
    %c384_70 = arith.constant 384 : index
    %c0_71 = arith.constant 0 : index
    %63 = vector.load %arg10[%c384_70, %c0_71] : memref<512x128xf32, #tpu.memory_space<vmem>>, vector<64x128xf32>
    %64 = arith.truncf %63 : vector<64x128xf32> to vector<64x128xbf16>
    %c0_72 = arith.constant 0 : index
    %c768_73 = arith.constant 768 : index
    %65 = vector.load %arg11[%c0_72, %c768_73] : memref<64x1024xbf16, #tpu.memory_space<vmem>>, vector<64x128xbf16>
    tpu.vector_store %arg11[%c0_72, %c768_73], %64 {strides = array<i32>} : memref<64x1024xbf16, #tpu.memory_space<vmem>>, vector<64x128xbf16>,
    %c448_74 = arith.constant 448 : index
    %c0_75 = arith.constant 0 : index
    %66 = vector.load %arg10[%c448_74, %c0_75] : memref<512x128xf32, #tpu.memory_space<vmem>>, vector<64x128xf32>
    %67 = arith.truncf %66 : vector<64x128xf32> to vector<64x128xbf16>
    %c0_76 = arith.constant 0 : index
    %c896_77 = arith.constant 896 : index
    %68 = vector.load %arg11[%c0_76, %c896_77] : memref<64x1024xbf16, #tpu.memory_space<vmem>>, vector<64x128xbf16>
    tpu.vector_store %arg11[%c0_76, %c896_77], %67 {strides = array<i32>} : memref<64x1024xbf16, #tpu.memory_space<vmem>>, vector<64x128xbf16>,
    %c0_78 = arith.constant 0 : index
    %c0_79 = arith.constant 0 : index
    %69 = vector.load %arg11[%c0_78, %c0_79] : memref<64x1024xbf16, #tpu.memory_space<vmem>>, vector<64x1024xbf16>
    %c0_80 = arith.constant 0 : index
    %c0_81 = arith.constant 0 : index
    %70 = vector.load %arg6[%c0_80, %c0_81] : memref<1024x128xbf16, #tpu.memory_space<vmem>>, vector<1024x128xbf16>
    %cst_82 = arith.constant dense<0.000000e+00> : vector<64x128xf32>
    %71 = tpu.matmul %69, %70, %cst_82 {dimension_numbers = #tpu.dot_dimension_numbers<[1], [0], [0], [1], [0, 0, 1, 1], [], []>} : vector<64x1024xbf16>, vector<1024x128xbf16>, vector<64x128xf32> -> vector<64x128xf32>
    %c0_83 = arith.constant 0 : index
    %c0_84 = arith.constant 0 : index
    %72 = vector.load %arg7[%c0_83, %c0_84] : memref<128x128xbf16, #tpu.memory_space<vmem>>, vector<128x128xbf16>
    %cst_85 = arith.constant dense<0.000000e+00> : vector<64x128xf32>
    %73 = tpu.matmul %41, %72, %cst_85 {dimension_numbers = #tpu.dot_dimension_numbers<[1], [0], [0], [1], [0, 0, 1, 1], [], []>} : vector<64x128xbf16>, vector<128x128xbf16>, vector<64x128xf32> -> vector<64x128xf32>
    %74 = arith.addf %71, %73 : vector<64x128xf32>
    %c0_86 = arith.constant 0 : index
    %c0_87 = arith.constant 0 : index
    %75 = vector.load %arg8[%c0_86, %c0_87] : memref<1x128xf32, #tpu.memory_space<vmem>>, vector<1x128xf32>
    %76 = vector.broadcast %75 : vector<1x128xf32> to vector<64x128xf32>
    %77 = arith.addf %74, %76 : vector<64x128xf32>
    %cst_88 = arith.constant 0.000000e+00 : f32
    %78 = vector.broadcast %cst_88 : f32 to vector<64x128xf32>
    %79 = arith.maximumf %77, %78 : vector<64x128xf32>
    %c0_89 = arith.constant 0 : index
    %c0_90 = arith.constant 0 : index
    %80 = vector.load %arg9[%c0_89, %c0_90] : memref<64x128xf32, #tpu.memory_space<vmem>>, vector<64x128xf32>
    tpu.vector_store %arg9[%c0_89, %c0_90], %79 {strides = array<i32>} : memref<64x128xf32, #tpu.memory_space<vmem>>, vector<64x128xf32>,
    return
  }
  func.func @transform_0(%arg0: i32) -> (i32, i32) {
    %c0_i32 = arith.constant 0 : i32
    %c0_i32_0 = arith.constant 0 : i32
    %c0_i32_1 = arith.constant 0 : i32
    return %c0_i32, %c0_i32_0 : i32, i32
  }
  func.func @transform_1(%arg0: i32) -> (i32, i32) {
    %c0_i32 = arith.constant 0 : i32
    %c0_i32_0 = arith.constant 0 : i32
    %c0_i32_1 = arith.constant 0 : i32
    return %c0_i32, %c0_i32_0 : i32, i32
  }
  func.func @transform_2(%arg0: i32) -> (i32, i32) {
    %c0_i32 = arith.constant 0 : i32
    %c0_i32_0 = arith.constant 0 : i32
    %c0_i32_1 = arith.constant 0 : i32
    return %c0_i32, %c0_i32_0 : i32, i32
  }
  func.func @transform_3(%arg0: i32) -> (i32, i32) {
    %c0_i32 = arith.constant 0 : i32
    %c0_i32_0 = arith.constant 0 : i32
    %c0_i32_1 = arith.constant 0 : i32
    return %c0_i32, %c0_i32_0 : i32, i32
  }
  func.func @transform_4(%arg0: i32) -> (i32, i32) {
    %c0_i32 = arith.constant 0 : i32
    %c0_i32_0 = arith.constant 0 : i32
    %c0_i32_1 = arith.constant 0 : i32
    return %c0_i32, %c0_i32_0 : i32, i32
  }
  func.func @transform_5(%arg0: i32) -> (i32, i32) {
    %c0_i32 = arith.constant 0 : i32
    %c0_i32_0 = arith.constant 0 : i32
    %c0_i32_1 = arith.constant 0 : i32
    return %c0_i32, %c0_i32_0 : i32, i32
  }
  func.func @transform_6(%arg0: i32) -> (i32, i32) {
    %c0_i32 = arith.constant 0 : i32
    %c0_i32_0 = arith.constant 0 : i32
    %c0_i32_1 = arith.constant 0 : i32
    return %c0_i32, %c0_i32_0 : i32, i32
  }
  func.func @transform_7(%arg0: i32) -> (i32, i32) {
    %c0_i32 = arith.constant 0 : i32
    %c0_i32_0 = arith.constant 0 : i32
    %c0_i32_1 = arith.constant 0 : i32
    return %c0_i32, %c0_i32_0 : i32, i32
  }
  func.func @transform_8(%arg0: i32) -> (i32, i32) {
    %c0_i32 = arith.constant 0 : i32
    %c0_i32_0 = arith.constant 0 : i32
    %c0_i32_1 = arith.constant 0 : i32
    return %c0_i32, %c0_i32_0 : i32, i32
  }
}

</mosaic_0001>

<llo_original>
// kernel: encoder_forward.1
$region0: #{encoder_forward.1}
  #allocation0 [shape = 'u32[]', space=smem, size = 0x4, offset = 0x4, fixed_abs, tag = 'smem constant byte address 0x4 - core index']
  #allocation1 [shape = 'u32[144,128]{1,0:T(1,128)}', space=vmem, size = 0x12000, scoped, tag = 'internal scratch']
  #allocation2 [shape = 'f32[512,128]{1,0:T(8,128)}', space=vmem, size = 0x40000, scoped, tag = 'scratch operand']
  #allocation3 [shape = 'bf16[64,1024]{1,0:T(16,128)(2,1)}', space=vmem, size = 0x20000, scoped, tag = 'scratch operand']
  #allocation4 [shape = 'f32[64,128]{1,0:T(8,128)}', space=vmem, size = 0x8000, scoped, tag = 'scratch operand']
  %s0 = inlined_call_operand.vmem [shape: bf16[512,64], index: 0, kind: input, shape index: {}]
  %s1 = inlined_call_operand.vmem [shape: bf16[64,128], index: 1, kind: input, shape index: {}]
  %s2 = inlined_call_operand.vmem [shape: bf16[1024,128], index: 2, kind: input, shape index: {}]
  %s3 = inlined_call_operand.vmem [shape: bf16[128,128], index: 3, kind: input, shape index: {}]
  %s4 = inlined_call_operand.vmem [shape: f32[1,128], index: 4, kind: input, shape index: {}]
  %s5 = inlined_call_operand.vmem [shape: bf16[1024,128], index: 5, kind: input, shape index: {}]
  %s6 = inlined_call_operand.vmem [shape: bf16[128,128], index: 6, kind: input, shape index: {}]
  %s7 = inlined_call_operand.vmem [shape: f32[1,128], index: 7, kind: input, shape index: {}]
  %s8 = inlined_call_operand.hbm [shape: f32[64,128], index: 8, kind: output, shape index: {}]
  %s9 = sld [smem:[#allocation0]]
  $region42: #{encoder_forward.1} parent=0
    _
  %s11 = ssub.s32 1, %s9
  %s12 = scalar_select 0, %s11, %s9
  $region1: #{encoder_forward.1} parent=0
    #allocation5 [shape = 'u8[32768]{0}', space=vmem, size = 0x8000, scoped, tag = 'output window, operand 0, single buffered']
    #allocation6 [shape = 's32[1]{0}', space=sflag, size = 0x4, scoped, tag = 'scoped memory for encoder_forward.1']
    %13 = vsyncpa [#allocation6], 0
    // Predicated region
    $region2: #{encoder_forward.1} parent=1 // pred_check
      _
    $region3: #{encoder_forward.1} parent=1 // pred_check_branch
      %15 = sbr.rel (0) target = $region5
    $region4: #{encoder_forward.1} parent=1 // pred_region
      _
    $region5: #{encoder_forward.1} parent=1 // pred_fallthru
      _
    // Predicated region
    $region6: #{encoder_forward.1} parent=1 // pred_check
      _
    $region7: #{encoder_forward.1} parent=1 // pred_check_branch
      %17 = sbr.rel (0) target = $region9
    $region8: #{encoder_forward.1} parent=1 // pred_region
      _
    $region9: #{encoder_forward.1} parent=1 // pred_fallthru
      _
    // Predicated region
    $region10: #{encoder_forward.1} parent=1 // pred_check
      _
    $region11: #{encoder_forward.1} parent=1 // pred_check_branch
      %19 = sbr.rel (0) target = $region13
    $region12: #{encoder_forward.1} parent=1 // pred_region
      _
    $region13: #{encoder_forward.1} parent=1 // pred_fallthru
      _
    // Predicated region
    $region14: #{encoder_forward.1} parent=1 // pred_check
      _
    $region15: #{encoder_forward.1} parent=1 // pred_check_branch
      %21 = sbr.rel (0) target = $region17
    $region16: #{encoder_forward.1} parent=1 // pred_region
      _
    $region17: #{encoder_forward.1} parent=1 // pred_fallthru
      _
    // Predicated region
    $region18: #{encoder_forward.1} parent=1 // pred_check
      _
    $region19: #{encoder_forward.1} parent=1 // pred_check_branch
      %23 = sbr.rel (0) target = $region21
    $region20: #{encoder_forward.1} parent=1 // pred_region
      _
    $region21: #{encoder_forward.1} parent=1 // pred_fallthru
      _
    // Predicated region
    $region22: #{encoder_forward.1} parent=1 // pred_check
      _
    $region23: #{encoder_forward.1} parent=1 // pred_check_branch
      %25 = sbr.rel (0) target = $region25
    $region24: #{encoder_forward.1} parent=1 // pred_region
      _
    $region25: #{encoder_forward.1} parent=1 // pred_fallthru
      _
    // Predicated region
    $region26: #{encoder_forward.1} parent=1 // pred_check
      _
    $region27: #{encoder_forward.1} parent=1 // pred_check_branch
      %27 = sbr.rel (0) target = $region29
    $region28: #{encoder_forward.1} parent=1 // pred_region
      _
    $region29: #{encoder_forward.1} parent=1 // pred_fallthru
      _
    // Predicated region
    $region30: #{encoder_forward.1} parent=1 // pred_check
      _
    $region31: #{encoder_forward.1} parent=1 // pred_check_branch
      %29 = sbr.rel (0) target = $region33
    $region32: #{encoder_forward.1} parent=1 // pred_region
      _
    $region33: #{encoder_forward.1} parent=1 // pred_fallthru
      _
    %v31 = vld [vmem:[%s1] sm:$0xf]
    %v32 = vld [vmem:[%s1 + $0x4] sm:$0xf]
    %v33 = vld [vmem:[%s1 + $0x8] sm:$0xf]
    %v34 = vld [vmem:[%s1 + $0xc] sm:$0xf]
    %v35 = vld [vmem:[%s1 + $0x10] sm:$0xf]
    %v36 = vld [vmem:[%s1 + $0x14] sm:$0xf]
    %v37 = vld [vmem:[%s1 + $0x18] sm:$0xf]
    %v38 = vld [vmem:[%s1 + $0x1c] sm:$0xf]
    %v39 = vld [vmem:[%s0] sm:$0xf]
    %v40 = vld [vmem:[%s0 + $0x4] sm:$0xf]
    %v41 = vld [vmem:[%s0 + $0x8] sm:$0xf]
    %v42 = vld [vmem:[%s0 + $0xc] sm:$0xf]
    %v43 = vld [vmem:[%s0 + $0x10] sm:$0xf]
    %v44 = vld [vmem:[%s0 + $0x14] sm:$0xf]
    %v45 = vld [vmem:[%s0 + $0x18] sm:$0xf]
    %v46 = vld [vmem:[%s0 + $0x1c] sm:$0xf]
    %v47 = vld [vmem:[%s0 + $0x20] sm:$0xf]
    %v48 = vld [vmem:[%s0 + $0x24] sm:$0xf]
    %v49 = vld [vmem:[%s0 + $0x28] sm:$0xf]
    %v50 = vld [vmem:[%s0 + $0x2c] sm:$0xf]
    %v51 = vld [vmem:[%s0 + $0x30] sm:$0xf]
    %v52 = vld [vmem:[%s0 + $0x34] sm:$0xf]
    %v53 = vld [vmem:[%s0 + $0x38] sm:$0xf]
    %v54 = vld [vmem:[%s0 + $0x3c] sm:$0xf]
    %v55 = vld [vmem:[%s0 + $0x40] sm:$0xf]
    %v56 = vld [vmem:[%s0 + $0x44] sm:$0xf]
    %v57 = vld [vmem:[%s0 + $0x48] sm:$0xf]
    %v58 = vld [vmem:[%s0 + $0x4c] sm:$0xf]
    %v59 = vld [vmem:[%s0 + $0x50] sm:$0xf]
    %v60 = vld [vmem:[%s0 + $0x54] sm:$0xf]
    %v61 = vld [vmem:[%s0 + $0x58] sm:$0xf]
    %v62 = vld [vmem:[%s0 + $0x5c] sm:$0xf]
    %v63 = vld [vmem:[%s0 + $0x60] sm:$0xf]
    %v64 = vld [vmem:[%s0 + $0x64] sm:$0xf]
    %v65 = vld [vmem:[%s0 + $0x68] sm:$0xf]
    %v66 = vld [vmem:[%s0 + $0x6c] sm:$0xf]
    %v67 = vld [vmem:[%s0 + $0x70] sm:$0xf]
    %v68 = vld [vmem:[%s0 + $0x74] sm:$0xf]
    %v69 = vld [vmem:[%s0 + $0x78] sm:$0xf]
    %v70 = vld [vmem:[%s0 + $0x7c] sm:$0xf]
    %v71 = vld [vmem:[%s0 + $0x80] sm:$0xf]
    %v72 = vld [vmem:[%s0 + $0x84] sm:$0xf]
    %v73 = vld [vmem:[%s0 + $0x88] sm:$0xf]
    %v74 = vld [vmem:[%s0 + $0x8c] sm:$0xf]
    %v75 = vld [vmem:[%s0 + $0x90] sm:$0xf]
    %v76 = vld [vmem:[%s0 + $0x94] sm:$0xf]
    %v77 = vld [vmem:[%s0 + $0x98] sm:$0xf]
    %v78 = vld [vmem:[%s0 + $0x9c] sm:$0xf]
    %v79 = vld [vmem:[%s0 + $0xa0] sm:$0xf]
    %v80 = vld [vmem:[%s0 + $0xa4] sm:$0xf]
    %v81 = vld [vmem:[%s0 + $0xa8] sm:$0xf]
    %v82 = vld [vmem:[%s0 + $0xac] sm:$0xf]
    %v83 = vld [vmem:[%s0 + $0xb0] sm:$0xf]
    %v84 = vld [vmem:[%s0 + $0xb4] sm:$0xf]
    %v85 = vld [vmem:[%s0 + $0xb8] sm:$0xf]
    %v86 = vld [vmem:[%s0 + $0xbc] sm:$0xf]
    %v87 = vld [vmem:[%s0 + $0xc0] sm:$0xf]
    %v88 = vld [vmem:[%s0 + $0xc4] sm:$0xf]
    %v89 = vld [vmem:[%s0 + $0xc8] sm:$0xf]
    %v90 = vld [vmem:[%s0 + $0xcc] sm:$0xf]
    %v91 = vld [vmem:[%s0 + $0xd0] sm:$0xf]
    %v92 = vld [vmem:[%s0 + $0xd4] sm:$0xf]
    %v93 = vld [vmem:[%s0 + $0xd8] sm:$0xf]
    %v94 = vld [vmem:[%s0 + $0xdc] sm:$0xf]
    %v95 = vld [vmem:[%s0 + $0xe0] sm:$0xf]
    %v96 = vld [vmem:[%s0 + $0xe4] sm:$0xf]
    %v97 = vld [vmem:[%s0 + $0xe8] sm:$0xf]
    %v98 = vld [vmem:[%s0 + $0xec] sm:$0xf]
    %v99 = vld [vmem:[%s0 + $0xf0] sm:$0xf]
    %v100 = vld [vmem:[%s0 + $0xf4] sm:$0xf]
    %v101 = vld [vmem:[%s0 + $0xf8] sm:$0xf]
    %v102 = vld [vmem:[%s0 + $0xfc] sm:$0xf]
    %v167 = vunpack.c.l.b16 %v39
    %v168 = vunpack.c.l.b16 %v40
    %v169 = vunpack.c.l.b16 %v41
    %v170 = vunpack.c.l.b16 %v42
    %v171 = vunpack.c.l.b16 %v43
    %v172 = vunpack.c.l.b16 %v44
    %v173 = vunpack.c.l.b16 %v45
    %v174 = vunpack.c.l.b16 %v46
    %v175 = vunpack.c.l.b16 %v47
    %v176 = vunpack.c.l.b16 %v48
    %v177 = vunpack.c.l.b16 %v49
    %v178 = vunpack.c.l.b16 %v50
    %v179 = vunpack.c.l.b16 %v51
    %v180 = vunpack.c.l.b16 %v52
    %v181 = vunpack.c.l.b16 %v53
    %v182 = vunpack.c.l.b16 %v54
    %v183 = vunpack.c.l.b16 %v55
    %v184 = vunpack.c.l.b16 %v56
    %v185 = vunpack.c.l.b16 %v57
    %v186 = vunpack.c.l.b16 %v58
    %v187 = vunpack.c.l.b16 %v59
    %v188 = vunpack.c.l.b16 %v60
    %v189 = vunpack.c.l.b16 %v61
    %v190 = vunpack.c.l.b16 %v62
    %v191 = vunpack.c.l.b16 %v63
    %v192 = vunpack.c.l.b16 %v64
    %v193 = vunpack.c.l.b16 %v65
    %v194 = vunpack.c.l.b16 %v66
    %v195 = vunpack.c.l.b16 %v67
    %v196 = vunpack.c.l.b16 %v68
    %v197 = vunpack.c.l.b16 %v69
    %v198 = vunpack.c.l.b16 %v70
    %v199 = vunpack.c.l.b16 %v71
    %v200 = vunpack.c.l.b16 %v72
    %v201 = vunpack.c.l.b16 %v73
    %v202 = vunpack.c.l.b16 %v74
    %v203 = vunpack.c.l.b16 %v75
    %v204 = vunpack.c.l.b16 %v76
    %v205 = vunpack.c.l.b16 %v77
    %v206 = vunpack.c.l.b16 %v78
    %v207 = vunpack.c.l.b16 %v79
    %v208 = vunpack.c.l.b16 %v80
    %v209 = vunpack.c.l.b16 %v81
    %v210 = vunpack.c.l.b16 %v82
    %v211 = vunpack.c.l.b16 %v83
    %v212 = vunpack.c.l.b16 %v84
    %v213 = vunpack.c.l.b16 %v85
    %v214 = vunpack.c.l.b16 %v86
    %v215 = vunpack.c.l.b16 %v87
    %v216 = vunpack.c.l.b16 %v88
    %v217 = vunpack.c.l.b16 %v89
    %v218 = vunpack.c.l.b16 %v90
    %v219 = vunpack.c.l.b16 %v91
    %v220 = vunpack.c.l.b16 %v92
    %v221 = vunpack.c.l.b16 %v93
    %v222 = vunpack.c.l.b16 %v94
    %v223 = vunpack.c.l.b16 %v95
    %v224 = vunpack.c.l.b16 %v96
    %v225 = vunpack.c.l.b16 %v97
    %v226 = vunpack.c.l.b16 %v98
    %v227 = vunpack.c.l.b16 %v99
    %v228 = vunpack.c.l.b16 %v100
    %v229 = vunpack.c.l.b16 %v101
    %v230 = vunpack.c.l.b16 %v102
    %v231 = vpack.c.b16 %v168, %v167
    %v232 = vpack.c.b16 %v170, %v169
    %v233 = vpack.c.b16 %v172, %v171
    %v234 = vpack.c.b16 %v174, %v173
    %v235 = vpack.c.b16 %v176, %v175
    %v236 = vpack.c.b16 %v178, %v177
    %v237 = vpack.c.b16 %v180, %v179
    %v238 = vpack.c.b16 %v182, %v181
    %v239 = vpack.c.b16 %v184, %v183
    %v240 = vpack.c.b16 %v186, %v185
    %v241 = vpack.c.b16 %v188, %v187
    %v242 = vpack.c.b16 %v190, %v189
    %v243 = vpack.c.b16 %v192, %v191
    %v244 = vpack.c.b16 %v194, %v193
    %v245 = vpack.c.b16 %v196, %v195
    %v246 = vpack.c.b16 %v198, %v197
    %v247 = vpack.c.b16 %v200, %v199
    %v248 = vpack.c.b16 %v202, %v201
    %v249 = vpack.c.b16 %v204, %v203
    %v250 = vpack.c.b16 %v206, %v205
    %v251 = vpack.c.b16 %v208, %v207
    %v252 = vpack.c.b16 %v210, %v209
    %v253 = vpack.c.b16 %v212, %v211
    %v254 = vpack.c.b16 %v214, %v213
    %v255 = vpack.c.b16 %v216, %v215
    %v256 = vpack.c.b16 %v218, %v217
    %v257 = vpack.c.b16 %v220, %v219
    %v258 = vpack.c.b16 %v222, %v221
    %v259 = vpack.c.b16 %v224, %v223
    %v260 = vpack.c.b16 %v226, %v225
    %v261 = vpack.c.b16 %v228, %v227
    %v262 = vpack.c.b16 %v230, %v229
    %v271 = vunpack.c.l.b16 %v31
    %v272 = vunpack.c.l.b16 %v32
    %v273 = vunpack.c.l.b16 %v33
    %v274 = vunpack.c.l.b16 %v34
    %v275 = vunpack.c.l.b16 %v35
    %v276 = vunpack.c.l.b16 %v36
    %v277 = vunpack.c.l.b16 %v37
    %v278 = vunpack.c.l.b16 %v38
    %v279 = vpack.c.b16 %v272, %v271
    %v280 = vpack.c.b16 %v274, %v273
    %v281 = vpack.c.b16 %v276, %v275
    %v282 = vpack.c.b16 %v278, %v277
    %vm287 = vcmask 523264
    %v289 = vsel %vm287, %v231, 0
    %v292 = vsel %vm287, %v232, 0
    %v295 = vsel %vm287, %v233, 0
    %v298 = vsel %vm287, %v234, 0
    %v301 = vsel %vm287, %v235, 0
    %v304 = vsel %vm287, %v236, 0
    %v307 = vsel %vm287, %v237, 0
    %v310 = vsel %vm287, %v238, 0
    %v313 = vsel %vm287, %v239, 0
    %v316 = vsel %vm287, %v240, 0
    %v319 = vsel %vm287, %v241, 0
    %v322 = vsel %vm287, %v242, 0
    %v325 = vsel %vm287, %v243, 0
    %v328 = vsel %vm287, %v244, 0
    %v331 = vsel %vm287, %v245, 0
    %v334 = vsel %vm287, %v246, 0
    %v337 = vsel %vm287, %v247, 0
    %v340 = vsel %vm287, %v248, 0
    %v343 = vsel %vm287, %v249, 0
    %v346 = vsel %vm287, %v250, 0
    %v349 = vsel %vm287, %v251, 0
    %v352 = vsel %vm287, %v252, 0
    %v355 = vsel %vm287, %v253, 0
    %v358 = vsel %vm287, %v254, 0
    %v361 = vsel %vm287, %v255, 0
    %v364 = vsel %vm287, %v256, 0
    %v367 = vsel %vm287, %v257, 0
    %v370 = vsel %vm287, %v258, 0
    %v373 = vsel %vm287, %v259, 0
    %v376 = vsel %vm287, %v260, 0
    %v379 = vsel %vm287, %v261, 0
    %v382 = vsel %vm287, %v262, 0
    %384 = vmatprep.subr.bf16.mxu0 0
    %385 = vmatpush1.bf16.msra.mxu0 %v279
    %386 = vmatprep.subr.bf16.mxu0 0
    %387 = vmatpush1.bf16.msra.mxu0 %v280
    %388 = vmatprep.subr.bf16.mxu0 0
    %389 = vmatpush1.bf16.msra.mxu0 %v281
    %390 = vmatprep.subr.bf16.mxu0 0
    %391 = vmatpush1.bf16.msra.mxu0 %v282
    %392 = vmatprep.subr.bf16.mxu0 0
    %393 = vmatpush1.bf16.msra.mxu0 0
    %394 = vmatprep.subr.bf16.mxu0 0
    %395 = vmatpush1.bf16.msra.mxu0 0
    %396 = vmatprep.subr.bf16.mxu0 0
    %397 = vmatpush1.bf16.msra.mxu0 0
    %398 = vmatprep.subr.bf16.mxu0 0
    %399 = vmatpush1.bf16.msra.mxu0 0
    %400 = vmatprep.subr.bf16.mxu0 0
    %401 = vmatpush1.bf16.msra.mxu0 0
    %402 = vmatprep.subr.bf16.mxu0 0
    %403 = vmatpush1.bf16.msra.mxu0 0
    %404 = vmatprep.subr.bf16.mxu0 0
    %405 = vmatpush1.bf16.msra.mxu0 0
    %406 = vmatprep.subr.bf16.mxu0 0
    %407 = vmatpush1.bf16.msra.mxu0 0
    %408 = vmatprep.subr.bf16.mxu0 0
    %409 = vmatpush1.bf16.msra.mxu0 0
    %410 = vmatprep.subr.bf16.mxu0 0
    %411 = vmatpush1.bf16.msra.mxu0 0
    %412 = vmatprep.subr.bf16.mxu0 0
    %413 = vmatpush1.bf16.msra.mxu0 0
    %414 = vmatprep.subr.bf16.mxu0 0
    %415 = vmatpush1.bf16.msra.mxu0 0
    %416 = vmatprep.mubr.bf16.mxu0 0
    %417 = vmatmul.mubr.bf16.gmra.mrb[0].mxu0 %v289
    %v418 = vpop.f32.mrb[0].mxu0
    %v419 = vadd.f32 0.0, %v418
    %v420 = vpop.f32.mrb[0].mxu0
    %v421 = vpop.f32.mrb[0].mxu0
    %v422 = vadd.f32 0.0, %v421
    %v423 = vpop.f32.mrb[0].mxu0
    %424 = vmatprep.mubr.bf16.mxu0 0
    %425 = vmatmul.mubr.bf16.gmra.mrb[0].mxu0 %v292
    %v426 = vpop.f32.mrb[0].mxu0
    %v427 = vadd.f32 0.0, %v426
    %v428 = vpop.f32.mrb[0].mxu0
    %v429 = vpop.f32.mrb[0].mxu0
    %v430 = vadd.f32 0.0, %v429
    %v431 = vpop.f32.mrb[0].mxu0
    %432 = vmatprep.mubr.bf16.mxu0 0
    %433 = vmatmul.mubr.bf16.gmra.mrb[0].mxu0 %v295
    %v434 = vpop.f32.mrb[0].mxu0
    %v435 = vadd.f32 0.0, %v434
    %v436 = vpop.f32.mrb[0].mxu0
    %v437 = vpop.f32.mrb[0].mxu0
    %v438 = vadd.f32 0.0, %v437
    %v439 = vpop.f32.mrb[0].mxu0
    %440 = vmatprep.mubr.bf16.mxu0 0
    %441 = vmatmul.mubr.bf16.gmra.mrb[0].mxu0 %v298
    %v442 = vpop.f32.mrb[0].mxu0
    %v443 = vadd.f32 0.0, %v442
    %v444 = vpop.f32.mrb[0].mxu0
    %v445 = vpop.f32.mrb[0].mxu0
    %v446 = vadd.f32 0.0, %v445
    %v447 = vpop.f32.mrb[0].mxu0
    %448 = vmatprep.mubr.bf16.mxu0 0
    %449 = vmatmul.mubr.bf16.gmra.mrb[0].mxu0 %v301
    %v450 = vpop.f32.mrb[0].mxu0
    %v451 = vadd.f32 0.0, %v450
    %v452 = vpop.f32.mrb[0].mxu0
    %v453 = vpop.f32.mrb[0].mxu0
    %v454 = vadd.f32 0.0, %v453
    %v455 = vpop.f32.mrb[0].mxu0
    %456 = vmatprep.mubr.bf16.mxu0 0
    %457 = vmatmul.mubr.bf16.gmra.mrb[0].mxu0 %v304
    %v458 = vpop.f32.mrb[0].mxu0
    %v459 = vadd.f32 0.0, %v458
    %v460 = vpop.f32.mrb[0].mxu0
    %v461 = vpop.f32.mrb[0].mxu0
    %v462 = vadd.f32 0.0, %v461
    %v463 = vpop.f32.mrb[0].mxu0
    %464 = vmatprep.mubr.bf16.mxu0 0
    %465 = vmatmul.mubr.bf16.gmra.mrb[0].mxu0 %v307
    %v466 = vpop.f32.mrb[0].mxu0
    %v467 = vadd.f32 0.0, %v466
    %v468 = vpop.f32.mrb[0].mxu0
    %v469 = vpop.f32.mrb[0].mxu0
    %v470 = vadd.f32 0.0, %v469
    %v471 = vpop.f32.mrb[0].mxu0
    %472 = vmatprep.mubr.bf16.mxu0 0
    %473 = vmatmul.mubr.bf16.gmra.mrb[0].mxu0 %v310
    %v474 = vpop.f32.mrb[0].mxu0
    %v475 = vadd.f32 0.0, %v474
    %v476 = vpop.f32.mrb[0].mxu0
    %v477 = vpop.f32.mrb[0].mxu0
    %v478 = vadd.f32 0.0, %v477
    %v479 = vpop.f32.mrb[0].mxu0
    %480 = vmatprep.mubr.bf16.mxu0 0
    %481 = vmatmul.mubr.bf16.gmra.mrb[0].mxu0 %v313
    %v482 = vpop.f32.mrb[0].mxu0
    %v483 = vadd.f32 0.0, %v482
    %v484 = vpop.f32.mrb[0].mxu0
    %v485 = vpop.f32.mrb[0].mxu0
    %v486 = vadd.f32 0.0, %v485
    %v487 = vpop.f32.mrb[0].mxu0
    %488 = vmatprep.mubr.bf16.mxu0 0
    %489 = vmatmul.mubr.bf16.gmra.mrb[0].mxu0 %v316
    %v490 = vpop.f32.mrb[0].mxu0
    %v491 = vadd.f32 0.0, %v490
    %v492 = vpop.f32.mrb[0].mxu0
    %v493 = vpop.f32.mrb[0].mxu0
    %v494 = vadd.f32 0.0, %v493
    %v495 = vpop.f32.mrb[0].mxu0
    %496 = vmatprep.mubr.bf16.mxu0 0
    %497 = vmatmul.mubr.bf16.gmra.mrb[0].mxu0 %v319
    %v498 = vpop.f32.mrb[0].mxu0
    %v499 = vadd.f32 0.0, %v498
    %v500 = vpop.f32.mrb[0].mxu0
    %v501 = vpop.f32.mrb[0].mxu0
    %v502 = vadd.f32 0.0, %v501
    %v503 = vpop.f32.mrb[0].mxu0
    %504 = vmatprep.mubr.bf16.mxu0 0
    %505 = vmatmul.mubr.bf16.gmra.mrb[0].mxu0 %v322
    %v506 = vpop.f32.mrb[0].mxu0
    %v507 = vadd.f32 0.0, %v506
    %v508 = vpop.f32.mrb[0].mxu0
    %v509 = vpop.f32.mrb[0].mxu0
    %v510 = vadd.f32 0.0, %v509
    %v511 = vpop.f32.mrb[0].mxu0
    %512 = vmatprep.mubr.bf16.mxu0 0
    %513 = vmatmul.mubr.bf16.gmra.mrb[0].mxu0 %v325
    %v514 = vpop.f32.mrb[0].mxu0
    %v515 = vadd.f32 0.0, %v514
    %v516 = vpop.f32.mrb[0].mxu0
    %v517 = vpop.f32.mrb[0].mxu0
    %v518 = vadd.f32 0.0, %v517
    %v519 = vpop.f32.mrb[0].mxu0
    %520 = vmatprep.mubr.bf16.mxu0 0
    %521 = vmatmul.mubr.bf16.gmra.mrb[0].mxu0 %v328
    %v522 = vpop.f32.mrb[0].mxu0
    %v523 = vadd.f32 0.0, %v522
    %v524 = vpop.f32.mrb[0].mxu0
    %v525 = vpop.f32.mrb[0].mxu0
    %v526 = vadd.f32 0.0, %v525
    %v527 = vpop.f32.mrb[0].mxu0
    %528 = vmatprep.mubr.bf16.mxu0 0
    %529 = vmatmul.mubr.bf16.gmra.mrb[0].mxu0 %v331
    %v530 = vpop.f32.mrb[0].mxu0
    %v531 = vadd.f32 0.0, %v530
    %v532 = vpop.f32.mrb[0].mxu0
    %v533 = vpop.f32.mrb[0].mxu0
    %v534 = vadd.f32 0.0, %v533
    %v535 = vpop.f32.mrb[0].mxu0
    %536 = vmatprep.mubr.bf16.mxu0 0
    %537 = vmatmul.mubr.bf16.gmra.mrb[0].mxu0 %v334
    %v538 = vpop.f32.mrb[0].mxu0
    %v539 = vadd.f32 0.0, %v538
    %v540 = vpop.f32.mrb[0].mxu0
    %v541 = vpop.f32.mrb[0].mxu0
    %v542 = vadd.f32 0.0, %v541
    %v543 = vpop.f32.mrb[0].mxu0
    %544 = vmatprep.mubr.bf16.mxu0 0
    %545 = vmatmul.mubr.bf16.gmra.mrb[0].mxu0 %v337
    %v546 = vpop.f32.mrb[0].mxu0
    %v547 = vadd.f32 0.0, %v546
    %v548 = vpop.f32.mrb[0].mxu0
    %v549 = vpop.f32.mrb[0].mxu0
    %v550 = vadd.f32 0.0, %v549
    %v551 = vpop.f32.mrb[0].mxu0
    %552 = vmatprep.mubr.bf16.mxu0 0
    %553 = vmatmul.mubr.bf16.gmra.mrb[0].mxu0 %v340
    %v554 = vpop.f32.mrb[0].mxu0
    %v555 = vadd.f32 0.0, %v554
    %v556 = vpop.f32.mrb[0].mxu0
    %v557 = vpop.f32.mrb[0].mxu0
    %v558 = vadd.f32 0.0, %v557
    %v559 = vpop.f32.mrb[0].mxu0
    %560 = vmatprep.mubr.bf16.mxu0 0
    %561 = vmatmul.mubr.bf16.gmra.mrb[0].mxu0 %v343
    %v562 = vpop.f32.mrb[0].mxu0
    %v563 = vadd.f32 0.0, %v562
    %v564 = vpop.f32.mrb[0].mxu0
    %v565 = vpop.f32.mrb[0].mxu0
    %v566 = vadd.f32 0.0, %v565
    %v567 = vpop.f32.mrb[0].mxu0
    %568 = vmatprep.mubr.bf16.mxu0 0
    %569 = vmatmul.mubr.bf16.gmra.mrb[0].mxu0 %v346
    %v570 = vpop.f32.mrb[0].mxu0
    %v571 = vadd.f32 0.0, %v570
    %v572 = vpop.f32.mrb[0].mxu0
    %v573 = vpop.f32.mrb[0].mxu0
    %v574 = vadd.f32 0.0, %v573
    %v575 = vpop.f32.mrb[0].mxu0
    %576 = vmatprep.mubr.bf16.mxu0 0
    %577 = vmatmul.mubr.bf16.gmra.mrb[0].mxu0 %v349
    %v578 = vpop.f32.mrb[0].mxu0
    %v579 = vadd.f32 0.0, %v578
    %v580 = vpop.f32.mrb[0].mxu0
    %v581 = vpop.f32.mrb[0].mxu0
    %v582 = vadd.f32 0.0, %v581
    %v583 = vpop.f32.mrb[0].mxu0
    %584 = vmatprep.mubr.bf16.mxu0 0
    %585 = vmatmul.mubr.bf16.gmra.mrb[0].mxu0 %v352
    %v586 = vpop.f32.mrb[0].mxu0
    %v587 = vadd.f32 0.0, %v586
    %v588 = vpop.f32.mrb[0].mxu0
    %v589 = vpop.f32.mrb[0].mxu0
    %v590 = vadd.f32 0.0, %v589
    %v591 = vpop.f32.mrb[0].mxu0
    %592 = vmatprep.mubr.bf16.mxu0 0
    %593 = vmatmul.mubr.bf16.gmra.mrb[0].mxu0 %v355
    %v594 = vpop.f32.mrb[0].mxu0
    %v595 = vadd.f32 0.0, %v594
    %v596 = vpop.f32.mrb[0].mxu0
    %v597 = vpop.f32.mrb[0].mxu0
    %v598 = vadd.f32 0.0, %v597
    %v599 = vpop.f32.mrb[0].mxu0
    %600 = vmatprep.mubr.bf16.mxu0 0
    %601 = vmatmul.mubr.bf16.gmra.mrb[0].mxu0 %v358
    %v602 = vpop.f32.mrb[0].mxu0
    %v603 = vadd.f32 0.0, %v602
    %v604 = vpop.f32.mrb[0].mxu0
    %v605 = vpop.f32.mrb[0].mxu0
    %v606 = vadd.f32 0.0, %v605
    %v607 = vpop.f32.mrb[0].mxu0
    %608 = vmatprep.mubr.bf16.mxu0 0
    %609 = vmatmul.mubr.bf16.gmra.mrb[0].mxu0 %v361
    %v610 = vpop.f32.mrb[0].mxu0
    %v611 = vadd.f32 0.0, %v610
    %v612 = vpop.f32.mrb[0].mxu0
    %v613 = vpop.f32.mrb[0].mxu0
    %v614 = vadd.f32 0.0, %v613
    %v615 = vpop.f32.mrb[0].mxu0
    %616 = vmatprep.mubr.bf16.mxu0 0
    %617 = vmatmul.mubr.bf16.gmra.mrb[0].mxu0 %v364
    %v618 = vpop.f32.mrb[0].mxu0
    %v619 = vadd.f32 0.0, %v618
    %v620 = vpop.f32.mrb[0].mxu0
    %v621 = vpop.f32.mrb[0].mxu0
    %v622 = vadd.f32 0.0, %v621
    %v623 = vpop.f32.mrb[0].mxu0
    %624 = vmatprep.mubr.bf16.mxu0 0
    %625 = vmatmul.mubr.bf16.gmra.mrb[0].mxu0 %v367
    %v626 = vpop.f32.mrb[0].mxu0
    %v627 = vadd.f32 0.0, %v626
    %v628 = vpop.f32.mrb[0].mxu0
    %v629 = vpop.f32.mrb[0].mxu0
    %v630 = vadd.f32 0.0, %v629
    %v631 = vpop.f32.mrb[0].mxu0
    %632 = vmatprep.mubr.bf16.mxu0 0
    %633 = vmatmul.mubr.bf16.gmra.mrb[0].mxu0 %v370
    %v634 = vpop.f32.mrb[0].mxu0
    %v635 = vadd.f32 0.0, %v634
    %v636 = vpop.f32.mrb[0].mxu0
    %v637 = vpop.f32.mrb[0].mxu0
    %v638 = vadd.f32 0.0, %v637
    %v639 = vpop.f32.mrb[0].mxu0
    %640 = vmatprep.mubr.bf16.mxu0 0
    %641 = vmatmul.mubr.bf16.gmra.mrb[0].mxu0 %v373
    %v642 = vpop.f32.mrb[0].mxu0
    %v643 = vadd.f32 0.0, %v642
    %v644 = vpop.f32.mrb[0].mxu0
    %v645 = vpop.f32.mrb[0].mxu0
    %v646 = vadd.f32 0.0, %v645
    %v647 = vpop.f32.mrb[0].mxu0
    %648 = vmatprep.mubr.bf16.mxu0 0
    %649 = vmatmul.mubr.bf16.gmra.mrb[0].mxu0 %v376
    %v650 = vpop.f32.mrb[0].mxu0
    %v651 = vadd.f32 0.0, %v650
    %v652 = vpop.f32.mrb[0].mxu0
    %v653 = vpop.f32.mrb[0].mxu0
    %v654 = vadd.f32 0.0, %v653
    %v655 = vpop.f32.mrb[0].mxu0
    %656 = vmatprep.mubr.bf16.mxu0 0
    %657 = vmatmul.mubr.bf16.gmra.mrb[0].mxu0 %v379
    %v658 = vpop.f32.mrb[0].mxu0
    %v659 = vadd.f32 0.0, %v658
    %v660 = vpop.f32.mrb[0].mxu0
    %v661 = vpop.f32.mrb[0].mxu0
    %v662 = vadd.f32 0.0, %v661
    %v663 = vpop.f32.mrb[0].mxu0
    %664 = vmatprep.mubr.bf16.mxu0 0
    %665 = vmatmul.mubr.bf16.gmra.mrb[0].mxu0 %v382
    %v666 = vpop.f32.mrb[0].mxu0
    %v667 = vadd.f32 0.0, %v666
    %v668 = vpop.f32.mrb[0].mxu0
    %v669 = vpop.f32.mrb[0].mxu0
    %v670 = vadd.f32 0.0, %v669
    %v671 = vpop.f32.mrb[0].mxu0
    %672 = vdwg.mxu0
    %673 = vst [vmem:[#allocation2] sm:$0xff] %v419
    %674 = vst [vmem:[#allocation2 + $0x8] sm:$0xff] %v422
    %675 = vst [vmem:[#allocation2 + $0x10] sm:$0xff] %v427
    %676 = vst [vmem:[#allocation2 + $0x18] sm:$0xff] %v430
    %677 = vst [vmem:[#allocation2 + $0x20] sm:$0xff] %v435
    %678 = vst [vmem:[#allocation2 + $0x28] sm:$0xff] %v438
    %679 = vst [vmem:[#allocation2 + $0x30] sm:$0xff] %v443
    %680 = vst [vmem:[#allocation2 + $0x38] sm:$0xff] %v446
    %681 = vst [vmem:[#allocation2 + $0x40] sm:$0xff] %v451
    %682 = vst [vmem:[#allocation2 + $0x48] sm:$0xff] %v454
    %683 = vst [vmem:[#allocation2 + $0x50] sm:$0xff] %v459
    %684 = vst [vmem:[#allocation2 + $0x58] sm:$0xff] %v462
    %685 = vst [vmem:[#allocation2 + $0x60] sm:$0xff] %v467
    %686 = vst [vmem:[#allocation2 + $0x68] sm:$0xff] %v470
    %687 = vst [vmem:[#allocation2 + $0x70] sm:$0xff] %v475
    %688 = vst [vmem:[#allocation2 + $0x78] sm:$0xff] %v478
    %689 = vst [vmem:[#allocation2 + $0x80] sm:$0xff] %v483
    %690 = vst [vmem:[#allocation2 + $0x88] sm:$0xff] %v486
    %691 = vst [vmem:[#allocation2 + $0x90] sm:$0xff] %v491
    %692 = vst [vmem:[#allocation2 + $0x98] sm:$0xff] %v494
    %693 = vst [vmem:[#allocation2 + $0xa0] sm:$0xff] %v499
    %694 = vst [vmem:[#allocation2 + $0xa8] sm:$0xff] %v502
    %695 = vst [vmem:[#allocation2 + $0xb0] sm:$0xff] %v507
    %696 = vst [vmem:[#allocation2 + $0xb8] sm:$0xff] %v510
    %697 = vst [vmem:[#allocation2 + $0xc0] sm:$0xff] %v515
    %698 = vst [vmem:[#allocation2 + $0xc8] sm:$0xff] %v518
    %699 = vst [vmem:[#allocation2 + $0xd0] sm:$0xff] %v523
    %700 = vst [vmem:[#allocation2 + $0xd8] sm:$0xff] %v526
    %701 = vst [vmem:[#allocation2 + $0xe0] sm:$0xff] %v531
    %702 = vst [vmem:[#allocation2 + $0xe8] sm:$0xff] %v534
    %703 = vst [vmem:[#allocation2 + $0xf0] sm:$0xff] %v539
    %704 = vst [vmem:[#allocation2 + $0xf8] sm:$0xff] %v542
    %705 = vst [vmem:[#allocation2 + $0x100] sm:$0xff] %v547
    %706 = vst [vmem:[#allocation2 + $0x108] sm:$0xff] %v550
    %707 = vst [vmem:[#allocation2 + $0x110] sm:$0xff] %v555
    %708 = vst [vmem:[#allocation2 + $0x118] sm:$0xff] %v558
    %709 = vst [vmem:[#allocation2 + $0x120] sm:$0xff] %v563
    %710 = vst [vmem:[#allocation2 + $0x128] sm:$0xff] %v566
    %711 = vst [vmem:[#allocation2 + $0x130] sm:$0xff] %v571
    %712 = vst [vmem:[#allocation2 + $0x138] sm:$0xff] %v574
    %713 = vst [vmem:[#allocation2 + $0x140] sm:$0xff] %v579
    %714 = vst [vmem:[#allocation2 + $0x148] sm:$0xff] %v582
    %715 = vst [vmem:[#allocation2 + $0x150] sm:$0xff] %v587
    %716 = vst [vmem:[#allocation2 + $0x158] sm:$0xff] %v590
    %717 = vst [vmem:[#allocation2 + $0x160] sm:$0xff] %v595
    %718 = vst [vmem:[#allocation2 + $0x168] sm:$0xff] %v598
    %719 = vst [vmem:[#allocation2 + $0x170] sm:$0xff] %v603
    %720 = vst [vmem:[#allocation2 + $0x178] sm:$0xff] %v606
    %721 = vst [vmem:[#allocation2 + $0x180] sm:$0xff] %v611
    %722 = vst [vmem:[#allocation2 + $0x188] sm:$0xff] %v614
    %723 = vst [vmem:[#allocation2 + $0x190] sm:$0xff] %v619
    %724 = vst [vmem:[#allocation2 + $0x198] sm:$0xff] %v622
    %725 = vst [vmem:[#allocation2 + $0x1a0] sm:$0xff] %v627
    %726 = vst [vmem:[#allocation2 + $0x1a8] sm:$0xff] %v630
    %727 = vst [vmem:[#allocation2 + $0x1b0] sm:$0xff] %v635
    %728 = vst [vmem:[#allocation2 + $0x1b8] sm:$0xff] %v638
    %729 = vst [vmem:[#allocation2 + $0x1c0] sm:$0xff] %v643
    %730 = vst [vmem:[#allocation2 + $0x1c8] sm:$0xff] %v646
    %731 = vst [vmem:[#allocation2 + $0x1d0] sm:$0xff] %v651
    %732 = vst [vmem:[#allocation2 + $0x1d8] sm:$0xff] %v654
    %733 = vst [vmem:[#allocation2 + $0x1e0] sm:$0xff] %v659
    %734 = vst [vmem:[#allocation2 + $0x1e8] sm:$0xff] %v662
    %735 = vst [vmem:[#allocation2 + $0x1f0] sm:$0xff] %v667
    %736 = vst [vmem:[#allocation2 + $0x1f8] sm:$0xff] %v670
    %v737 = vld [vmem:[#allocation2] sm:$0xff]
    %v738 = vld [vmem:[#allocation2 + $0x8] sm:$0xff]
    %v739 = vld [vmem:[#allocation2 + $0x10] sm:$0xff]
    %v740 = vld [vmem:[#allocation2 + $0x18] sm:$0xff]
    %v741 = vld [vmem:[#allocation2 + $0x20] sm:$0xff]
    %v742 = vld [vmem:[#allocation2 + $0x28] sm:$0xff]
    %v743 = vld [vmem:[#allocation2 + $0x30] sm:$0xff]
    %v744 = vld [vmem:[#allocation2 + $0x38] sm:$0xff]
    %v745 = vpack.c.bf16 %v738, %v737
    %v746 = vpack.c.bf16 %v740, %v739
    %v747 = vpack.c.bf16 %v742, %v741
    %v748 = vpack.c.bf16 %v744, %v743
    %749 = vst [vmem:[#allocation3] sm:$0xff] %v745
    %750 = vst [vmem:[#allocation3 + $0x40] sm:$0xff] %v746
    %751 = vst [vmem:[#allocation3 + $0x80] sm:$0xff] %v747
    %752 = vst [vmem:[#allocation3 + $0xc0] sm:$0xff] %v748
    %v753 = vld [vmem:[#allocation2 + $0x40] sm:$0xff]
    %v754 = vld [vmem:[#allocation2 + $0x48] sm:$0xff]
    %v755 = vld [vmem:[#allocation2 + $0x50] sm:$0xff]
    %v756 = vld [vmem:[#allocation2 + $0x58] sm:$0xff]
    %v757 = vld [vmem:[#allocation2 + $0x60] sm:$0xff]
    %v758 = vld [vmem:[#allocation2 + $0x68] sm:$0xff]
    %v759 = vld [vmem:[#allocation2 + $0x70] sm:$0xff]
    %v760 = vld [vmem:[#allocation2 + $0x78] sm:$0xff]
    %v761 = vpack.c.bf16 %v754, %v753
    %v762 = vpack.c.bf16 %v756, %v755
    %v763 = vpack.c.bf16 %v758, %v757
    %v764 = vpack.c.bf16 %v760, %v759
    %765 = vst [vmem:[#allocation3 + $0x8] sm:$0xff] %v761
    %766 = vst [vmem:[#allocation3 + $0x48] sm:$0xff] %v762
    %767 = vst [vmem:[#allocation3 + $0x88] sm:$0xff] %v763
    %768 = vst [vmem:[#allocation3 + $0xc8] sm:$0xff] %v764
    %v769 = vld [vmem:[#allocation2 + $0x80] sm:$0xff]
    %v770 = vld [vmem:[#allocation2 + $0x88] sm:$0xff]
    %v771 = vld [vmem:[#allocation2 + $0x90] sm:$0xff]
    %v772 = vld [vmem:[#allocation2 + $0x98] sm:$0xff]
    %v773 = vld [vmem:[#allocation2 + $0xa0] sm:$0xff]
    %v774 = vld [vmem:[#allocation2 + $0xa8] sm:$0xff]
    %v775 = vld [vmem:[#allocation2 + $0xb0] sm:$0xff]
    %v776 = vld [vmem:[#allocation2 + $0xb8] sm:$0xff]
    %v777 = vpack.c.bf16 %v770, %v769
    %v778 = vpack.c.bf16 %v772, %v771
    %v779 = vpack.c.bf16 %v774, %v773
    %v780 = vpack.c.bf16 %v776, %v775
    %781 = vst [vmem:[#allocation3 + $0x10] sm:$0xff] %v777
    %782 = vst [vmem:[#allocation3 + $0x50] sm:$0xff] %v778
    %783 = vst [vmem:[#allocation3 + $0x90] sm:$0xff] %v779
    %784 = vst [vmem:[#allocation3 + $0xd0] sm:$0xff] %v780
    %v785 = vld [vmem:[#allocation2 + $0xc0] sm:$0xff]
    %v786 = vld [vmem:[#allocation2 + $0xc8] sm:$0xff]
    %v787 = vld [vmem:[#allocation2 + $0xd0] sm:$0xff]
    %v788 = vld [vmem:[#allocation2 + $0xd8] sm:$0xff]
    %v789 = vld [vmem:[#allocation2 + $0xe0] sm:$0xff]
    %v790 = vld [vmem:[#allocation2 + $0xe8] sm:$0xff]
    %v791 = vld [vmem:[#allocation2 + $0xf0] sm:$0xff]
    %v792 = vld [vmem:[#allocation2 + $0xf8] sm:$0xff]
    %v793 = vpack.c.bf16 %v786, %v785
    %v794 = vpack.c.bf16 %v788, %v787
    %v795 = vpack.c.bf16 %v790, %v789
    %v796 = vpack.c.bf16 %v792, %v791
    %797 = vst [vmem:[#allocation3 + $0x18] sm:$0xff] %v793
    %798 = vst [vmem:[#allocation3 + $0x58] sm:$0xff] %v794
    %799 = vst [vmem:[#allocation3 + $0x98] sm:$0xff] %v795
    %800 = vst [vmem:[#allocation3 + $0xd8] sm:$0xff] %v796
    %v801 = vld [vmem:[#allocation2 + $0x100] sm:$0xff]
    %v802 = vld [vmem:[#allocation2 + $0x108] sm:$0xff]
    %v803 = vld [vmem:[#allocation2 + $0x110] sm:$0xff]
    %v804 = vld [vmem:[#allocation2 + $0x118] sm:$0xff]
    %v805 = vld [vmem:[#allocation2 + $0x120] sm:$0xff]
    %v806 = vld [vmem:[#allocation2 + $0x128] sm:$0xff]
    %v807 = vld [vmem:[#allocation2 + $0x130] sm:$0xff]
    %v808 = vld [vmem:[#allocation2 + $0x138] sm:$0xff]
    %v809 = vpack.c.bf16 %v802, %v801
    %v810 = vpack.c.bf16 %v804, %v803
    %v811 = vpack.c.bf16 %v806, %v805
    %v812 = vpack.c.bf16 %v808, %v807
    %813 = vst [vmem:[#allocation3 + $0x20] sm:$0xff] %v809
    %814 = vst [vmem:[#allocation3 + $0x60] sm:$0xff] %v810
    %815 = vst [vmem:[#allocation3 + $0xa0] sm:$0xff] %v811
    %816 = vst [vmem:[#allocation3 + $0xe0] sm:$0xff] %v812
    %v817 = vld [vmem:[#allocation2 + $0x140] sm:$0xff]
    %v818 = vld [vmem:[#allocation2 + $0x148] sm:$0xff]
    %v819 = vld [vmem:[#allocation2 + $0x150] sm:$0xff]
    %v820 = vld [vmem:[#allocation2 + $0x158] sm:$0xff]
    %v821 = vld [vmem:[#allocation2 + $0x160] sm:$0xff]
    %v822 = vld [vmem:[#allocation2 + $0x168] sm:$0xff]
    %v823 = vld [vmem:[#allocation2 + $0x170] sm:$0xff]
    %v824 = vld [vmem:[#allocation2 + $0x178] sm:$0xff]
    %v825 = vpack.c.bf16 %v818, %v817
    %v826 = vpack.c.bf16 %v820, %v819
    %v827 = vpack.c.bf16 %v822, %v821
    %v828 = vpack.c.bf16 %v824, %v823
    %829 = vst [vmem:[#allocation3 + $0x28] sm:$0xff] %v825
    %830 = vst [vmem:[#allocation3 + $0x68] sm:$0xff] %v826
    %831 = vst [vmem:[#allocation3 + $0xa8] sm:$0xff] %v827
    %832 = vst [vmem:[#allocation3 + $0xe8] sm:$0xff] %v828
    %v833 = vld [vmem:[#allocation2 + $0x180] sm:$0xff]
    %v834 = vld [vmem:[#allocation2 + $0x188] sm:$0xff]
    %v835 = vld [vmem:[#allocation2 + $0x190] sm:$0xff]
    %v836 = vld [vmem:[#allocation2 + $0x198] sm:$0xff]
    %v837 = vld [vmem:[#allocation2 + $0x1a0] sm:$0xff]
    %v838 = vld [vmem:[#allocation2 + $0x1a8] sm:$0xff]
    %v839 = vld [vmem:[#allocation2 + $0x1b0] sm:$0xff]
    %v840 = vld [vmem:[#allocation2 + $0x1b8] sm:$0xff]
    %v841 = vpack.c.bf16 %v834, %v833
    %v842 = vpack.c.bf16 %v836, %v835
    %v843 = vpack.c.bf16 %v838, %v837
    %v844 = vpack.c.bf16 %v840, %v839
    %845 = vst [vmem:[#allocation3 + $0x30] sm:$0xff] %v841
    %846 = vst [vmem:[#allocation3 + $0x70] sm:$0xff] %v842
    %847 = vst [vmem:[#allocation3 + $0xb0] sm:$0xff] %v843
    %848 = vst [vmem:[#allocation3 + $0xf0] sm:$0xff] %v844
    %v849 = vld [vmem:[#allocation2 + $0x1c0] sm:$0xff]
    %v850 = vld [vmem:[#allocation2 + $0x1c8] sm:$0xff]
    %v851 = vld [vmem:[#allocation2 + $0x1d0] sm:$0xff]
    %v852 = vld [vmem:[#allocation2 + $0x1d8] sm:$0xff]
    %v853 = vld [vmem:[#allocation2 + $0x1e0] sm:$0xff]
    %v854 = vld [vmem:[#allocation2 + $0x1e8] sm:$0xff]
    %v855 = vld [vmem:[#allocation2 + $0x1f0] sm:$0xff]
    %v856 = vld [vmem:[#allocation2 + $0x1f8] sm:$0xff]
    %v857 = vpack.c.bf16 %v850, %v849
    %v858 = vpack.c.bf16 %v852, %v851
    %v859 = vpack.c.bf16 %v854, %v853
    %v860 = vpack.c.bf16 %v856, %v855
    %861 = vst [vmem:[#allocation3 + $0x38] sm:$0xff] %v857
    %862 = vst [vmem:[#allocation3 + $0x78] sm:$0xff] %v858
    %863 = vst [vmem:[#allocation3 + $0xb8] sm:$0xff] %v859
    %864 = vst [vmem:[#allocation3 + $0xf8] sm:$0xff] %v860
    %v865 = vld [vmem:[#allocation3] sm:$0xff]
    %v866 = vld [vmem:[#allocation3 + $0x8] sm:$0xff]
    %v867 = vld [vmem:[#allocation3 + $0x10] sm:$0xff]
    %v868 = vld [vmem:[#allocation3 + $0x18] sm:$0xff]
    %v869 = vld [vmem:[#allocation3 + $0x20] sm:$0xff]
    %v870 = vld [vmem:[#allocation3 + $0x28] sm:$0xff]
    %v871 = vld [vmem:[#allocation3 + $0x30] sm:$0xff]
    %v872 = vld [vmem:[#allocation3 + $0x38] sm:$0xff]
    %v873 = vld [vmem:[#allocation3 + $0x40] sm:$0xff]
    %v874 = vld [vmem:[#allocation3 + $0x48] sm:$0xff]
    %v875 = vld [vmem:[#allocation3 + $0x50] sm:$0xff]
    %v876 = vld [vmem:[#allocation3 + $0x58] sm:$0xff]
    %v877 = vld [vmem:[#allocation3 + $0x60] sm:$0xff]
    %v878 = vld [vmem:[#allocation3 + $0x68] sm:$0xff]
    %v879 = vld [vmem:[#allocation3 + $0x70] sm:$0xff]
    %v880 = vld [vmem:[#allocation3 + $0x78] sm:$0xff]
    %v881 = vld [vmem:[#allocation3 + $0x80] sm:$0xff]
    %v882 = vld [vmem:[#allocation3 + $0x88] sm:$0xff]
    %v883 = vld [vmem:[#allocation3 + $0x90] sm:$0xff]
    %v884 = vld [vmem:[#allocation3 + $0x98] sm:$0xff]
    %v885 = vld [vmem:[#allocation3 + $0xa0] sm:$0xff]
    %v886 = vld [vmem:[#allocation3 + $0xa8] sm:$0xff]
    %v887 = vld [vmem:[#allocation3 + $0xb0] sm:$0xff]
    %v888 = vld [vmem:[#allocation3 + $0xb8] sm:$0xff]
    %v889 = vld [vmem:[#allocation3 + $0xc0] sm:$0xff]
    %v890 = vld [vmem:[#allocation3 + $0xc8] sm:$0xff]
    %v891 = vld [vmem:[#allocation3 + $0xd0] sm:$0xff]
    %v892 = vld [vmem:[#allocation3 + $0xd8] sm:$0xff]
    %v893 = vld [vmem:[#allocation3 + $0xe0] sm:$0xff]
    %v894 = vld [vmem:[#allocation3 + $0xe8] sm:$0xff]
    %v895 = vld [vmem:[#allocation3 + $0xf0] sm:$0xff]
    %v896 = vld [vmem:[#allocation3 + $0xf8] sm:$0xff]
    %v897 = vld [vmem:[%s2] sm:$0xf]
    %v898 = vld [vmem:[%s2 + $0x4] sm:$0xf]
    %v899 = vld [vmem:[%s2 + $0x8] sm:$0xf]
    %v900 = vld [vmem:[%s2 + $0xc] sm:$0xf]
    %v901 = vld [vmem:[%s2 + $0x10] sm:$0xf]
    %v902 = vld [vmem:[%s2 + $0x14] sm:$0xf]
    %v903 = vld [vmem:[%s2 + $0x18] sm:$0xf]
    %v904 = vld [vmem:[%s2 + $0x1c] sm:$0xf]
    %v905 = vld [vmem:[%s2 + $0x20] sm:$0xf]
    %v906 = vld [vmem:[%s2 + $0x24] sm:$0xf]
    %v907 = vld [vmem:[%s2 + $0x28] sm:$0xf]
    %v908 = vld [vmem:[%s2 + $0x2c] sm:$0xf]
    %v909 = vld [vmem:[%s2 + $0x30] sm:$0xf]
    %v910 = vld [vmem:[%s2 + $0x34] sm:$0xf]
    %v911 = vld [vmem:[%s2 + $0x38] sm:$0xf]
    %v912 = vld [vmem:[%s2 + $0x3c] sm:$0xf]
    %v913 = vld [vmem:[%s2 + $0x40] sm:$0xf]
    %v914 = vld [vmem:[%s2 + $0x44] sm:$0xf]
    %v915 = vld [vmem:[%s2 + $0x48] sm:$0xf]
    %v916 = vld [vmem:[%s2 + $0x4c] sm:$0xf]
    %v917 = vld [vmem:[%s2 + $0x50] sm:$0xf]
    %v918 = vld [vmem:[%s2 + $0x54] sm:$0xf]
    %v919 = vld [vmem:[%s2 + $0x58] sm:$0xf]
    %v920 = vld [vmem:[%s2 + $0x5c] sm:$0xf]
    %v921 = vld [vmem:[%s2 + $0x60] sm:$0xf]
    %v922 = vld [vmem:[%s2 + $0x64] sm:$0xf]
    %v923 = vld [vmem:[%s2 + $0x68] sm:$0xf]
    %v924 = vld [vmem:[%s2 + $0x6c] sm:$0xf]
    %v925 = vld [vmem:[%s2 + $0x70] sm:$0xf]
    %v926 = vld [vmem:[%s2 + $0x74] sm:$0xf]
    %v927 = vld [vmem:[%s2 + $0x78] sm:$0xf]
    %v928 = vld [vmem:[%s2 + $0x7c] sm:$0xf]
    %v929 = vld [vmem:[%s2 + $0x80] sm:$0xf]
    %v930 = vld [vmem:[%s2 + $0x84] sm:$0xf]
    %v931 = vld [vmem:[%s2 + $0x88] sm:$0xf]
    %v932 = vld [vmem:[%s2 + $0x8c] sm:$0xf]
    %v933 = vld [vmem:[%s2 + $0x90] sm:$0xf]
    %v934 = vld [vmem:[%s2 + $0x94] sm:$0xf]
    %v935 = vld [vmem:[%s2 + $0x98] sm:$0xf]
    %v936 = vld [vmem:[%s2 + $0x9c] sm:$0xf]
    %v937 = vld [vmem:[%s2 + $0xa0] sm:$0xf]
    %v938 = vld [vmem:[%s2 + $0xa4] sm:$0xf]
    %v939 = vld [vmem:[%s2 + $0xa8] sm:$0xf]
    %v940 = vld [vmem:[%s2 + $0xac] sm:$0xf]
    %v941 = vld [vmem:[%s2 + $0xb0] sm:$0xf]
    %v942 = vld [vmem:[%s2 + $0xb4] sm:$0xf]
    %v943 = vld [vmem:[%s2 + $0xb8] sm:$0xf]
    %v944 = vld [vmem:[%s2 + $0xbc] sm:$0xf]
    %v945 = vld [vmem:[%s2 + $0xc0] sm:$0xf]
    %v946 = vld [vmem:[%s2 + $0xc4] sm:$0xf]
    %v947 = vld [vmem:[%s2 + $0xc8] sm:$0xf]
    %v948 = vld [vmem:[%s2 + $0xcc] sm:$0xf]
    %v949 = vld [vmem:[%s2 + $0xd0] sm:$0xf]
    %v950 = vld [vmem:[%s2 + $0xd4] sm:$0xf]
    %v951 = vld [vmem:[%s2 + $0xd8] sm:$0xf]
    %v952 = vld [vmem:[%s2 + $0xdc] sm:$0xf]
    %v953 = vld [vmem:[%s2 + $0xe0] sm:$0xf]
    %v954 = vld [vmem:[%s2 + $0xe4] sm:$0xf]
    %v955 = vld [vmem:[%s2 + $0xe8] sm:$0xf]
    %v956 = vld [vmem:[%s2 + $0xec] sm:$0xf]
    %v957 = vld [vmem:[%s2 + $0xf0] sm:$0xf]
    %v958 = vld [vmem:[%s2 + $0xf4] sm:$0xf]
    %v959 = vld [vmem:[%s2 + $0xf8] sm:$0xf]
    %v960 = vld [vmem:[%s2 + $0xfc] sm:$0xf]
    %v961 = vld [vmem:[%s2 + $0x100] sm:$0xf]
    %v962 = vld [vmem:[%s2 + $0x104] sm:$0xf]
    %v963 = vld [vmem:[%s2 + $0x108] sm:$0xf]
    %v964 = vld [vmem:[%s2 + $0x10c] sm:$0xf]
    %v965 = vld [vmem:[%s2 + $0x110] sm:$0xf]
    %v966 = vld [vmem:[%s2 + $0x114] sm:$0xf]
    %v967 = vld [vmem:[%s2 + $0x118] sm:$0xf]
    %v968 = vld [vmem:[%s2 + $0x11c] sm:$0xf]
    %v969 = vld [vmem:[%s2 + $0x120] sm:$0xf]
    %v970 = vld [vmem:[%s2 + $0x124] sm:$0xf]
    %v971 = vld [vmem:[%s2 + $0x128] sm:$0xf]
    %v972 = vld [vmem:[%s2 + $0x12c] sm:$0xf]
    %v973 = vld [vmem:[%s2 + $0x130] sm:$0xf]
    %v974 = vld [vmem:[%s2 + $0x134] sm:$0xf]
    %v975 = vld [vmem:[%s2 + $0x138] sm:$0xf]
    %v976 = vld [vmem:[%s2 + $0x13c] sm:$0xf]
    %v977 = vld [vmem:[%s2 + $0x140] sm:$0xf]
    %v978 = vld [vmem:[%s2 + $0x144] sm:$0xf]
    %v979 = vld [vmem:[%s2 + $0x148] sm:$0xf]
    %v980 = vld [vmem:[%s2 + $0x14c] sm:$0xf]
    %v981 = vld [vmem:[%s2 + $0x150] sm:$0xf]
    %v982 = vld [vmem:[%s2 + $0x154] sm:$0xf]
    %v983 = vld [vmem:[%s2 + $0x158] sm:$0xf]
    %v984 = vld [vmem:[%s2 + $0x15c] sm:$0xf]
    %v985 = vld [vmem:[%s2 + $0x160] sm:$0xf]
    %v986 = vld [vmem:[%s2 + $0x164] sm:$0xf]
    %v987 = vld [vmem:[%s2 + $0x168] sm:$0xf]
    %v988 = vld [vmem:[%s2 + $0x16c] sm:$0xf]
    %v989 = vld [vmem:[%s2 + $0x170] sm:$0xf]
    %v990 = vld [vmem:[%s2 + $0x174] sm:$0xf]
    %v991 = vld [vmem:[%s2 + $0x178] sm:$0xf]
    %v992 = vld [vmem:[%s2 + $0x17c] sm:$0xf]
    %v993 = vld [vmem:[%s2 + $0x180] sm:$0xf]
    %v994 = vld [vmem:[%s2 + $0x184] sm:$0xf]
    %v995 = vld [vmem:[%s2 + $0x188] sm:$0xf]
    %v996 = vld [vmem:[%s2 + $0x18c] sm:$0xf]
    %v997 = vld [vmem:[%s2 + $0x190] sm:$0xf]
    %v998 = vld [vmem:[%s2 + $0x194] sm:$0xf]
    %v999 = vld [vmem:[%s2 + $0x198] sm:$0xf]
    %v1000 = vld [vmem:[%s2 + $0x19c] sm:$0xf]
    %v1001 = vld [vmem:[%s2 + $0x1a0] sm:$0xf]
    %v1002 = vld [vmem:[%s2 + $0x1a4] sm:$0xf]
    %v1003 = vld [vmem:[%s2 + $0x1a8] sm:$0xf]
    %v1004 = vld [vmem:[%s2 + $0x1ac] sm:$0xf]
    %v1005 = vld [vmem:[%s2 + $0x1b0] sm:$0xf]
    %v1006 = vld [vmem:[%s2 + $0x1b4] sm:$0xf]
    %v1007 = vld [vmem:[%s2 + $0x1b8] sm:$0xf]
    %v1008 = vld [vmem:[%s2 + $0x1bc] sm:$0xf]
    %v1009 = vld [vmem:[%s2 + $0x1c0] sm:$0xf]
    %v1010 = vld [vmem:[%s2 + $0x1c4] sm:$0xf]
    %v1011 = vld [vmem:[%s2 + $0x1c8] sm:$0xf]
    %v1012 = vld [vmem:[%s2 + $0x1cc] sm:$0xf]
    %v1013 = vld [vmem:[%s2 + $0x1d0] sm:$0xf]
    %v1014 = vld [vmem:[%s2 + $0x1d4] sm:$0xf]
    %v1015 = vld [vmem:[%s2 + $0x1d8] sm:$0xf]
    %v1016 = vld [vmem:[%s2 + $0x1dc] sm:$0xf]
    %v1017 = vld [vmem:[%s2 + $0x1e0] sm:$0xf]
    %v1018 = vld [vmem:[%s2 + $0x1e4] sm:$0xf]
    %v1019 = vld [vmem:[%s2 + $0x1e8] sm:$0xf]
    %v1020 = vld [vmem:[%s2 + $0x1ec] sm:$0xf]
    %v1021 = vld [vmem:[%s2 + $0x1f0] sm:$0xf]
    %v1022 = vld [vmem:[%s2 + $0x1f4] sm:$0xf]
    %v1023 = vld [vmem:[%s2 + $0x1f8] sm:$0xf]
    %v1024 = vld [vmem:[%s2 + $0x1fc] sm:$0xf]
    %v1025 = vld [vmem:[%s3] sm:$0xf]
    %v1026 = vld [vmem:[%s3 + $0x4] sm:$0xf]
    %v1027 = vld [vmem:[%s3 + $0x8] sm:$0xf]
    %v1028 = vld [vmem:[%s3 + $0xc] sm:$0xf]
    %v1029 = vld [vmem:[%s3 + $0x10] sm:$0xf]
    %v1030 = vld [vmem:[%s3 + $0x14] sm:$0xf]
    %v1031 = vld [vmem:[%s3 + $0x18] sm:$0xf]
    %v1032 = vld [vmem:[%s3 + $0x1c] sm:$0xf]
    %v1033 = vld [vmem:[%s3 + $0x20] sm:$0xf]
    %v1034 = vld [vmem:[%s3 + $0x24] sm:$0xf]
    %v1035 = vld [vmem:[%s3 + $0x28] sm:$0xf]
    %v1036 = vld [vmem:[%s3 + $0x2c] sm:$0xf]
    %v1037 = vld [vmem:[%s3 + $0x30] sm:$0xf]
    %v1038 = vld [vmem:[%s3 + $0x34] sm:$0xf]
    %v1039 = vld [vmem:[%s3 + $0x38] sm:$0xf]
    %v1040 = vld [vmem:[%s3 + $0x3c] sm:$0xf]
    %v1057 = vunpack.c.l.b16 %v1025
    %v1058 = vunpack.c.l.b16 %v1026
    %v1059 = vunpack.c.l.b16 %v1027
    %v1060 = vunpack.c.l.b16 %v1028
    %v1061 = vunpack.c.l.b16 %v1029
    %v1062 = vunpack.c.l.b16 %v1030
    %v1063 = vunpack.c.l.b16 %v1031
    %v1064 = vunpack.c.l.b16 %v1032
    %v1065 = vunpack.c.l.b16 %v1033
    %v1066 = vunpack.c.l.b16 %v1034
    %v1067 = vunpack.c.l.b16 %v1035
    %v1068 = vunpack.c.l.b16 %v1036
    %v1069 = vunpack.c.l.b16 %v1037
    %v1070 = vunpack.c.l.b16 %v1038
    %v1071 = vunpack.c.l.b16 %v1039
    %v1072 = vunpack.c.l.b16 %v1040
    %v1073 = vpack.c.b16 %v1058, %v1057
    %v1074 = vpack.c.b16 %v1060, %v1059
    %v1075 = vpack.c.b16 %v1062, %v1061
    %v1076 = vpack.c.b16 %v1064, %v1063
    %v1077 = vpack.c.b16 %v1066, %v1065
    %v1078 = vpack.c.b16 %v1068, %v1067
    %v1079 = vpack.c.b16 %v1070, %v1069
    %v1080 = vpack.c.b16 %v1072, %v1071
    %1089 = vmatprep.subr.bf16.mxu0 0
    %1090 = vmatpush1.bf16.msra.mxu0 %v1073
    %1091 = vmatprep.subr.bf16.mxu0 0
    %1092 = vmatpush1.bf16.msra.mxu0 %v1074
    %1093 = vmatprep.subr.bf16.mxu0 0
    %1094 = vmatpush1.bf16.msra.mxu0 %v1075
    %1095 = vmatprep.subr.bf16.mxu0 0
    %1096 = vmatpush1.bf16.msra.mxu0 %v1076
    %1097 = vmatprep.subr.bf16.mxu0 0
    %1098 = vmatpush1.bf16.msra.mxu0 %v1077
    %1099 = vmatprep.subr.bf16.mxu0 0
    %1100 = vmatpush1.bf16.msra.mxu0 %v1078
    %1101 = vmatprep.subr.bf16.mxu0 0
    %1102 = vmatpush1.bf16.msra.mxu0 %v1079
    %1103 = vmatprep.subr.bf16.mxu0 0
    %1104 = vmatpush1.bf16.msra.mxu0 %v1080
    %1105 = vmatprep.subr.bf16.mxu0 0
    %1106 = vmatpush1.bf16.msra.mxu0 0
    %1107 = vmatprep.subr.bf16.mxu0 0
    %1108 = vmatpush1.bf16.msra.mxu0 0
    %1109 = vmatprep.subr.bf16.mxu0 0
    %1110 = vmatpush1.bf16.msra.mxu0 0
    %1111 = vmatprep.subr.bf16.mxu0 0
    %1112 = vmatpush1.bf16.msra.mxu0 0
    %1113 = vmatprep.subr.bf16.mxu0 0
    %1114 = vmatpush1.bf16.msra.mxu0 0
    %1115 = vmatprep.subr.bf16.mxu0 0
    %1116 = vmatpush1.bf16.msra.mxu0 0
    %1117 = vmatprep.subr.bf16.mxu0 0
    %1118 = vmatpush1.bf16.msra.mxu0 0
    %1119 = vmatprep.subr.bf16.mxu0 0
    %1120 = vmatpush1.bf16.msra.mxu0 0
    %1121 = vmatprep.mubr.bf16.mxu0 0
    %1122 = vmatmul.mubr.bf16.gmra.mrb[0].mxu0 %v279
    %v1123 = vpop.f32.mrb[0].mxu0
    %v1124 = vadd.f32 0.0, %v1123
    %v1125 = vpop.f32.mrb[0].mxu0
    %v1126 = vpop.f32.mrb[0].mxu0
    %v1127 = vadd.f32 0.0, %v1126
    %v1128 = vpop.f32.mrb[0].mxu0
    %1129 = vmatprep.mubr.bf16.mxu0 0
    %1130 = vmatmul.mubr.bf16.gmra.mrb[0].mxu0 %v280
    %v1131 = vpop.f32.mrb[0].mxu0
    %v1132 = vadd.f32 0.0, %v1131
    %v1133 = vpop.f32.mrb[0].mxu0
    %v1134 = vpop.f32.mrb[0].mxu0
    %v1135 = vadd.f32 0.0, %v1134
    %v1136 = vpop.f32.mrb[0].mxu0
    %1137 = vmatprep.mubr.bf16.mxu0 0
    %1138 = vmatmul.mubr.bf16.gmra.mrb[0].mxu0 %v281
    %v1139 = vpop.f32.mrb[0].mxu0
    %v1140 = vadd.f32 0.0, %v1139
    %v1141 = vpop.f32.mrb[0].mxu0
    %v1142 = vpop.f32.mrb[0].mxu0
    %v1143 = vadd.f32 0.0, %v1142
    %v1144 = vpop.f32.mrb[0].mxu0
    %1145 = vmatprep.mubr.bf16.mxu0 0
    %1146 = vmatmul.mubr.bf16.gmra.mrb[0].mxu0 %v282
    %v1147 = vpop.f32.mrb[0].mxu0
    %v1148 = vadd.f32 0.0, %v1147
    %v1149 = vpop.f32.mrb[0].mxu0
    %v1150 = vpop.f32.mrb[0].mxu0
    %v1151 = vadd.f32 0.0, %v1150
    %v1152 = vpop.f32.mrb[0].mxu0
    %1153 = vdwg.mxu0
    %v1282 = vunpack.c.l.b16 %v897
    %v1283 = vunpack.c.l.b16 %v898
    %v1284 = vunpack.c.l.b16 %v899
    %v1285 = vunpack.c.l.b16 %v900
    %v1286 = vunpack.c.l.b16 %v901
    %v1287 = vunpack.c.l.b16 %v902
    %v1288 = vunpack.c.l.b16 %v903
    %v1289 = vunpack.c.l.b16 %v904
    %v1290 = vunpack.c.l.b16 %v905
    %v1291 = vunpack.c.l.b16 %v906
    %v1292 = vunpack.c.l.b16 %v907
    %v1293 = vunpack.c.l.b16 %v908
    %v1294 = vunpack.c.l.b16 %v909
    %v1295 = vunpack.c.l.b16 %v910
    %v1296 = vunpack.c.l.b16 %v911
    %v1297 = vunpack.c.l.b16 %v912
    %v1298 = vunpack.c.l.b16 %v913
    %v1299 = vunpack.c.l.b16 %v914
    %v1300 = vunpack.c.l.b16 %v915
    %v1301 = vunpack.c.l.b16 %v916
    %v1302 = vunpack.c.l.b16 %v917
    %v1303 = vunpack.c.l.b16 %v918
    %v1304 = vunpack.c.l.b16 %v919
    %v1305 = vunpack.c.l.b16 %v920
    %v1306 = vunpack.c.l.b16 %v921
    %v1307 = vunpack.c.l.b16 %v922
    %v1308 = vunpack.c.l.b16 %v923
    %v1309 = vunpack.c.l.b16 %v924
    %v1310 = vunpack.c.l.b16 %v925
    %v1311 = vunpack.c.l.b16 %v926
    %v1312 = vunpack.c.l.b16 %v927
    %v1313 = vunpack.c.l.b16 %v928
    %v1314 = vunpack.c.l.b16 %v929
    %v1315 = vunpack.c.l.b16 %v930
    %v1316 = vunpack.c.l.b16 %v931
    %v1317 = vunpack.c.l.b16 %v932
    %v1318 = vunpack.c.l.b16 %v933
    %v1319 = vunpack.c.l.b16 %v934
    %v1320 = vunpack.c.l.b16 %v935
    %v1321 = vunpack.c.l.b16 %v936
    %v1322 = vunpack.c.l.b16 %v937
    %v1323 = vunpack.c.l.b16 %v938
    %v1324 = vunpack.c.l.b16 %v939
    %v1325 = vunpack.c.l.b16 %v940
    %v1326 = vunpack.c.l.b16 %v941
    %v1327 = vunpack.c.l.b16 %v942
    %v1328 = vunpack.c.l.b16 %v943
    %v1329 = vunpack.c.l.b16 %v944
    %v1330 = vunpack.c.l.b16 %v945
    %v1331 = vunpack.c.l.b16 %v946
    %v1332 = vunpack.c.l.b16 %v947
    %v1333 = vunpack.c.l.b16 %v948
    %v1334 = vunpack.c.l.b16 %v949
    %v1335 = vunpack.c.l.b16 %v950
    %v1336 = vunpack.c.l.b16 %v951
    %v1337 = vunpack.c.l.b16 %v952
    %v1338 = vunpack.c.l.b16 %v953
    %v1339 = vunpack.c.l.b16 %v954
    %v1340 = vunpack.c.l.b16 %v955
    %v1341 = vunpack.c.l.b16 %v956
    %v1342 = vunpack.c.l.b16 %v957
    %v1343 = vunpack.c.l.b16 %v958
    %v1344 = vunpack.c.l.b16 %v959
    %v1345 = vunpack.c.l.b16 %v960
    %v1346 = vunpack.c.l.b16 %v961
    %v1347 = vunpack.c.l.b16 %v962
    %v1348 = vunpack.c.l.b16 %v963
    %v1349 = vunpack.c.l.b16 %v964
    %v1350 = vunpack.c.l.b16 %v965
    %v1351 = vunpack.c.l.b16 %v966
    %v1352 = vunpack.c.l.b16 %v967
    %v1353 = vunpack.c.l.b16 %v968
    %v1354 = vunpack.c.l.b16 %v969
    %v1355 = vunpack.c.l.b16 %v970
    %v1356 = vunpack.c.l.b16 %v971
    %v1357 = vunpack.c.l.b16 %v972
    %v1358 = vunpack.c.l.b16 %v973
    %v1359 = vunpack.c.l.b16 %v974
    %v1360 = vunpack.c.l.b16 %v975
    %v1361 = vunpack.c.l.b16 %v976
    %v1362 = vunpack.c.l.b16 %v977
    %v1363 = vunpack.c.l.b16 %v978
    %v1364 = vunpack.c.l.b16 %v979
    %v1365 = vunpack.c.l.b16 %v980
    %v1366 = vunpack.c.l.b16 %v981
    %v1367 = vunpack.c.l.b16 %v982
    %v1368 = vunpack.c.l.b16 %v983
    %v1369 = vunpack.c.l.b16 %v984
    %v1370 = vunpack.c.l.b16 %v985
    %v1371 = vunpack.c.l.b16 %v986
    %v1372 = vunpack.c.l.b16 %v987
    %v1373 = vunpack.c.l.b16 %v988
    %v1374 = vunpack.c.l.b16 %v989
    %v1375 = vunpack.c.l.b16 %v990
    %v1376 = vunpack.c.l.b16 %v991
    %v1377 = vunpack.c.l.b16 %v992
    %v1378 = vunpack.c.l.b16 %v993
    %v1379 = vunpack.c.l.b16 %v994
    %v1380 = vunpack.c.l.b16 %v995
    %v1381 = vunpack.c.l.b16 %v996
    %v1382 = vunpack.c.l.b16 %v997
    %v1383 = vunpack.c.l.b16 %v998
    %v1384 = vunpack.c.l.b16 %v999
    %v1385 = vunpack.c.l.b16 %v1000
    %v1386 = vunpack.c.l.b16 %v1001
    %v1387 = vunpack.c.l.b16 %v1002
    %v1388 = vunpack.c.l.b16 %v1003
    %v1389 = vunpack.c.l.b16 %v1004
    %v1390 = vunpack.c.l.b16 %v1005
    %v1391 = vunpack.c.l.b16 %v1006
    %v1392 = vunpack.c.l.b16 %v1007
    %v1393 = vunpack.c.l.b16 %v1008
    %v1394 = vunpack.c.l.b16 %v1009
    %v1395 = vunpack.c.l.b16 %v1010
    %v1396 = vunpack.c.l.b16 %v1011
    %v1397 = vunpack.c.l.b16 %v1012
    %v1398 = vunpack.c.l.b16 %v1013
    %v1399 = vunpack.c.l.b16 %v1014
    %v1400 = vunpack.c.l.b16 %v1015
    %v1401 = vunpack.c.l.b16 %v1016
    %v1402 = vunpack.c.l.b16 %v1017
    %v1403 = vunpack.c.l.b16 %v1018
    %v1404 = vunpack.c.l.b16 %v1019
    %v1405 = vunpack.c.l.b16 %v1020
    %v1406 = vunpack.c.l.b16 %v1021
    %v1407 = vunpack.c.l.b16 %v1022
    %v1408 = vunpack.c.l.b16 %v1023
    %v1409 = vunpack.c.l.b16 %v1024
    %v1410 = vpack.c.b16 %v1283, %v1282
    %v1411 = vpack.c.b16 %v1285, %v1284
    %v1412 = vpack.c.b16 %v1287, %v1286
    %v1413 = vpack.c.b16 %v1289, %v1288
    %v1414 = vpack.c.b16 %v1291, %v1290
    %v1415 = vpack.c.b16 %v1293, %v1292
    %v1416 = vpack.c.b16 %v1295, %v1294
    %v1417 = vpack.c.b16 %v1297, %v1296
    %v1418 = vpack.c.b16 %v1299, %v1298
    %v1419 = vpack.c.b16 %v1301, %v1300
    %v1420 = vpack.c.b16 %v1303, %v1302
    %v1421 = vpack.c.b16 %v1305, %v1304
    %v1422 = vpack.c.b16 %v1307, %v1306
    %v1423 = vpack.c.b16 %v1309, %v1308
    %v1424 = vpack.c.b16 %v1311, %v1310
    %v1425 = vpack.c.b16 %v1313, %v1312
    %v1426 = vpack.c.b16 %v1315, %v1314
    %v1427 = vpack.c.b16 %v1317, %v1316
    %v1428 = vpack.c.b16 %v1319, %v1318
    %v1429 = vpack.c.b16 %v1321, %v1320
    %v1430 = vpack.c.b16 %v1323, %v1322
    %v1431 = vpack.c.b16 %v1325, %v1324
    %v1432 = vpack.c.b16 %v1327, %v1326
    %v1433 = vpack.c.b16 %v1329, %v1328
    %v1434 = vpack.c.b16 %v1331, %v1330
    %v1435 = vpack.c.b16 %v1333, %v1332
    %v1436 = vpack.c.b16 %v1335, %v1334
    %v1437 = vpack.c.b16 %v1337, %v1336
    %v1438 = vpack.c.b16 %v1339, %v1338
    %v1439 = vpack.c.b16 %v1341, %v1340
    %v1440 = vpack.c.b16 %v1343, %v1342
    %v1441 = vpack.c.b16 %v1345, %v1344
    %v1442 = vpack.c.b16 %v1347, %v1346
    %v1443 = vpack.c.b16 %v1349, %v1348
    %v1444 = vpack.c.b16 %v1351, %v1350
    %v1445 = vpack.c.b16 %v1353, %v1352
    %v1446 = vpack.c.b16 %v1355, %v1354
    %v1447 = vpack.c.b16 %v1357, %v1356
    %v1448 = vpack.c.b16 %v1359, %v1358
    %v1449 = vpack.c.b16 %v1361, %v1360
    %v1450 = vpack.c.b16 %v1363, %v1362
    %v1451 = vpack.c.b16 %v1365, %v1364
    %v1452 = vpack.c.b16 %v1367, %v1366
    %v1453 = vpack.c.b16 %v1369, %v1368
    %v1454 = vpack.c.b16 %v1371, %v1370
    %v1455 = vpack.c.b16 %v1373, %v1372
    %v1456 = vpack.c.b16 %v1375, %v1374
    %v1457 = vpack.c.b16 %v1377, %v1376
    %v1458 = vpack.c.b16 %v1379, %v1378
    %v1459 = vpack.c.b16 %v1381, %v1380
    %v1460 = vpack.c.b16 %v1383, %v1382
    %v1461 = vpack.c.b16 %v1385, %v1384
    %v1462 = vpack.c.b16 %v1387, %v1386
    %v1463 = vpack.c.b16 %v1389, %v1388
    %v1464 = vpack.c.b16 %v1391, %v1390
    %v1465 = vpack.c.b16 %v1393, %v1392
    %v1466 = vpack.c.b16 %v1395, %v1394
    %v1467 = vpack.c.b16 %v1397, %v1396
    %v1468 = vpack.c.b16 %v1399, %v1398
    %v1469 = vpack.c.b16 %v1401, %v1400
    %v1470 = vpack.c.b16 %v1403, %v1402
    %v1471 = vpack.c.b16 %v1405, %v1404
    %v1472 = vpack.c.b16 %v1407, %v1406
    %v1473 = vpack.c.b16 %v1409, %v1408
    %1538 = vmatprep.subr.bf16.mxu0 0
    %1539 = vmatpush1.bf16.msra.mxu0 %v1410
    %1540 = vmatprep.subr.bf16.mxu0 0
    %1541 = vmatpush1.bf16.msra.mxu0 %v1411
    %1542 = vmatprep.subr.bf16.mxu0 0
    %1543 = vmatpush1.bf16.msra.mxu0 %v1412
    %1544 = vmatprep.subr.bf16.mxu0 0
    %1545 = vmatpush1.bf16.msra.mxu0 %v1413
    %1546 = vmatprep.subr.bf16.mxu0 0
    %1547 = vmatpush1.bf16.msra.mxu0 %v1414
    %1548 = vmatprep.subr.bf16.mxu0 0
    %1549 = vmatpush1.bf16.msra.mxu0 %v1415
    %1550 = vmatprep.subr.bf16.mxu0 0
    %1551 = vmatpush1.bf16.msra.mxu0 %v1416
    %1552 = vmatprep.subr.bf16.mxu0 0
    %1553 = vmatpush1.bf16.msra.mxu0 %v1417
    %1554 = vmatprep.subr.bf16.mxu0 0
    %1555 = vmatpush1.bf16.msra.mxu0 %v1418
    %1556 = vmatprep.subr.bf16.mxu0 0
    %1557 = vmatpush1.bf16.msra.mxu0 %v1419
    %1558 = vmatprep.subr.bf16.mxu0 0
    %1559 = vmatpush1.bf16.msra.mxu0 %v1420
    %1560 = vmatprep.subr.bf16.mxu0 0
    %1561 = vmatpush1.bf16.msra.mxu0 %v1421
    %1562 = vmatprep.subr.bf16.mxu0 0
    %1563 = vmatpush1.bf16.msra.mxu0 %v1422
    %1564 = vmatprep.subr.bf16.mxu0 0
    %1565 = vmatpush1.bf16.msra.mxu0 %v1423
    %1566 = vmatprep.subr.bf16.mxu0 0
    %1567 = vmatpush1.bf16.msra.mxu0 %v1424
    %1568 = vmatprep.subr.bf16.mxu0 0
    %1569 = vmatpush1.bf16.msra.mxu0 %v1425
    %1570 = vmatprep.mubr.bf16.mxu0 %v866
    %1571 = vmatmul.mubr.bf16.gmra.mrb[0].mxu0 %v865
    %v1572 = vpop.f32.mrb[0].mxu0
    %v1573 = vadd.f32 %v1124, %v1572
    %v1574 = vpop.f32.mrb[0].mxu0
    %v1575 = vpop.f32.mrb[0].mxu0
    %v1576 = vadd.f32 %v1127, %v1575
    %v1577 = vpop.f32.mrb[0].mxu0
    %1578 = vmatprep.mubr.bf16.mxu0 %v874
    %1579 = vmatmul.mubr.bf16.gmra.mrb[0].mxu0 %v873
    %v1580 = vpop.f32.mrb[0].mxu0
    %v1581 = vadd.f32 %v1132, %v1580
    %v1582 = vpop.f32.mrb[0].mxu0
    %v1583 = vpop.f32.mrb[0].mxu0
    %v1584 = vadd.f32 %v1135, %v1583
    %v1585 = vpop.f32.mrb[0].mxu0
    %1586 = vmatprep.mubr.bf16.mxu0 %v882
    %1587 = vmatmul.mubr.bf16.gmra.mrb[0].mxu0 %v881
    %v1588 = vpop.f32.mrb[0].mxu0
    %v1589 = vadd.f32 %v1140, %v1588
    %v1590 = vpop.f32.mrb[0].mxu0
    %v1591 = vpop.f32.mrb[0].mxu0
    %v1592 = vadd.f32 %v1143, %v1591
    %v1593 = vpop.f32.mrb[0].mxu0
    %1594 = vmatprep.mubr.bf16.mxu0 %v890
    %1595 = vmatmul.mubr.bf16.gmra.mrb[0].mxu0 %v889
    %v1596 = vpop.f32.mrb[0].mxu0
    %v1597 = vadd.f32 %v1148, %v1596
    %v1598 = vpop.f32.mrb[0].mxu0
    %v1599 = vpop.f32.mrb[0].mxu0
    %v1600 = vadd.f32 %v1151, %v1599
    %v1601 = vpop.f32.mrb[0].mxu0
    %1602 = vdwg.mxu0
    %1603 = vmatprep.subr.bf16.mxu0 0
    %1604 = vmatpush1.bf16.msra.mxu0 %v1426
    %1605 = vmatprep.subr.bf16.mxu0 0
    %1606 = vmatpush1.bf16.msra.mxu0 %v1427
    %1607 = vmatprep.subr.bf16.mxu0 0
    %1608 = vmatpush1.bf16.msra.mxu0 %v1428
    %1609 = vmatprep.subr.bf16.mxu0 0
    %1610 = vmatpush1.bf16.msra.mxu0 %v1429
    %1611 = vmatprep.subr.bf16.mxu0 0
    %1612 = vmatpush1.bf16.msra.mxu0 %v1430
    %1613 = vmatprep.subr.bf16.mxu0 0
    %1614 = vmatpush1.bf16.msra.mxu0 %v1431
    %1615 = vmatprep.subr.bf16.mxu0 0
    %1616 = vmatpush1.bf16.msra.mxu0 %v1432
    %1617 = vmatprep.subr.bf16.mxu0 0
    %1618 = vmatpush1.bf16.msra.mxu0 %v1433
    %1619 = vmatprep.subr.bf16.mxu0 0
    %1620 = vmatpush1.bf16.msra.mxu0 %v1434
    %1621 = vmatprep.subr.bf16.mxu0 0
    %1622 = vmatpush1.bf16.msra.mxu0 %v1435
    %1623 = vmatprep.subr.bf16.mxu0 0
    %1624 = vmatpush1.bf16.msra.mxu0 %v1436
    %1625 = vmatprep.subr.bf16.mxu0 0
    %1626 = vmatpush1.bf16.msra.mxu0 %v1437
    %1627 = vmatprep.subr.bf16.mxu0 0
    %1628 = vmatpush1.bf16.msra.mxu0 %v1438
    %1629 = vmatprep.subr.bf16.mxu0 0
    %1630 = vmatpush1.bf16.msra.mxu0 %v1439
    %1631 = vmatprep.subr.bf16.mxu0 0
    %1632 = vmatpush1.bf16.msra.mxu0 %v1440
    %1633 = vmatprep.subr.bf16.mxu0 0
    %1634 = vmatpush1.bf16.msra.mxu0 %v1441
    %1635 = vmatprep.mubr.bf16.mxu0 %v868
    %1636 = vmatmul.mubr.bf16.gmra.mrb[0].mxu0 %v867
    %v1637 = vpop.f32.mrb[0].mxu0
    %v1638 = vadd.f32 %v1573, %v1637
    %v1639 = vpop.f32.mrb[0].mxu0
    %v1640 = vpop.f32.mrb[0].mxu0
    %v1641 = vadd.f32 %v1576, %v1640
    %v1642 = vpop.f32.mrb[0].mxu0
    %1643 = vmatprep.mubr.bf16.mxu0 %v876
    %1644 = vmatmul.mubr.bf16.gmra.mrb[0].mxu0 %v875
    %v1645 = vpop.f32.mrb[0].mxu0
    %v1646 = vadd.f32 %v1581, %v1645
    %v1647 = vpop.f32.mrb[0].mxu0
    %v1648 = vpop.f32.mrb[0].mxu0
    %v1649 = vadd.f32 %v1584, %v1648
    %v1650 = vpop.f32.mrb[0].mxu0
    %1651 = vmatprep.mubr.bf16.mxu0 %v884
    %1652 = vmatmul.mubr.bf16.gmra.mrb[0].mxu0 %v883
    %v1653 = vpop.f32.mrb[0].mxu0
    %v1654 = vadd.f32 %v1589, %v1653
    %v1655 = vpop.f32.mrb[0].mxu0
    %v1656 = vpop.f32.mrb[0].mxu0
    %v1657 = vadd.f32 %v1592, %v1656
    %v1658 = vpop.f32.mrb[0].mxu0
    %1659 = vmatprep.mubr.bf16.mxu0 %v892
    %1660 = vmatmul.mubr.bf16.gmra.mrb[0].mxu0 %v891
    %v1661 = vpop.f32.mrb[0].mxu0
    %v1662 = vadd.f32 %v1597, %v1661
    %v1663 = vpop.f32.mrb[0].mxu0
    %v1664 = vpop.f32.mrb[0].mxu0
    %v1665 = vadd.f32 %v1600, %v1664
    %v1666 = vpop.f32.mrb[0].mxu0
    %1667 = vdwg.mxu0
    %1668 = vmatprep.subr.bf16.mxu0 0
    %1669 = vmatpush1.bf16.msra.mxu0 %v1442
    %1670 = vmatprep.subr.bf16.mxu0 0
    %1671 = vmatpush1.bf16.msra.mxu0 %v1443
    %1672 = vmatprep.subr.bf16.mxu0 0
    %1673 = vmatpush1.bf16.msra.mxu0 %v1444
    %1674 = vmatprep.subr.bf16.mxu0 0
    %1675 = vmatpush1.bf16.msra.mxu0 %v1445
    %1676 = vmatprep.subr.bf16.mxu0 0
    %1677 = vmatpush1.bf16.msra.mxu0 %v1446
    %1678 = vmatprep.subr.bf16.mxu0 0
    %1679 = vmatpush1.bf16.msra.mxu0 %v1447
    %1680 = vmatprep.subr.bf16.mxu0 0
    %1681 = vmatpush1.bf16.msra.mxu0 %v1448
    %1682 = vmatprep.subr.bf16.mxu0 0
    %1683 = vmatpush1.bf16.msra.mxu0 %v1449
    %1684 = vmatprep.subr.bf16.mxu0 0
    %1685 = vmatpush1.bf16.msra.mxu0 %v1450
    %1686 = vmatprep.subr.bf16.mxu0 0
    %1687 = vmatpush1.bf16.msra.mxu0 %v1451
    %1688 = vmatprep.subr.bf16.mxu0 0
    %1689 = vmatpush1.bf16.msra.mxu0 %v1452
    %1690 = vmatprep.subr.bf16.mxu0 0
    %1691 = vmatpush1.bf16.msra.mxu0 %v1453
    %1692 = vmatprep.subr.bf16.mxu0 0
    %1693 = vmatpush1.bf16.msra.mxu0 %v1454
    %1694 = vmatprep.subr.bf16.mxu0 0
    %1695 = vmatpush1.bf16.msra.mxu0 %v1455
    %1696 = vmatprep.subr.bf16.mxu0 0
    %1697 = vmatpush1.bf16.msra.mxu0 %v1456
    %1698 = vmatprep.subr.bf16.mxu0 0
    %1699 = vmatpush1.bf16.msra.mxu0 %v1457
    %1700 = vmatprep.mubr.bf16.mxu0 %v870
    %1701 = vmatmul.mubr.bf16.gmra.mrb[0].mxu0 %v869
    %v1702 = vpop.f32.mrb[0].mxu0
    %v1703 = vadd.f32 %v1638, %v1702
    %v1704 = vpop.f32.mrb[0].mxu0
    %v1705 = vpop.f32.mrb[0].mxu0
    %v1706 = vadd.f32 %v1641, %v1705
    %v1707 = vpop.f32.mrb[0].mxu0
    %1708 = vmatprep.mubr.bf16.mxu0 %v878
    %1709 = vmatmul.mubr.bf16.gmra.mrb[0].mxu0 %v877
    %v1710 = vpop.f32.mrb[0].mxu0
    %v1711 = vadd.f32 %v1646, %v1710
    %v1712 = vpop.f32.mrb[0].mxu0
    %v1713 = vpop.f32.mrb[0].mxu0
    %v1714 = vadd.f32 %v1649, %v1713
    %v1715 = vpop.f32.mrb[0].mxu0
    %1716 = vmatprep.mubr.bf16.mxu0 %v886
    %1717 = vmatmul.mubr.bf16.gmra.mrb[0].mxu0 %v885
    %v1718 = vpop.f32.mrb[0].mxu0
    %v1719 = vadd.f32 %v1654, %v1718
    %v1720 = vpop.f32.mrb[0].mxu0
    %v1721 = vpop.f32.mrb[0].mxu0
    %v1722 = vadd.f32 %v1657, %v1721
    %v1723 = vpop.f32.mrb[0].mxu0
    %1724 = vmatprep.mubr.bf16.mxu0 %v894
    %1725 = vmatmul.mubr.bf16.gmra.mrb[0].mxu0 %v893
    %v1726 = vpop.f32.mrb[0].mxu0
    %v1727 = vadd.f32 %v1662, %v1726
    %v1728 = vpop.f32.mrb[0].mxu0
    %v1729 = vpop.f32.mrb[0].mxu0
    %v1730 = vadd.f32 %v1665, %v1729
    %v1731 = vpop.f32.mrb[0].mxu0
    %1732 = vdwg.mxu0
    %1733 = vmatprep.subr.bf16.mxu0 0
    %1734 = vmatpush1.bf16.msra.mxu0 %v1458
    %1735 = vmatprep.subr.bf16.mxu0 0
    %1736 = vmatpush1.bf16.msra.mxu0 %v1459
    %1737 = vmatprep.subr.bf16.mxu0 0
    %1738 = vmatpush1.bf16.msra.mxu0 %v1460
    %1739 = vmatprep.subr.bf16.mxu0 0
    %1740 = vmatpush1.bf16.msra.mxu0 %v1461
    %1741 = vmatprep.subr.bf16.mxu0 0
    %1742 = vmatpush1.bf16.msra.mxu0 %v1462
    %1743 = vmatprep.subr.bf16.mxu0 0
    %1744 = vmatpush1.bf16.msra.mxu0 %v1463
    %1745 = vmatprep.subr.bf16.mxu0 0
    %1746 = vmatpush1.bf16.msra.mxu0 %v1464
    %1747 = vmatprep.subr.bf16.mxu0 0
    %1748 = vmatpush1.bf16.msra.mxu0 %v1465
    %1749 = vmatprep.subr.bf16.mxu0 0
    %1750 = vmatpush1.bf16.msra.mxu0 %v1466
    %1751 = vmatprep.subr.bf16.mxu0 0
    %1752 = vmatpush1.bf16.msra.mxu0 %v1467
    %1753 = vmatprep.subr.bf16.mxu0 0
    %1754 = vmatpush1.bf16.msra.mxu0 %v1468
    %1755 = vmatprep.subr.bf16.mxu0 0
    %1756 = vmatpush1.bf16.msra.mxu0 %v1469
    %1757 = vmatprep.subr.bf16.mxu0 0
    %1758 = vmatpush1.bf16.msra.mxu0 %v1470
    %1759 = vmatprep.subr.bf16.mxu0 0
    %1760 = vmatpush1.bf16.msra.mxu0 %v1471
    %1761 = vmatprep.subr.bf16.mxu0 0
    %1762 = vmatpush1.bf16.msra.mxu0 %v1472
    %1763 = vmatprep.subr.bf16.mxu0 0
    %1764 = vmatpush1.bf16.msra.mxu0 %v1473
    %1765 = vmatprep.mubr.bf16.mxu0 %v872
    %1766 = vmatmul.mubr.bf16.gmra.mrb[0].mxu0 %v871
    %v1767 = vpop.f32.mrb[0].mxu0
    %v1768 = vadd.f32 %v1703, %v1767
    %v1769 = vpop.f32.mrb[0].mxu0
    %v1770 = vpop.f32.mrb[0].mxu0
    %v1771 = vadd.f32 %v1706, %v1770
    %v1772 = vpop.f32.mrb[0].mxu0
    %1773 = vmatprep.mubr.bf16.mxu0 %v880
    %1774 = vmatmul.mubr.bf16.gmra.mrb[0].mxu0 %v879
    %v1775 = vpop.f32.mrb[0].mxu0
    %v1776 = vadd.f32 %v1711, %v1775
    %v1777 = vpop.f32.mrb[0].mxu0
    %v1778 = vpop.f32.mrb[0].mxu0
    %v1779 = vadd.f32 %v1714, %v1778
    %v1780 = vpop.f32.mrb[0].mxu0
    %1781 = vmatprep.mubr.bf16.mxu0 %v888
    %1782 = vmatmul.mubr.bf16.gmra.mrb[0].mxu0 %v887
    %v1783 = vpop.f32.mrb[0].mxu0
    %v1784 = vadd.f32 %v1719, %v1783
    %v1785 = vpop.f32.mrb[0].mxu0
    %v1786 = vpop.f32.mrb[0].mxu0
    %v1787 = vadd.f32 %v1722, %v1786
    %v1788 = vpop.f32.mrb[0].mxu0
    %1789 = vmatprep.mubr.bf16.mxu0 %v896
    %1790 = vmatmul.mubr.bf16.gmra.mrb[0].mxu0 %v895
    %v1791 = vpop.f32.mrb[0].mxu0
    %v1792 = vadd.f32 %v1727, %v1791
    %v1793 = vpop.f32.mrb[0].mxu0
    %v1794 = vpop.f32.mrb[0].mxu0
    %v1795 = vadd.f32 %v1730, %v1794
    %v1796 = vpop.f32.mrb[0].mxu0
    %1797 = vdwg.mxu0
    %v1798 = vld [vmem:[%s4] sm:$0x1]
    %v1800 = vlaneseq
    %v1801 = vshrl.u32 %v1800, 7
    %v1802 = vsub.s32 0, %v1801
    %v1803 = vrot.slane %v1798, %v1802
    %v1805 = vadd.f32 %v1768, %v1803
    %v1806 = vadd.f32 %v1771, %v1803
    %v1807 = vadd.f32 %v1776, %v1803
    %v1808 = vadd.f32 %v1779, %v1803
    %v1809 = vadd.f32 %v1784, %v1803
    %v1810 = vadd.f32 %v1787, %v1803
    %v1811 = vadd.f32 %v1792, %v1803
    %v1812 = vadd.f32 %v1795, %v1803
    %v1813 = vmax.f32 %v1805, 0.0
    %v1814 = vmax.f32 %v1806, 0.0
    %v1815 = vmax.f32 %v1807, 0.0
    %v1816 = vmax.f32 %v1808, 0.0
    %v1817 = vmax.f32 %v1809, 0.0
    %v1818 = vmax.f32 %v1810, 0.0
    %v1819 = vmax.f32 %v1811, 0.0
    %v1820 = vmax.f32 %v1812, 0.0
    %1821 = vst [vmem:[#allocation4] sm:$0xff] %v1813
    %1822 = vst [vmem:[#allocation4 + $0x8] sm:$0xff] %v1814
    %1823 = vst [vmem:[#allocation4 + $0x10] sm:$0xff] %v1815
    %1824 = vst [vmem:[#allocation4 + $0x18] sm:$0xff] %v1816
    %1825 = vst [vmem:[#allocation4 + $0x20] sm:$0xff] %v1817
    %1826 = vst [vmem:[#allocation4 + $0x28] sm:$0xff] %v1818
    %1827 = vst [vmem:[#allocation4 + $0x30] sm:$0xff] %v1819
    %1828 = vst [vmem:[#allocation4 + $0x38] sm:$0xff] %v1820
    %v1829 = vld [vmem:[#allocation4] sm:$0xff]
    %v1830 = vld [vmem:[#allocation4 + $0x8] sm:$0xff]
    %v1831 = vld [vmem:[#allocation4 + $0x10] sm:$0xff]
    %v1832 = vld [vmem:[#allocation4 + $0x18] sm:$0xff]
    %v1833 = vld [vmem:[#allocation4 + $0x20] sm:$0xff]
    %v1834 = vld [vmem:[#allocation4 + $0x28] sm:$0xff]
    %v1835 = vld [vmem:[#allocation4 + $0x30] sm:$0xff]
    %v1836 = vld [vmem:[#allocation4 + $0x38] sm:$0xff]
    %v1837 = vpack.c.bf16 %v1830, %v1829
    %v1838 = vpack.c.bf16 %v1832, %v1831
    %v1839 = vpack.c.bf16 %v1834, %v1833
    %v1840 = vpack.c.bf16 %v1836, %v1835
    %v1841 = vld [vmem:[%s0] sm:$0xf]
    %v1842 = vld [vmem:[%s0 + $0x4] sm:$0xf]
    %v1843 = vld [vmem:[%s0 + $0x8] sm:$0xf]
    %v1844 = vld [vmem:[%s0 + $0xc] sm:$0xf]
    %v1845 = vld [vmem:[%s0 + $0x10] sm:$0xf]
    %v1846 = vld [vmem:[%s0 + $0x14] sm:$0xf]
    %v1847 = vld [vmem:[%s0 + $0x18] sm:$0xf]
    %v1848 = vld [vmem:[%s0 + $0x1c] sm:$0xf]
    %v1849 = vld [vmem:[%s0 + $0x20] sm:$0xf]
    %v1850 = vld [vmem:[%s0 + $0x24] sm:$0xf]
    %v1851 = vld [vmem:[%s0 + $0x28] sm:$0xf]
    %v1852 = vld [vmem:[%s0 + $0x2c] sm:$0xf]
    %v1853 = vld [vmem:[%s0 + $0x30] sm:$0xf]
    %v1854 = vld [vmem:[%s0 + $0x34] sm:$0xf]
    %v1855 = vld [vmem:[%s0 + $0x38] sm:$0xf]
    %v1856 = vld [vmem:[%s0 + $0x3c] sm:$0xf]
    %v1857 = vld [vmem:[%s0 + $0x40] sm:$0xf]
    %v1858 = vld [vmem:[%s0 + $0x44] sm:$0xf]
    %v1859 = vld [vmem:[%s0 + $0x48] sm:$0xf]
    %v1860 = vld [vmem:[%s0 + $0x4c] sm:$0xf]
    %v1861 = vld [vmem:[%s0 + $0x50] sm:$0xf]
    %v1862 = vld [vmem:[%s0 + $0x54] sm:$0xf]
    %v1863 = vld [vmem:[%s0 + $0x58] sm:$0xf]
    %v1864 = vld [vmem:[%s0 + $0x5c] sm:$0xf]
    %v1865 = vld [vmem:[%s0 + $0x60] sm:$0xf]
    %v1866 = vld [vmem:[%s0 + $0x64] sm:$0xf]
    %v1867 = vld [vmem:[%s0 + $0x68] sm:$0xf]
    %v1868 = vld [vmem:[%s0 + $0x6c] sm:$0xf]
    %v1869 = vld [vmem:[%s0 + $0x70] sm:$0xf]
    %v1870 = vld [vmem:[%s0 + $0x74] sm:$0xf]
    %v1871 = vld [vmem:[%s0 + $0x78] sm:$0xf]
    %v1872 = vld [vmem:[%s0 + $0x7c] sm:$0xf]
    %v1873 = vld [vmem:[%s0 + $0x80] sm:$0xf]
    %v1874 = vld [vmem:[%s0 + $0x84] sm:$0xf]
    %v1875 = vld [vmem:[%s0 + $0x88] sm:$0xf]
    %v1876 = vld [vmem:[%s0 + $0x8c] sm:$0xf]
    %v1877 = vld [vmem:[%s0 + $0x90] sm:$0xf]
    %v1878 = vld [vmem:[%s0 + $0x94] sm:$0xf]
    %v1879 = vld [vmem:[%s0 + $0x98] sm:$0xf]
    %v1880 = vld [vmem:[%s0 + $0x9c] sm:$0xf]
    %v1881 = vld [vmem:[%s0 + $0xa0] sm:$0xf]
    %v1882 = vld [vmem:[%s0 + $0xa4] sm:$0xf]
    %v1883 = vld [vmem:[%s0 + $0xa8] sm:$0xf]
    %v1884 = vld [vmem:[%s0 + $0xac] sm:$0xf]
    %v1885 = vld [vmem:[%s0 + $0xb0] sm:$0xf]
    %v1886 = vld [vmem:[%s0 + $0xb4] sm:$0xf]
    %v1887 = vld [vmem:[%s0 + $0xb8] sm:$0xf]
    %v1888 = vld [vmem:[%s0 + $0xbc] sm:$0xf]
    %v1889 = vld [vmem:[%s0 + $0xc0] sm:$0xf]
    %v1890 = vld [vmem:[%s0 + $0xc4] sm:$0xf]
    %v1891 = vld [vmem:[%s0 + $0xc8] sm:$0xf]
    %v1892 = vld [vmem:[%s0 + $0xcc] sm:$0xf]
    %v1893 = vld [vmem:[%s0 + $0xd0] sm:$0xf]
    %v1894 = vld [vmem:[%s0 + $0xd4] sm:$0xf]
    %v1895 = vld [vmem:[%s0 + $0xd8] sm:$0xf]
    %v1896 = vld [vmem:[%s0 + $0xdc] sm:$0xf]
    %v1897 = vld [vmem:[%s0 + $0xe0] sm:$0xf]
    %v1898 = vld [vmem:[%s0 + $0xe4] sm:$0xf]
    %v1899 = vld [vmem:[%s0 + $0xe8] sm:$0xf]
    %v1900 = vld [vmem:[%s0 + $0xec] sm:$0xf]
    %v1901 = vld [vmem:[%s0 + $0xf0] sm:$0xf]
    %v1902 = vld [vmem:[%s0 + $0xf4] sm:$0xf]
    %v1903 = vld [vmem:[%s0 + $0xf8] sm:$0xf]
    %v1904 = vld [vmem:[%s0 + $0xfc] sm:$0xf]
    %v1969 = vunpack.c.l.b16 %v1841
    %v1970 = vunpack.c.l.b16 %v1842
    %v1971 = vunpack.c.l.b16 %v1843
    %v1972 = vunpack.c.l.b16 %v1844
    %v1973 = vunpack.c.l.b16 %v1845
    %v1974 = vunpack.c.l.b16 %v1846
    %v1975 = vunpack.c.l.b16 %v1847
    %v1976 = vunpack.c.l.b16 %v1848
    %v1977 = vunpack.c.l.b16 %v1849
    %v1978 = vunpack.c.l.b16 %v1850
    %v1979 = vunpack.c.l.b16 %v1851
    %v1980 = vunpack.c.l.b16 %v1852
    %v1981 = vunpack.c.l.b16 %v1853
    %v1982 = vunpack.c.l.b16 %v1854
    %v1983 = vunpack.c.l.b16 %v1855
    %v1984 = vunpack.c.l.b16 %v1856
    %v1985 = vunpack.c.l.b16 %v1857
    %v1986 = vunpack.c.l.b16 %v1858
    %v1987 = vunpack.c.l.b16 %v1859
    %v1988 = vunpack.c.l.b16 %v1860
    %v1989 = vunpack.c.l.b16 %v1861
    %v1990 = vunpack.c.l.b16 %v1862
    %v1991 = vunpack.c.l.b16 %v1863
    %v1992 = vunpack.c.l.b16 %v1864
    %v1993 = vunpack.c.l.b16 %v1865
    %v1994 = vunpack.c.l.b16 %v1866
    %v1995 = vunpack.c.l.b16 %v1867
    %v1996 = vunpack.c.l.b16 %v1868
    %v1997 = vunpack.c.l.b16 %v1869
    %v1998 = vunpack.c.l.b16 %v1870
    %v1999 = vunpack.c.l.b16 %v1871
    %v2000 = vunpack.c.l.b16 %v1872
    %v2001 = vunpack.c.l.b16 %v1873
    %v2002 = vunpack.c.l.b16 %v1874
    %v2003 = vunpack.c.l.b16 %v1875
    %v2004 = vunpack.c.l.b16 %v1876
    %v2005 = vunpack.c.l.b16 %v1877
    %v2006 = vunpack.c.l.b16 %v1878
    %v2007 = vunpack.c.l.b16 %v1879
    %v2008 = vunpack.c.l.b16 %v1880
    %v2009 = vunpack.c.l.b16 %v1881
    %v2010 = vunpack.c.l.b16 %v1882
    %v2011 = vunpack.c.l.b16 %v1883
    %v2012 = vunpack.c.l.b16 %v1884
    %v2013 = vunpack.c.l.b16 %v1885
    %v2014 = vunpack.c.l.b16 %v1886
    %v2015 = vunpack.c.l.b16 %v1887
    %v2016 = vunpack.c.l.b16 %v1888
    %v2017 = vunpack.c.l.b16 %v1889
    %v2018 = vunpack.c.l.b16 %v1890
    %v2019 = vunpack.c.l.b16 %v1891
    %v2020 = vunpack.c.l.b16 %v1892
    %v2021 = vunpack.c.l.b16 %v1893
    %v2022 = vunpack.c.l.b16 %v1894
    %v2023 = vunpack.c.l.b16 %v1895
    %v2024 = vunpack.c.l.b16 %v1896
    %v2025 = vunpack.c.l.b16 %v1897
    %v2026 = vunpack.c.l.b16 %v1898
    %v2027 = vunpack.c.l.b16 %v1899
    %v2028 = vunpack.c.l.b16 %v1900
    %v2029 = vunpack.c.l.b16 %v1901
    %v2030 = vunpack.c.l.b16 %v1902
    %v2031 = vunpack.c.l.b16 %v1903
    %v2032 = vunpack.c.l.b16 %v1904
    %v2033 = vpack.c.b16 %v1970, %v1969
    %v2034 = vpack.c.b16 %v1972, %v1971
    %v2035 = vpack.c.b16 %v1974, %v1973
    %v2036 = vpack.c.b16 %v1976, %v1975
    %v2037 = vpack.c.b16 %v1978, %v1977
    %v2038 = vpack.c.b16 %v1980, %v1979
    %v2039 = vpack.c.b16 %v1982, %v1981
    %v2040 = vpack.c.b16 %v1984, %v1983
    %v2041 = vpack.c.b16 %v1986, %v1985
    %v2042 = vpack.c.b16 %v1988, %v1987
    %v2043 = vpack.c.b16 %v1990, %v1989
    %v2044 = vpack.c.b16 %v1992, %v1991
    %v2045 = vpack.c.b16 %v1994, %v1993
    %v2046 = vpack.c.b16 %v1996, %v1995
    %v2047 = vpack.c.b16 %v1998, %v1997
    %v2048 = vpack.c.b16 %v2000, %v1999
    %v2049 = vpack.c.b16 %v2002, %v2001
    %v2050 = vpack.c.b16 %v2004, %v2003
    %v2051 = vpack.c.b16 %v2006, %v2005
    %v2052 = vpack.c.b16 %v2008, %v2007
    %v2053 = vpack.c.b16 %v2010, %v2009
    %v2054 = vpack.c.b16 %v2012, %v2011
    %v2055 = vpack.c.b16 %v2014, %v2013
    %v2056 = vpack.c.b16 %v2016, %v2015
    %v2057 = vpack.c.b16 %v2018, %v2017
    %v2058 = vpack.c.b16 %v2020, %v2019
    %v2059 = vpack.c.b16 %v2022, %v2021
    %v2060 = vpack.c.b16 %v2024, %v2023
    %v2061 = vpack.c.b16 %v2026, %v2025
    %v2062 = vpack.c.b16 %v2028, %v2027
    %v2063 = vpack.c.b16 %v2030, %v2029
    %v2064 = vpack.c.b16 %v2032, %v2031
    %v2066 = vsel %vm287, %v2033, 0
    %v2069 = vsel %vm287, %v2034, 0
    %v2072 = vsel %vm287, %v2035, 0
    %v2075 = vsel %vm287, %v2036, 0
    %v2078 = vsel %vm287, %v2037, 0
    %v2081 = vsel %vm287, %v2038, 0
    %v2084 = vsel %vm287, %v2039, 0
    %v2087 = vsel %vm287, %v2040, 0
    %v2090 = vsel %vm287, %v2041, 0
    %v2093 = vsel %vm287, %v2042, 0
    %v2096 = vsel %vm287, %v2043, 0
    %v2099 = vsel %vm287, %v2044, 0
    %v2102 = vsel %vm287, %v2045, 0
    %v2105 = vsel %vm287, %v2046, 0
    %v2108 = vsel %vm287, %v2047, 0
    %v2111 = vsel %vm287, %v2048, 0
    %v2114 = vsel %vm287, %v2049, 0
    %v2117 = vsel %vm287, %v2050, 0
    %v2120 = vsel %vm287, %v2051, 0
    %v2123 = vsel %vm287, %v2052, 0
    %v2126 = vsel %vm287, %v2053, 0
    %v2129 = vsel %vm287, %v2054, 0
    %v2132 = vsel %vm287, %v2055, 0
    %v2135 = vsel %vm287, %v2056, 0
    %v2138 = vsel %vm287, %v2057, 0
    %v2141 = vsel %vm287, %v2058, 0
    %v2144 = vsel %vm287, %v2059, 0
    %v2147 = vsel %vm287, %v2060, 0
    %v2150 = vsel %vm287, %v2061, 0
    %v2153 = vsel %vm287, %v2062, 0
    %v2156 = vsel %vm287, %v2063, 0
    %v2159 = vsel %vm287, %v2064, 0
    %2161 = vmatprep.subr.bf16.mxu0 0
    %2162 = vmatpush1.bf16.msra.mxu0 %v1837
    %2163 = vmatprep.subr.bf16.mxu0 0
    %2164 = vmatpush1.bf16.msra.mxu0 %v1838
    %2165 = vmatprep.subr.bf16.mxu0 0
    %2166 = vmatpush1.bf16.msra.mxu0 %v1839
    %2167 = vmatprep.subr.bf16.mxu0 0
    %2168 = vmatpush1.bf16.msra.mxu0 %v1840
    %2169 = vmatprep.subr.bf16.mxu0 0
    %2170 = vmatpush1.bf16.msra.mxu0 0
    %2171 = vmatprep.subr.bf16.mxu0 0
    %2172 = vmatpush1.bf16.msra.mxu0 0
    %2173 = vmatprep.subr.bf16.mxu0 0
    %2174 = vmatpush1.bf16.msra.mxu0 0
    %2175 = vmatprep.subr.bf16.mxu0 0
    %2176 = vmatpush1.bf16.msra.mxu0 0
    %2177 = vmatprep.subr.bf16.mxu0 0
    %2178 = vmatpush1.bf16.msra.mxu0 0
    %2179 = vmatprep.subr.bf16.mxu0 0
    %2180 = vmatpush1.bf16.msra.mxu0 0
    %2181 = vmatprep.subr.bf16.mxu0 0
    %2182 = vmatpush1.bf16.msra.mxu0 0
    %2183 = vmatprep.subr.bf16.mxu0 0
    %2184 = vmatpush1.bf16.msra.mxu0 0
    %2185 = vmatprep.subr.bf16.mxu0 0
    %2186 = vmatpush1.bf16.msra.mxu0 0
    %2187 = vmatprep.subr.bf16.mxu0 0
    %2188 = vmatpush1.bf16.msra.mxu0 0
    %2189 = vmatprep.subr.bf16.mxu0 0
    %2190 = vmatpush1.bf16.msra.mxu0 0
    %2191 = vmatprep.subr.bf16.mxu0 0
    %2192 = vmatpush1.bf16.msra.mxu0 0
    %2193 = vmatprep.mubr.bf16.mxu0 0
    %2194 = vmatmul.mubr.bf16.gmra.mrb[0].mxu0 %v2066
    %v2195 = vpop.f32.mrb[0].mxu0
    %v2196 = vadd.f32 0.0, %v2195
    %v2197 = vpop.f32.mrb[0].mxu0
    %v2198 = vpop.f32.mrb[0].mxu0
    %v2199 = vadd.f32 0.0, %v2198
    %v2200 = vpop.f32.mrb[0].mxu0
    %2201 = vmatprep.mubr.bf16.mxu0 0
    %2202 = vmatmul.mubr.bf16.gmra.mrb[0].mxu0 %v2069
    %v2203 = vpop.f32.mrb[0].mxu0
    %v2204 = vadd.f32 0.0, %v2203
    %v2205 = vpop.f32.mrb[0].mxu0
    %v2206 = vpop.f32.mrb[0].mxu0
    %v2207 = vadd.f32 0.0, %v2206
    %v2208 = vpop.f32.mrb[0].mxu0
    %2209 = vmatprep.mubr.bf16.mxu0 0
    %2210 = vmatmul.mubr.bf16.gmra.mrb[0].mxu0 %v2072
    %v2211 = vpop.f32.mrb[0].mxu0
    %v2212 = vadd.f32 0.0, %v2211
    %v2213 = vpop.f32.mrb[0].mxu0
    %v2214 = vpop.f32.mrb[0].mxu0
    %v2215 = vadd.f32 0.0, %v2214
    %v2216 = vpop.f32.mrb[0].mxu0
    %2217 = vmatprep.mubr.bf16.mxu0 0
    %2218 = vmatmul.mubr.bf16.gmra.mrb[0].mxu0 %v2075
    %v2219 = vpop.f32.mrb[0].mxu0
    %v2220 = vadd.f32 0.0, %v2219
    %v2221 = vpop.f32.mrb[0].mxu0
    %v2222 = vpop.f32.mrb[0].mxu0
    %v2223 = vadd.f32 0.0, %v2222
    %v2224 = vpop.f32.mrb[0].mxu0
    %2225 = vmatprep.mubr.bf16.mxu0 0
    %2226 = vmatmul.mubr.bf16.gmra.mrb[0].mxu0 %v2078
    %v2227 = vpop.f32.mrb[0].mxu0
    %v2228 = vadd.f32 0.0, %v2227
    %v2229 = vpop.f32.mrb[0].mxu0
    %v2230 = vpop.f32.mrb[0].mxu0
    %v2231 = vadd.f32 0.0, %v2230
    %v2232 = vpop.f32.mrb[0].mxu0
    %2233 = vmatprep.mubr.bf16.mxu0 0
    %2234 = vmatmul.mubr.bf16.gmra.mrb[0].mxu0 %v2081
    %v2235 = vpop.f32.mrb[0].mxu0
    %v2236 = vadd.f32 0.0, %v2235
    %v2237 = vpop.f32.mrb[0].mxu0
    %v2238 = vpop.f32.mrb[0].mxu0
    %v2239 = vadd.f32 0.0, %v2238
    %v2240 = vpop.f32.mrb[0].mxu0
    %2241 = vmatprep.mubr.bf16.mxu0 0
    %2242 = vmatmul.mubr.bf16.gmra.mrb[0].mxu0 %v2084
    %v2243 = vpop.f32.mrb[0].mxu0
    %v2244 = vadd.f32 0.0, %v2243
    %v2245 = vpop.f32.mrb[0].mxu0
    %v2246 = vpop.f32.mrb[0].mxu0
    %v2247 = vadd.f32 0.0, %v2246
    %v2248 = vpop.f32.mrb[0].mxu0
    %2249 = vmatprep.mubr.bf16.mxu0 0
    %2250 = vmatmul.mubr.bf16.gmra.mrb[0].mxu0 %v2087
    %v2251 = vpop.f32.mrb[0].mxu0
    %v2252 = vadd.f32 0.0, %v2251
    %v2253 = vpop.f32.mrb[0].mxu0
    %v2254 = vpop.f32.mrb[0].mxu0
    %v2255 = vadd.f32 0.0, %v2254
    %v2256 = vpop.f32.mrb[0].mxu0
    %2257 = vmatprep.mubr.bf16.mxu0 0
    %2258 = vmatmul.mubr.bf16.gmra.mrb[0].mxu0 %v2090
    %v2259 = vpop.f32.mrb[0].mxu0
    %v2260 = vadd.f32 0.0, %v2259
    %v2261 = vpop.f32.mrb[0].mxu0
    %v2262 = vpop.f32.mrb[0].mxu0
    %v2263 = vadd.f32 0.0, %v2262
    %v2264 = vpop.f32.mrb[0].mxu0
    %2265 = vmatprep.mubr.bf16.mxu0 0
    %2266 = vmatmul.mubr.bf16.gmra.mrb[0].mxu0 %v2093
    %v2267 = vpop.f32.mrb[0].mxu0
    %v2268 = vadd.f32 0.0, %v2267
    %v2269 = vpop.f32.mrb[0].mxu0
    %v2270 = vpop.f32.mrb[0].mxu0
    %v2271 = vadd.f32 0.0, %v2270
    %v2272 = vpop.f32.mrb[0].mxu0
    %2273 = vmatprep.mubr.bf16.mxu0 0
    %2274 = vmatmul.mubr.bf16.gmra.mrb[0].mxu0 %v2096
    %v2275 = vpop.f32.mrb[0].mxu0
    %v2276 = vadd.f32 0.0, %v2275
    %v2277 = vpop.f32.mrb[0].mxu0
    %v2278 = vpop.f32.mrb[0].mxu0
    %v2279 = vadd.f32 0.0, %v2278
    %v2280 = vpop.f32.mrb[0].mxu0
    %2281 = vmatprep.mubr.bf16.mxu0 0
    %2282 = vmatmul.mubr.bf16.gmra.mrb[0].mxu0 %v2099
    %v2283 = vpop.f32.mrb[0].mxu0
    %v2284 = vadd.f32 0.0, %v2283
    %v2285 = vpop.f32.mrb[0].mxu0
    %v2286 = vpop.f32.mrb[0].mxu0
    %v2287 = vadd.f32 0.0, %v2286
    %v2288 = vpop.f32.mrb[0].mxu0
    %2289 = vmatprep.mubr.bf16.mxu0 0
    %2290 = vmatmul.mubr.bf16.gmra.mrb[0].mxu0 %v2102
    %v2291 = vpop.f32.mrb[0].mxu0
    %v2292 = vadd.f32 0.0, %v2291
    %v2293 = vpop.f32.mrb[0].mxu0
    %v2294 = vpop.f32.mrb[0].mxu0
    %v2295 = vadd.f32 0.0, %v2294
    %v2296 = vpop.f32.mrb[0].mxu0
    %2297 = vmatprep.mubr.bf16.mxu0 0
    %2298 = vmatmul.mubr.bf16.gmra.mrb[0].mxu0 %v2105
    %v2299 = vpop.f32.mrb[0].mxu0
    %v2300 = vadd.f32 0.0, %v2299
    %v2301 = vpop.f32.mrb[0].mxu0
    %v2302 = vpop.f32.mrb[0].mxu0
    %v2303 = vadd.f32 0.0, %v2302
    %v2304 = vpop.f32.mrb[0].mxu0
    %2305 = vmatprep.mubr.bf16.mxu0 0
    %2306 = vmatmul.mubr.bf16.gmra.mrb[0].mxu0 %v2108
    %v2307 = vpop.f32.mrb[0].mxu0
    %v2308 = vadd.f32 0.0, %v2307
    %v2309 = vpop.f32.mrb[0].mxu0
    %v2310 = vpop.f32.mrb[0].mxu0
    %v2311 = vadd.f32 0.0, %v2310
    %v2312 = vpop.f32.mrb[0].mxu0
    %2313 = vmatprep.mubr.bf16.mxu0 0
    %2314 = vmatmul.mubr.bf16.gmra.mrb[0].mxu0 %v2111
    %v2315 = vpop.f32.mrb[0].mxu0
    %v2316 = vadd.f32 0.0, %v2315
    %v2317 = vpop.f32.mrb[0].mxu0
    %v2318 = vpop.f32.mrb[0].mxu0
    %v2319 = vadd.f32 0.0, %v2318
    %v2320 = vpop.f32.mrb[0].mxu0
    %2321 = vmatprep.mubr.bf16.mxu0 0
    %2322 = vmatmul.mubr.bf16.gmra.mrb[0].mxu0 %v2114
    %v2323 = vpop.f32.mrb[0].mxu0
    %v2324 = vadd.f32 0.0, %v2323
    %v2325 = vpop.f32.mrb[0].mxu0
    %v2326 = vpop.f32.mrb[0].mxu0
    %v2327 = vadd.f32 0.0, %v2326
    %v2328 = vpop.f32.mrb[0].mxu0
    %2329 = vmatprep.mubr.bf16.mxu0 0
    %2330 = vmatmul.mubr.bf16.gmra.mrb[0].mxu0 %v2117
    %v2331 = vpop.f32.mrb[0].mxu0
    %v2332 = vadd.f32 0.0, %v2331
    %v2333 = vpop.f32.mrb[0].mxu0
    %v2334 = vpop.f32.mrb[0].mxu0
    %v2335 = vadd.f32 0.0, %v2334
    %v2336 = vpop.f32.mrb[0].mxu0
    %2337 = vmatprep.mubr.bf16.mxu0 0
    %2338 = vmatmul.mubr.bf16.gmra.mrb[0].mxu0 %v2120
    %v2339 = vpop.f32.mrb[0].mxu0
    %v2340 = vadd.f32 0.0, %v2339
    %v2341 = vpop.f32.mrb[0].mxu0
    %v2342 = vpop.f32.mrb[0].mxu0
    %v2343 = vadd.f32 0.0, %v2342
    %v2344 = vpop.f32.mrb[0].mxu0
    %2345 = vmatprep.mubr.bf16.mxu0 0
    %2346 = vmatmul.mubr.bf16.gmra.mrb[0].mxu0 %v2123
    %v2347 = vpop.f32.mrb[0].mxu0
    %v2348 = vadd.f32 0.0, %v2347
    %v2349 = vpop.f32.mrb[0].mxu0
    %v2350 = vpop.f32.mrb[0].mxu0
    %v2351 = vadd.f32 0.0, %v2350
    %v2352 = vpop.f32.mrb[0].mxu0
    %2353 = vmatprep.mubr.bf16.mxu0 0
    %2354 = vmatmul.mubr.bf16.gmra.mrb[0].mxu0 %v2126
    %v2355 = vpop.f32.mrb[0].mxu0
    %v2356 = vadd.f32 0.0, %v2355
    %v2357 = vpop.f32.mrb[0].mxu0
    %v2358 = vpop.f32.mrb[0].mxu0
    %v2359 = vadd.f32 0.0, %v2358
    %v2360 = vpop.f32.mrb[0].mxu0
    %2361 = vmatprep.mubr.bf16.mxu0 0
    %2362 = vmatmul.mubr.bf16.gmra.mrb[0].mxu0 %v2129
    %v2363 = vpop.f32.mrb[0].mxu0
    %v2364 = vadd.f32 0.0, %v2363
    %v2365 = vpop.f32.mrb[0].mxu0
    %v2366 = vpop.f32.mrb[0].mxu0
    %v2367 = vadd.f32 0.0, %v2366
    %v2368 = vpop.f32.mrb[0].mxu0
    %2369 = vmatprep.mubr.bf16.mxu0 0
    %2370 = vmatmul.mubr.bf16.gmra.mrb[0].mxu0 %v2132
    %v2371 = vpop.f32.mrb[0].mxu0
    %v2372 = vadd.f32 0.0, %v2371
    %v2373 = vpop.f32.mrb[0].mxu0
    %v2374 = vpop.f32.mrb[0].mxu0
    %v2375 = vadd.f32 0.0, %v2374
    %v2376 = vpop.f32.mrb[0].mxu0
    %2377 = vmatprep.mubr.bf16.mxu0 0
    %2378 = vmatmul.mubr.bf16.gmra.mrb[0].mxu0 %v2135
    %v2379 = vpop.f32.mrb[0].mxu0
    %v2380 = vadd.f32 0.0, %v2379
    %v2381 = vpop.f32.mrb[0].mxu0
    %v2382 = vpop.f32.mrb[0].mxu0
    %v2383 = vadd.f32 0.0, %v2382
    %v2384 = vpop.f32.mrb[0].mxu0
    %2385 = vmatprep.mubr.bf16.mxu0 0
    %2386 = vmatmul.mubr.bf16.gmra.mrb[0].mxu0 %v2138
    %v2387 = vpop.f32.mrb[0].mxu0
    %v2388 = vadd.f32 0.0, %v2387
    %v2389 = vpop.f32.mrb[0].mxu0
    %v2390 = vpop.f32.mrb[0].mxu0
    %v2391 = vadd.f32 0.0, %v2390
    %v2392 = vpop.f32.mrb[0].mxu0
    %2393 = vmatprep.mubr.bf16.mxu0 0
    %2394 = vmatmul.mubr.bf16.gmra.mrb[0].mxu0 %v2141
    %v2395 = vpop.f32.mrb[0].mxu0
    %v2396 = vadd.f32 0.0, %v2395
    %v2397 = vpop.f32.mrb[0].mxu0
    %v2398 = vpop.f32.mrb[0].mxu0
    %v2399 = vadd.f32 0.0, %v2398
    %v2400 = vpop.f32.mrb[0].mxu0
    %2401 = vmatprep.mubr.bf16.mxu0 0
    %2402 = vmatmul.mubr.bf16.gmra.mrb[0].mxu0 %v2144
    %v2403 = vpop.f32.mrb[0].mxu0
    %v2404 = vadd.f32 0.0, %v2403
    %v2405 = vpop.f32.mrb[0].mxu0
    %v2406 = vpop.f32.mrb[0].mxu0
    %v2407 = vadd.f32 0.0, %v2406
    %v2408 = vpop.f32.mrb[0].mxu0
    %2409 = vmatprep.mubr.bf16.mxu0 0
    %2410 = vmatmul.mubr.bf16.gmra.mrb[0].mxu0 %v2147
    %v2411 = vpop.f32.mrb[0].mxu0
    %v2412 = vadd.f32 0.0, %v2411
    %v2413 = vpop.f32.mrb[0].mxu0
    %v2414 = vpop.f32.mrb[0].mxu0
    %v2415 = vadd.f32 0.0, %v2414
    %v2416 = vpop.f32.mrb[0].mxu0
    %2417 = vmatprep.mubr.bf16.mxu0 0
    %2418 = vmatmul.mubr.bf16.gmra.mrb[0].mxu0 %v2150
    %v2419 = vpop.f32.mrb[0].mxu0
    %v2420 = vadd.f32 0.0, %v2419
    %v2421 = vpop.f32.mrb[0].mxu0
    %v2422 = vpop.f32.mrb[0].mxu0
    %v2423 = vadd.f32 0.0, %v2422
    %v2424 = vpop.f32.mrb[0].mxu0
    %2425 = vmatprep.mubr.bf16.mxu0 0
    %2426 = vmatmul.mubr.bf16.gmra.mrb[0].mxu0 %v2153
    %v2427 = vpop.f32.mrb[0].mxu0
    %v2428 = vadd.f32 0.0, %v2427
    %v2429 = vpop.f32.mrb[0].mxu0
    %v2430 = vpop.f32.mrb[0].mxu0
    %v2431 = vadd.f32 0.0, %v2430
    %v2432 = vpop.f32.mrb[0].mxu0
    %2433 = vmatprep.mubr.bf16.mxu0 0
    %2434 = vmatmul.mubr.bf16.gmra.mrb[0].mxu0 %v2156
    %v2435 = vpop.f32.mrb[0].mxu0
    %v2436 = vadd.f32 0.0, %v2435
    %v2437 = vpop.f32.mrb[0].mxu0
    %v2438 = vpop.f32.mrb[0].mxu0
    %v2439 = vadd.f32 0.0, %v2438
    %v2440 = vpop.f32.mrb[0].mxu0
    %2441 = vmatprep.mubr.bf16.mxu0 0
    %2442 = vmatmul.mubr.bf16.gmra.mrb[0].mxu0 %v2159
    %v2443 = vpop.f32.mrb[0].mxu0
    %v2444 = vadd.f32 0.0, %v2443
    %v2445 = vpop.f32.mrb[0].mxu0
    %v2446 = vpop.f32.mrb[0].mxu0
    %v2447 = vadd.f32 0.0, %v2446
    %v2448 = vpop.f32.mrb[0].mxu0
    %2449 = vdwg.mxu0
    %2450 = vst [vmem:[#allocation2] sm:$0xff] %v2196
    %2451 = vst [vmem:[#allocation2 + $0x8] sm:$0xff] %v2199
    %2452 = vst [vmem:[#allocation2 + $0x10] sm:$0xff] %v2204
    %2453 = vst [vmem:[#allocation2 + $0x18] sm:$0xff] %v2207
    %2454 = vst [vmem:[#allocation2 + $0x20] sm:$0xff] %v2212
    %2455 = vst [vmem:[#allocation2 + $0x28] sm:$0xff] %v2215
    %2456 = vst [vmem:[#allocation2 + $0x30] sm:$0xff] %v2220
    %2457 = vst [vmem:[#allocation2 + $0x38] sm:$0xff] %v2223
    %2458 = vst [vmem:[#allocation2 + $0x40] sm:$0xff] %v2228
    %2459 = vst [vmem:[#allocation2 + $0x48] sm:$0xff] %v2231
    %2460 = vst [vmem:[#allocation2 + $0x50] sm:$0xff] %v2236
    %2461 = vst [vmem:[#allocation2 + $0x58] sm:$0xff] %v2239
    %2462 = vst [vmem:[#allocation2 + $0x60] sm:$0xff] %v2244
    %2463 = vst [vmem:[#allocation2 + $0x68] sm:$0xff] %v2247
    %2464 = vst [vmem:[#allocation2 + $0x70] sm:$0xff] %v2252
    %2465 = vst [vmem:[#allocation2 + $0x78] sm:$0xff] %v2255
    %2466 = vst [vmem:[#allocation2 + $0x80] sm:$0xff] %v2260
    %2467 = vst [vmem:[#allocation2 + $0x88] sm:$0xff] %v2263
    %2468 = vst [vmem:[#allocation2 + $0x90] sm:$0xff] %v2268
    %2469 = vst [vmem:[#allocation2 + $0x98] sm:$0xff] %v2271
    %2470 = vst [vmem:[#allocation2 + $0xa0] sm:$0xff] %v2276
    %2471 = vst [vmem:[#allocation2 + $0xa8] sm:$0xff] %v2279
    %2472 = vst [vmem:[#allocation2 + $0xb0] sm:$0xff] %v2284
    %2473 = vst [vmem:[#allocation2 + $0xb8] sm:$0xff] %v2287
    %2474 = vst [vmem:[#allocation2 + $0xc0] sm:$0xff] %v2292
    %2475 = vst [vmem:[#allocation2 + $0xc8] sm:$0xff] %v2295
    %2476 = vst [vmem:[#allocation2 + $0xd0] sm:$0xff] %v2300
    %2477 = vst [vmem:[#allocation2 + $0xd8] sm:$0xff] %v2303
    %2478 = vst [vmem:[#allocation2 + $0xe0] sm:$0xff] %v2308
    %2479 = vst [vmem:[#allocation2 + $0xe8] sm:$0xff] %v2311
    %2480 = vst [vmem:[#allocation2 + $0xf0] sm:$0xff] %v2316
    %2481 = vst [vmem:[#allocation2 + $0xf8] sm:$0xff] %v2319
    %2482 = vst [vmem:[#allocation2 + $0x100] sm:$0xff] %v2324
    %2483 = vst [vmem:[#allocation2 + $0x108] sm:$0xff] %v2327
    %2484 = vst [vmem:[#allocation2 + $0x110] sm:$0xff] %v2332
    %2485 = vst [vmem:[#allocation2 + $0x118] sm:$0xff] %v2335
    %2486 = vst [vmem:[#allocation2 + $0x120] sm:$0xff] %v2340
    %2487 = vst [vmem:[#allocation2 + $0x128] sm:$0xff] %v2343
    %2488 = vst [vmem:[#allocation2 + $0x130] sm:$0xff] %v2348
    %2489 = vst [vmem:[#allocation2 + $0x138] sm:$0xff] %v2351
    %2490 = vst [vmem:[#allocation2 + $0x140] sm:$0xff] %v2356
    %2491 = vst [vmem:[#allocation2 + $0x148] sm:$0xff] %v2359
    %2492 = vst [vmem:[#allocation2 + $0x150] sm:$0xff] %v2364
    %2493 = vst [vmem:[#allocation2 + $0x158] sm:$0xff] %v2367
    %2494 = vst [vmem:[#allocation2 + $0x160] sm:$0xff] %v2372
    %2495 = vst [vmem:[#allocation2 + $0x168] sm:$0xff] %v2375
    %2496 = vst [vmem:[#allocation2 + $0x170] sm:$0xff] %v2380
    %2497 = vst [vmem:[#allocation2 + $0x178] sm:$0xff] %v2383
    %2498 = vst [vmem:[#allocation2 + $0x180] sm:$0xff] %v2388
    %2499 = vst [vmem:[#allocation2 + $0x188] sm:$0xff] %v2391
    %2500 = vst [vmem:[#allocation2 + $0x190] sm:$0xff] %v2396
    %2501 = vst [vmem:[#allocation2 + $0x198] sm:$0xff] %v2399
    %2502 = vst [vmem:[#allocation2 + $0x1a0] sm:$0xff] %v2404
    %2503 = vst [vmem:[#allocation2 + $0x1a8] sm:$0xff] %v2407
    %2504 = vst [vmem:[#allocation2 + $0x1b0] sm:$0xff] %v2412
    %2505 = vst [vmem:[#allocation2 + $0x1b8] sm:$0xff] %v2415
    %2506 = vst [vmem:[#allocation2 + $0x1c0] sm:$0xff] %v2420
    %2507 = vst [vmem:[#allocation2 + $0x1c8] sm:$0xff] %v2423
    %2508 = vst [vmem:[#allocation2 + $0x1d0] sm:$0xff] %v2428
    %2509 = vst [vmem:[#allocation2 + $0x1d8] sm:$0xff] %v2431
    %2510 = vst [vmem:[#allocation2 + $0x1e0] sm:$0xff] %v2436
    %2511 = vst [vmem:[#allocation2 + $0x1e8] sm:$0xff] %v2439
    %2512 = vst [vmem:[#allocation2 + $0x1f0] sm:$0xff] %v2444
    %2513 = vst [vmem:[#allocation2 + $0x1f8] sm:$0xff] %v2447
    %v2514 = vld [vmem:[#allocation2] sm:$0xff]
    %v2515 = vld [vmem:[#allocation2 + $0x8] sm:$0xff]
    %v2516 = vld [vmem:[#allocation2 + $0x10] sm:$0xff]
    %v2517 = vld [vmem:[#allocation2 + $0x18] sm:$0xff]
    %v2518 = vld [vmem:[#allocation2 + $0x20] sm:$0xff]
    %v2519 = vld [vmem:[#allocation2 + $0x28] sm:$0xff]
    %v2520 = vld [vmem:[#allocation2 + $0x30] sm:$0xff]
    %v2521 = vld [vmem:[#allocation2 + $0x38] sm:$0xff]
    %v2522 = vpack.c.bf16 %v2515, %v2514
    %v2523 = vpack.c.bf16 %v2517, %v2516
    %v2524 = vpack.c.bf16 %v2519, %v2518
    %v2525 = vpack.c.bf16 %v2521, %v2520
    %2526 = vst [vmem:[#allocation3] sm:$0xff] %v2522
    %2527 = vst [vmem:[#allocation3 + $0x40] sm:$0xff] %v2523
    %2528 = vst [vmem:[#allocation3 + $0x80] sm:$0xff] %v2524
    %2529 = vst [vmem:[#allocation3 + $0xc0] sm:$0xff] %v2525
    %v2530 = vld [vmem:[#allocation2 + $0x40] sm:$0xff]
    %v2531 = vld [vmem:[#allocation2 + $0x48] sm:$0xff]
    %v2532 = vld [vmem:[#allocation2 + $0x50] sm:$0xff]
    %v2533 = vld [vmem:[#allocation2 + $0x58] sm:$0xff]
    %v2534 = vld [vmem:[#allocation2 + $0x60] sm:$0xff]
    %v2535 = vld [vmem:[#allocation2 + $0x68] sm:$0xff]
    %v2536 = vld [vmem:[#allocation2 + $0x70] sm:$0xff]
    %v2537 = vld [vmem:[#allocation2 + $0x78] sm:$0xff]
    %v2538 = vpack.c.bf16 %v2531, %v2530
    %v2539 = vpack.c.bf16 %v2533, %v2532
    %v2540 = vpack.c.bf16 %v2535, %v2534
    %v2541 = vpack.c.bf16 %v2537, %v2536
    %2542 = vst [vmem:[#allocation3 + $0x8] sm:$0xff] %v2538
    %2543 = vst [vmem:[#allocation3 + $0x48] sm:$0xff] %v2539
    %2544 = vst [vmem:[#allocation3 + $0x88] sm:$0xff] %v2540
    %2545 = vst [vmem:[#allocation3 + $0xc8] sm:$0xff] %v2541
    %v2546 = vld [vmem:[#allocation2 + $0x80] sm:$0xff]
    %v2547 = vld [vmem:[#allocation2 + $0x88] sm:$0xff]
    %v2548 = vld [vmem:[#allocation2 + $0x90] sm:$0xff]
    %v2549 = vld [vmem:[#allocation2 + $0x98] sm:$0xff]
    %v2550 = vld [vmem:[#allocation2 + $0xa0] sm:$0xff]
    %v2551 = vld [vmem:[#allocation2 + $0xa8] sm:$0xff]
    %v2552 = vld [vmem:[#allocation2 + $0xb0] sm:$0xff]
    %v2553 = vld [vmem:[#allocation2 + $0xb8] sm:$0xff]
    %v2554 = vpack.c.bf16 %v2547, %v2546
    %v2555 = vpack.c.bf16 %v2549, %v2548
    %v2556 = vpack.c.bf16 %v2551, %v2550
    %v2557 = vpack.c.bf16 %v2553, %v2552
    %2558 = vst [vmem:[#allocation3 + $0x10] sm:$0xff] %v2554
    %2559 = vst [vmem:[#allocation3 + $0x50] sm:$0xff] %v2555
    %2560 = vst [vmem:[#allocation3 + $0x90] sm:$0xff] %v2556
    %2561 = vst [vmem:[#allocation3 + $0xd0] sm:$0xff] %v2557
    %v2562 = vld [vmem:[#allocation2 + $0xc0] sm:$0xff]
    %v2563 = vld [vmem:[#allocation2 + $0xc8] sm:$0xff]
    %v2564 = vld [vmem:[#allocation2 + $0xd0] sm:$0xff]
    %v2565 = vld [vmem:[#allocation2 + $0xd8] sm:$0xff]
    %v2566 = vld [vmem:[#allocation2 + $0xe0] sm:$0xff]
    %v2567 = vld [vmem:[#allocation2 + $0xe8] sm:$0xff]
    %v2568 = vld [vmem:[#allocation2 + $0xf0] sm:$0xff]
    %v2569 = vld [vmem:[#allocation2 + $0xf8] sm:$0xff]
    %v2570 = vpack.c.bf16 %v2563, %v2562
    %v2571 = vpack.c.bf16 %v2565, %v2564
    %v2572 = vpack.c.bf16 %v2567, %v2566
    %v2573 = vpack.c.bf16 %v2569, %v2568
    %2574 = vst [vmem:[#allocation3 + $0x18] sm:$0xff] %v2570
    %2575 = vst [vmem:[#allocation3 + $0x58] sm:$0xff] %v2571
    %2576 = vst [vmem:[#allocation3 + $0x98] sm:$0xff] %v2572
    %2577 = vst [vmem:[#allocation3 + $0xd8] sm:$0xff] %v2573
    %v2578 = vld [vmem:[#allocation2 + $0x100] sm:$0xff]
    %v2579 = vld [vmem:[#allocation2 + $0x108] sm:$0xff]
    %v2580 = vld [vmem:[#allocation2 + $0x110] sm:$0xff]
    %v2581 = vld [vmem:[#allocation2 + $0x118] sm:$0xff]
    %v2582 = vld [vmem:[#allocation2 + $0x120] sm:$0xff]
    %v2583 = vld [vmem:[#allocation2 + $0x128] sm:$0xff]
    %v2584 = vld [vmem:[#allocation2 + $0x130] sm:$0xff]
    %v2585 = vld [vmem:[#allocation2 + $0x138] sm:$0xff]
    %v2586 = vpack.c.bf16 %v2579, %v2578
    %v2587 = vpack.c.bf16 %v2581, %v2580
    %v2588 = vpack.c.bf16 %v2583, %v2582
    %v2589 = vpack.c.bf16 %v2585, %v2584
    %2590 = vst [vmem:[#allocation3 + $0x20] sm:$0xff] %v2586
    %2591 = vst [vmem:[#allocation3 + $0x60] sm:$0xff] %v2587
    %2592 = vst [vmem:[#allocation3 + $0xa0] sm:$0xff] %v2588
    %2593 = vst [vmem:[#allocation3 + $0xe0] sm:$0xff] %v2589
    %v2594 = vld [vmem:[#allocation2 + $0x140] sm:$0xff]
    %v2595 = vld [vmem:[#allocation2 + $0x148] sm:$0xff]
    %v2596 = vld [vmem:[#allocation2 + $0x150] sm:$0xff]
    %v2597 = vld [vmem:[#allocation2 + $0x158] sm:$0xff]
    %v2598 = vld [vmem:[#allocation2 + $0x160] sm:$0xff]
    %v2599 = vld [vmem:[#allocation2 + $0x168] sm:$0xff]
    %v2600 = vld [vmem:[#allocation2 + $0x170] sm:$0xff]
    %v2601 = vld [vmem:[#allocation2 + $0x178] sm:$0xff]
    %v2602 = vpack.c.bf16 %v2595, %v2594
    %v2603 = vpack.c.bf16 %v2597, %v2596
    %v2604 = vpack.c.bf16 %v2599, %v2598
    %v2605 = vpack.c.bf16 %v2601, %v2600
    %2606 = vst [vmem:[#allocation3 + $0x28] sm:$0xff] %v2602
    %2607 = vst [vmem:[#allocation3 + $0x68] sm:$0xff] %v2603
    %2608 = vst [vmem:[#allocation3 + $0xa8] sm:$0xff] %v2604
    %2609 = vst [vmem:[#allocation3 + $0xe8] sm:$0xff] %v2605
    %v2610 = vld [vmem:[#allocation2 + $0x180] sm:$0xff]
    %v2611 = vld [vmem:[#allocation2 + $0x188] sm:$0xff]
    %v2612 = vld [vmem:[#allocation2 + $0x190] sm:$0xff]
    %v2613 = vld [vmem:[#allocation2 + $0x198] sm:$0xff]
    %v2614 = vld [vmem:[#allocation2 + $0x1a0] sm:$0xff]
    %v2615 = vld [vmem:[#allocation2 + $0x1a8] sm:$0xff]
    %v2616 = vld [vmem:[#allocation2 + $0x1b0] sm:$0xff]
    %v2617 = vld [vmem:[#allocation2 + $0x1b8] sm:$0xff]
    %v2618 = vpack.c.bf16 %v2611, %v2610
    %v2619 = vpack.c.bf16 %v2613, %v2612
    %v2620 = vpack.c.bf16 %v2615, %v2614
    %v2621 = vpack.c.bf16 %v2617, %v2616
    %2622 = vst [vmem:[#allocation3 + $0x30] sm:$0xff] %v2618
    %2623 = vst [vmem:[#allocation3 + $0x70] sm:$0xff] %v2619
    %2624 = vst [vmem:[#allocation3 + $0xb0] sm:$0xff] %v2620
    %2625 = vst [vmem:[#allocation3 + $0xf0] sm:$0xff] %v2621
    %v2626 = vld [vmem:[#allocation2 + $0x1c0] sm:$0xff]
    %v2627 = vld [vmem:[#allocation2 + $0x1c8] sm:$0xff]
    %v2628 = vld [vmem:[#allocation2 + $0x1d0] sm:$0xff]
    %v2629 = vld [vmem:[#allocation2 + $0x1d8] sm:$0xff]
    %v2630 = vld [vmem:[#allocation2 + $0x1e0] sm:$0xff]
    %v2631 = vld [vmem:[#allocation2 + $0x1e8] sm:$0xff]
    %v2632 = vld [vmem:[#allocation2 + $0x1f0] sm:$0xff]
    %v2633 = vld [vmem:[#allocation2 + $0x1f8] sm:$0xff]
    %v2634 = vpack.c.bf16 %v2627, %v2626
    %v2635 = vpack.c.bf16 %v2629, %v2628
    %v2636 = vpack.c.bf16 %v2631, %v2630
    %v2637 = vpack.c.bf16 %v2633, %v2632
    %2638 = vst [vmem:[#allocation3 + $0x38] sm:$0xff] %v2634
    %2639 = vst [vmem:[#allocation3 + $0x78] sm:$0xff] %v2635
    %2640 = vst [vmem:[#allocation3 + $0xb8] sm:$0xff] %v2636
    %2641 = vst [vmem:[#allocation3 + $0xf8] sm:$0xff] %v2637
    %v2642 = vld [vmem:[#allocation3] sm:$0xff]
    %v2643 = vld [vmem:[#allocation3 + $0x8] sm:$0xff]
    %v2644 = vld [vmem:[#allocation3 + $0x10] sm:$0xff]
    %v2645 = vld [vmem:[#allocation3 + $0x18] sm:$0xff]
    %v2646 = vld [vmem:[#allocation3 + $0x20] sm:$0xff]
    %v2647 = vld [vmem:[#allocation3 + $0x28] sm:$0xff]
    %v2648 = vld [vmem:[#allocation3 + $0x30] sm:$0xff]
    %v2649 = vld [vmem:[#allocation3 + $0x38] sm:$0xff]
    %v2650 = vld [vmem:[#allocation3 + $0x40] sm:$0xff]
    %v2651 = vld [vmem:[#allocation3 + $0x48] sm:$0xff]
    %v2652 = vld [vmem:[#allocation3 + $0x50] sm:$0xff]
    %v2653 = vld [vmem:[#allocation3 + $0x58] sm:$0xff]
    %v2654 = vld [vmem:[#allocation3 + $0x60] sm:$0xff]
    %v2655 = vld [vmem:[#allocation3 + $0x68] sm:$0xff]
    %v2656 = vld [vmem:[#allocation3 + $0x70] sm:$0xff]
    %v2657 = vld [vmem:[#allocation3 + $0x78] sm:$0xff]
    %v2658 = vld [vmem:[#allocation3 + $0x80] sm:$0xff]
    %v2659 = vld [vmem:[#allocation3 + $0x88] sm:$0xff]
    %v2660 = vld [vmem:[#allocation3 + $0x90] sm:$0xff]
    %v2661 = vld [vmem:[#allocation3 + $0x98] sm:$0xff]
    %v2662 = vld [vmem:[#allocation3 + $0xa0] sm:$0xff]
    %v2663 = vld [vmem:[#allocation3 + $0xa8] sm:$0xff]
    %v2664 = vld [vmem:[#allocation3 + $0xb0] sm:$0xff]
    %v2665 = vld [vmem:[#allocation3 + $0xb8] sm:$0xff]
    %v2666 = vld [vmem:[#allocation3 + $0xc0] sm:$0xff]
    %v2667 = vld [vmem:[#allocation3 + $0xc8] sm:$0xff]
    %v2668 = vld [vmem:[#allocation3 + $0xd0] sm:$0xff]
    %v2669 = vld [vmem:[#allocation3 + $0xd8] sm:$0xff]
    %v2670 = vld [vmem:[#allocation3 + $0xe0] sm:$0xff]
    %v2671 = vld [vmem:[#allocation3 + $0xe8] sm:$0xff]
    %v2672 = vld [vmem:[#allocation3 + $0xf0] sm:$0xff]
    %v2673 = vld [vmem:[#allocation3 + $0xf8] sm:$0xff]
    %v2674 = vld [vmem:[%s5] sm:$0xf]
    %v2675 = vld [vmem:[%s5 + $0x4] sm:$0xf]
    %v2676 = vld [vmem:[%s5 + $0x8] sm:$0xf]
    %v2677 = vld [vmem:[%s5 + $0xc] sm:$0xf]
    %v2678 = vld [vmem:[%s5 + $0x10] sm:$0xf]
    %v2679 = vld [vmem:[%s5 + $0x14] sm:$0xf]
    %v2680 = vld [vmem:[%s5 + $0x18] sm:$0xf]
    %v2681 = vld [vmem:[%s5 + $0x1c] sm:$0xf]
    %v2682 = vld [vmem:[%s5 + $0x20] sm:$0xf]
    %v2683 = vld [vmem:[%s5 + $0x24] sm:$0xf]
    %v2684 = vld [vmem:[%s5 + $0x28] sm:$0xf]
    %v2685 = vld [vmem:[%s5 + $0x2c] sm:$0xf]
    %v2686 = vld [vmem:[%s5 + $0x30] sm:$0xf]
    %v2687 = vld [vmem:[%s5 + $0x34] sm:$0xf]
    %v2688 = vld [vmem:[%s5 + $0x38] sm:$0xf]
    %v2689 = vld [vmem:[%s5 + $0x3c] sm:$0xf]
    %v2690 = vld [vmem:[%s5 + $0x40] sm:$0xf]
    %v2691 = vld [vmem:[%s5 + $0x44] sm:$0xf]
    %v2692 = vld [vmem:[%s5 + $0x48] sm:$0xf]
    %v2693 = vld [vmem:[%s5 + $0x4c] sm:$0xf]
    %v2694 = vld [vmem:[%s5 + $0x50] sm:$0xf]
    %v2695 = vld [vmem:[%s5 + $0x54] sm:$0xf]
    %v2696 = vld [vmem:[%s5 + $0x58] sm:$0xf]
    %v2697 = vld [vmem:[%s5 + $0x5c] sm:$0xf]
    %v2698 = vld [vmem:[%s5 + $0x60] sm:$0xf]
    %v2699 = vld [vmem:[%s5 + $0x64] sm:$0xf]
    %v2700 = vld [vmem:[%s5 + $0x68] sm:$0xf]
    %v2701 = vld [vmem:[%s5 + $0x6c] sm:$0xf]
    %v2702 = vld [vmem:[%s5 + $0x70] sm:$0xf]
    %v2703 = vld [vmem:[%s5 + $0x74] sm:$0xf]
    %v2704 = vld [vmem:[%s5 + $0x78] sm:$0xf]
    %v2705 = vld [vmem:[%s5 + $0x7c] sm:$0xf]
    %v2706 = vld [vmem:[%s5 + $0x80] sm:$0xf]
    %v2707 = vld [vmem:[%s5 + $0x84] sm:$0xf]
    %v2708 = vld [vmem:[%s5 + $0x88] sm:$0xf]
    %v2709 = vld [vmem:[%s5 + $0x8c] sm:$0xf]
    %v2710 = vld [vmem:[%s5 + $0x90] sm:$0xf]
    %v2711 = vld [vmem:[%s5 + $0x94] sm:$0xf]
    %v2712 = vld [vmem:[%s5 + $0x98] sm:$0xf]
    %v2713 = vld [vmem:[%s5 + $0x9c] sm:$0xf]
    %v2714 = vld [vmem:[%s5 + $0xa0] sm:$0xf]
    %v2715 = vld [vmem:[%s5 + $0xa4] sm:$0xf]
    %v2716 = vld [vmem:[%s5 + $0xa8] sm:$0xf]
    %v2717 = vld [vmem:[%s5 + $0xac] sm:$0xf]
    %v2718 = vld [vmem:[%s5 + $0xb0] sm:$0xf]
    %v2719 = vld [vmem:[%s5 + $0xb4] sm:$0xf]
    %v2720 = vld [vmem:[%s5 + $0xb8] sm:$0xf]
    %v2721 = vld [vmem:[%s5 + $0xbc] sm:$0xf]
    %v2722 = vld [vmem:[%s5 + $0xc0] sm:$0xf]
    %v2723 = vld [vmem:[%s5 + $0xc4] sm:$0xf]
    %v2724 = vld [vmem:[%s5 + $0xc8] sm:$0xf]
    %v2725 = vld [vmem:[%s5 + $0xcc] sm:$0xf]
    %v2726 = vld [vmem:[%s5 + $0xd0] sm:$0xf]
    %v2727 = vld [vmem:[%s5 + $0xd4] sm:$0xf]
    %v2728 = vld [vmem:[%s5 + $0xd8] sm:$0xf]
    %v2729 = vld [vmem:[%s5 + $0xdc] sm:$0xf]
    %v2730 = vld [vmem:[%s5 + $0xe0] sm:$0xf]
    %v2731 = vld [vmem:[%s5 + $0xe4] sm:$0xf]
    %v2732 = vld [vmem:[%s5 + $0xe8] sm:$0xf]
    %v2733 = vld [vmem:[%s5 + $0xec] sm:$0xf]
    %v2734 = vld [vmem:[%s5 + $0xf0] sm:$0xf]
    %v2735 = vld [vmem:[%s5 + $0xf4] sm:$0xf]
    %v2736 = vld [vmem:[%s5 + $0xf8] sm:$0xf]
    %v2737 = vld [vmem:[%s5 + $0xfc] sm:$0xf]
    %v2738 = vld [vmem:[%s5 + $0x100] sm:$0xf]
    %v2739 = vld [vmem:[%s5 + $0x104] sm:$0xf]
    %v2740 = vld [vmem:[%s5 + $0x108] sm:$0xf]
    %v2741 = vld [vmem:[%s5 + $0x10c] sm:$0xf]
    %v2742 = vld [vmem:[%s5 + $0x110] sm:$0xf]
    %v2743 = vld [vmem:[%s5 + $0x114] sm:$0xf]
    %v2744 = vld [vmem:[%s5 + $0x118] sm:$0xf]
    %v2745 = vld [vmem:[%s5 + $0x11c] sm:$0xf]
    %v2746 = vld [vmem:[%s5 + $0x120] sm:$0xf]
    %v2747 = vld [vmem:[%s5 + $0x124] sm:$0xf]
    %v2748 = vld [vmem:[%s5 + $0x128] sm:$0xf]
    %v2749 = vld [vmem:[%s5 + $0x12c] sm:$0xf]
    %v2750 = vld [vmem:[%s5 + $0x130] sm:$0xf]
    %v2751 = vld [vmem:[%s5 + $0x134] sm:$0xf]
    %v2752 = vld [vmem:[%s5 + $0x138] sm:$0xf]
    %v2753 = vld [vmem:[%s5 + $0x13c] sm:$0xf]
    %v2754 = vld [vmem:[%s5 + $0x140] sm:$0xf]
    %v2755 = vld [vmem:[%s5 + $0x144] sm:$0xf]
    %v2756 = vld [vmem:[%s5 + $0x148] sm:$0xf]
    %v2757 = vld [vmem:[%s5 + $0x14c] sm:$0xf]
    %v2758 = vld [vmem:[%s5 + $0x150] sm:$0xf]
    %v2759 = vld [vmem:[%s5 + $0x154] sm:$0xf]
    %v2760 = vld [vmem:[%s5 + $0x158] sm:$0xf]
    %v2761 = vld [vmem:[%s5 + $0x15c] sm:$0xf]
    %v2762 = vld [vmem:[%s5 + $0x160] sm:$0xf]
    %v2763 = vld [vmem:[%s5 + $0x164] sm:$0xf]
    %v2764 = vld [vmem:[%s5 + $0x168] sm:$0xf]
    %v2765 = vld [vmem:[%s5 + $0x16c] sm:$0xf]
    %v2766 = vld [vmem:[%s5 + $0x170] sm:$0xf]
    %v2767 = vld [vmem:[%s5 + $0x174] sm:$0xf]
    %v2768 = vld [vmem:[%s5 + $0x178] sm:$0xf]
    %v2769 = vld [vmem:[%s5 + $0x17c] sm:$0xf]
    %v2770 = vld [vmem:[%s5 + $0x180] sm:$0xf]
    %v2771 = vld [vmem:[%s5 + $0x184] sm:$0xf]
    %v2772 = vld [vmem:[%s5 + $0x188] sm:$0xf]
    %v2773 = vld [vmem:[%s5 + $0x18c] sm:$0xf]
    %v2774 = vld [vmem:[%s5 + $0x190] sm:$0xf]
    %v2775 = vld [vmem:[%s5 + $0x194] sm:$0xf]
    %v2776 = vld [vmem:[%s5 + $0x198] sm:$0xf]
    %v2777 = vld [vmem:[%s5 + $0x19c] sm:$0xf]
    %v2778 = vld [vmem:[%s5 + $0x1a0] sm:$0xf]
    %v2779 = vld [vmem:[%s5 + $0x1a4] sm:$0xf]
    %v2780 = vld [vmem:[%s5 + $0x1a8] sm:$0xf]
    %v2781 = vld [vmem:[%s5 + $0x1ac] sm:$0xf]
    %v2782 = vld [vmem:[%s5 + $0x1b0] sm:$0xf]
    %v2783 = vld [vmem:[%s5 + $0x1b4] sm:$0xf]
    %v2784 = vld [vmem:[%s5 + $0x1b8] sm:$0xf]
    %v2785 = vld [vmem:[%s5 + $0x1bc] sm:$0xf]
    %v2786 = vld [vmem:[%s5 + $0x1c0] sm:$0xf]
    %v2787 = vld [vmem:[%s5 + $0x1c4] sm:$0xf]
    %v2788 = vld [vmem:[%s5 + $0x1c8] sm:$0xf]
    %v2789 = vld [vmem:[%s5 + $0x1cc] sm:$0xf]
    %v2790 = vld [vmem:[%s5 + $0x1d0] sm:$0xf]
    %v2791 = vld [vmem:[%s5 + $0x1d4] sm:$0xf]
    %v2792 = vld [vmem:[%s5 + $0x1d8] sm:$0xf]
    %v2793 = vld [vmem:[%s5 + $0x1dc] sm:$0xf]
    %v2794 = vld [vmem:[%s5 + $0x1e0] sm:$0xf]
    %v2795 = vld [vmem:[%s5 + $0x1e4] sm:$0xf]
    %v2796 = vld [vmem:[%s5 + $0x1e8] sm:$0xf]
    %v2797 = vld [vmem:[%s5 + $0x1ec] sm:$0xf]
    %v2798 = vld [vmem:[%s5 + $0x1f0] sm:$0xf]
    %v2799 = vld [vmem:[%s5 + $0x1f4] sm:$0xf]
    %v2800 = vld [vmem:[%s5 + $0x1f8] sm:$0xf]
    %v2801 = vld [vmem:[%s5 + $0x1fc] sm:$0xf]
    %v2802 = vld [vmem:[%s6] sm:$0xf]
    %v2803 = vld [vmem:[%s6 + $0x4] sm:$0xf]
    %v2804 = vld [vmem:[%s6 + $0x8] sm:$0xf]
    %v2805 = vld [vmem:[%s6 + $0xc] sm:$0xf]
    %v2806 = vld [vmem:[%s6 + $0x10] sm:$0xf]
    %v2807 = vld [vmem:[%s6 + $0x14] sm:$0xf]
    %v2808 = vld [vmem:[%s6 + $0x18] sm:$0xf]
    %v2809 = vld [vmem:[%s6 + $0x1c] sm:$0xf]
    %v2810 = vld [vmem:[%s6 + $0x20] sm:$0xf]
    %v2811 = vld [vmem:[%s6 + $0x24] sm:$0xf]
    %v2812 = vld [vmem:[%s6 + $0x28] sm:$0xf]
    %v2813 = vld [vmem:[%s6 + $0x2c] sm:$0xf]
    %v2814 = vld [vmem:[%s6 + $0x30] sm:$0xf]
    %v2815 = vld [vmem:[%s6 + $0x34] sm:$0xf]
    %v2816 = vld [vmem:[%s6 + $0x38] sm:$0xf]
    %v2817 = vld [vmem:[%s6 + $0x3c] sm:$0xf]
    %v2834 = vunpack.c.l.b16 %v2802
    %v2835 = vunpack.c.l.b16 %v2803
    %v2836 = vunpack.c.l.b16 %v2804
    %v2837 = vunpack.c.l.b16 %v2805
    %v2838 = vunpack.c.l.b16 %v2806
    %v2839 = vunpack.c.l.b16 %v2807
    %v2840 = vunpack.c.l.b16 %v2808
    %v2841 = vunpack.c.l.b16 %v2809
    %v2842 = vunpack.c.l.b16 %v2810
    %v2843 = vunpack.c.l.b16 %v2811
    %v2844 = vunpack.c.l.b16 %v2812
    %v2845 = vunpack.c.l.b16 %v2813
    %v2846 = vunpack.c.l.b16 %v2814
    %v2847 = vunpack.c.l.b16 %v2815
    %v2848 = vunpack.c.l.b16 %v2816
    %v2849 = vunpack.c.l.b16 %v2817
    %v2850 = vpack.c.b16 %v2835, %v2834
    %v2851 = vpack.c.b16 %v2837, %v2836
    %v2852 = vpack.c.b16 %v2839, %v2838
    %v2853 = vpack.c.b16 %v2841, %v2840
    %v2854 = vpack.c.b16 %v2843, %v2842
    %v2855 = vpack.c.b16 %v2845, %v2844
    %v2856 = vpack.c.b16 %v2847, %v2846
    %v2857 = vpack.c.b16 %v2849, %v2848
    %2866 = vmatprep.subr.bf16.mxu0 0
    %2867 = vmatpush1.bf16.msra.mxu0 %v2850
    %2868 = vmatprep.subr.bf16.mxu0 0
    %2869 = vmatpush1.bf16.msra.mxu0 %v2851
    %2870 = vmatprep.subr.bf16.mxu0 0
    %2871 = vmatpush1.bf16.msra.mxu0 %v2852
    %2872 = vmatprep.subr.bf16.mxu0 0
    %2873 = vmatpush1.bf16.msra.mxu0 %v2853
    %2874 = vmatprep.subr.bf16.mxu0 0
    %2875 = vmatpush1.bf16.msra.mxu0 %v2854
    %2876 = vmatprep.subr.bf16.mxu0 0
    %2877 = vmatpush1.bf16.msra.mxu0 %v2855
    %2878 = vmatprep.subr.bf16.mxu0 0
    %2879 = vmatpush1.bf16.msra.mxu0 %v2856
    %2880 = vmatprep.subr.bf16.mxu0 0
    %2881 = vmatpush1.bf16.msra.mxu0 %v2857
    %2882 = vmatprep.subr.bf16.mxu0 0
    %2883 = vmatpush1.bf16.msra.mxu0 0
    %2884 = vmatprep.subr.bf16.mxu0 0
    %2885 = vmatpush1.bf16.msra.mxu0 0
    %2886 = vmatprep.subr.bf16.mxu0 0
    %2887 = vmatpush1.bf16.msra.mxu0 0
    %2888 = vmatprep.subr.bf16.mxu0 0
    %2889 = vmatpush1.bf16.msra.mxu0 0
    %2890 = vmatprep.subr.bf16.mxu0 0
    %2891 = vmatpush1.bf16.msra.mxu0 0
    %2892 = vmatprep.subr.bf16.mxu0 0
    %2893 = vmatpush1.bf16.msra.mxu0 0
    %2894 = vmatprep.subr.bf16.mxu0 0
    %2895 = vmatpush1.bf16.msra.mxu0 0
    %2896 = vmatprep.subr.bf16.mxu0 0
    %2897 = vmatpush1.bf16.msra.mxu0 0
    %2898 = vmatprep.mubr.bf16.mxu0 0
    %2899 = vmatmul.mubr.bf16.gmra.mrb[0].mxu0 %v1837
    %v2900 = vpop.f32.mrb[0].mxu0
    %v2901 = vadd.f32 0.0, %v2900
    %v2902 = vpop.f32.mrb[0].mxu0
    %v2903 = vpop.f32.mrb[0].mxu0
    %v2904 = vadd.f32 0.0, %v2903
    %v2905 = vpop.f32.mrb[0].mxu0
    %2906 = vmatprep.mubr.bf16.mxu0 0
    %2907 = vmatmul.mubr.bf16.gmra.mrb[0].mxu0 %v1838
    %v2908 = vpop.f32.mrb[0].mxu0
    %v2909 = vadd.f32 0.0, %v2908
    %v2910 = vpop.f32.mrb[0].mxu0
    %v2911 = vpop.f32.mrb[0].mxu0
    %v2912 = vadd.f32 0.0, %v2911
    %v2913 = vpop.f32.mrb[0].mxu0
    %2914 = vmatprep.mubr.bf16.mxu0 0
    %2915 = vmatmul.mubr.bf16.gmra.mrb[0].mxu0 %v1839
    %v2916 = vpop.f32.mrb[0].mxu0
    %v2917 = vadd.f32 0.0, %v2916
    %v2918 = vpop.f32.mrb[0].mxu0
    %v2919 = vpop.f32.mrb[0].mxu0
    %v2920 = vadd.f32 0.0, %v2919
    %v2921 = vpop.f32.mrb[0].mxu0
    %2922 = vmatprep.mubr.bf16.mxu0 0
    %2923 = vmatmul.mubr.bf16.gmra.mrb[0].mxu0 %v1840
    %v2924 = vpop.f32.mrb[0].mxu0
    %v2925 = vadd.f32 0.0, %v2924
    %v2926 = vpop.f32.mrb[0].mxu0
    %v2927 = vpop.f32.mrb[0].mxu0
    %v2928 = vadd.f32 0.0, %v2927
    %v2929 = vpop.f32.mrb[0].mxu0
    %2930 = vdwg.mxu0
    %v3059 = vunpack.c.l.b16 %v2674
    %v3060 = vunpack.c.l.b16 %v2675
    %v3061 = vunpack.c.l.b16 %v2676
    %v3062 = vunpack.c.l.b16 %v2677
    %v3063 = vunpack.c.l.b16 %v2678
    %v3064 = vunpack.c.l.b16 %v2679
    %v3065 = vunpack.c.l.b16 %v2680
    %v3066 = vunpack.c.l.b16 %v2681
    %v3067 = vunpack.c.l.b16 %v2682
    %v3068 = vunpack.c.l.b16 %v2683
    %v3069 = vunpack.c.l.b16 %v2684
    %v3070 = vunpack.c.l.b16 %v2685
    %v3071 = vunpack.c.l.b16 %v2686
    %v3072 = vunpack.c.l.b16 %v2687
    %v3073 = vunpack.c.l.b16 %v2688
    %v3074 = vunpack.c.l.b16 %v2689
    %v3075 = vunpack.c.l.b16 %v2690
    %v3076 = vunpack.c.l.b16 %v2691
    %v3077 = vunpack.c.l.b16 %v2692
    %v3078 = vunpack.c.l.b16 %v2693
    %v3079 = vunpack.c.l.b16 %v2694
    %v3080 = vunpack.c.l.b16 %v2695
    %v3081 = vunpack.c.l.b16 %v2696
    %v3082 = vunpack.c.l.b16 %v2697
    %v3083 = vunpack.c.l.b16 %v2698
    %v3084 = vunpack.c.l.b16 %v2699
    %v3085 = vunpack.c.l.b16 %v2700
    %v3086 = vunpack.c.l.b16 %v2701
    %v3087 = vunpack.c.l.b16 %v2702
    %v3088 = vunpack.c.l.b16 %v2703
    %v3089 = vunpack.c.l.b16 %v2704
    %v3090 = vunpack.c.l.b16 %v2705
    %v3091 = vunpack.c.l.b16 %v2706
    %v3092 = vunpack.c.l.b16 %v2707
    %v3093 = vunpack.c.l.b16 %v2708
    %v3094 = vunpack.c.l.b16 %v2709
    %v3095 = vunpack.c.l.b16 %v2710
    %v3096 = vunpack.c.l.b16 %v2711
    %v3097 = vunpack.c.l.b16 %v2712
    %v3098 = vunpack.c.l.b16 %v2713
    %v3099 = vunpack.c.l.b16 %v2714
    %v3100 = vunpack.c.l.b16 %v2715
    %v3101 = vunpack.c.l.b16 %v2716
    %v3102 = vunpack.c.l.b16 %v2717
    %v3103 = vunpack.c.l.b16 %v2718
    %v3104 = vunpack.c.l.b16 %v2719
    %v3105 = vunpack.c.l.b16 %v2720
    %v3106 = vunpack.c.l.b16 %v2721
    %v3107 = vunpack.c.l.b16 %v2722
    %v3108 = vunpack.c.l.b16 %v2723
    %v3109 = vunpack.c.l.b16 %v2724
    %v3110 = vunpack.c.l.b16 %v2725
    %v3111 = vunpack.c.l.b16 %v2726
    %v3112 = vunpack.c.l.b16 %v2727
    %v3113 = vunpack.c.l.b16 %v2728
    %v3114 = vunpack.c.l.b16 %v2729
    %v3115 = vunpack.c.l.b16 %v2730
    %v3116 = vunpack.c.l.b16 %v2731
    %v3117 = vunpack.c.l.b16 %v2732
    %v3118 = vunpack.c.l.b16 %v2733
    %v3119 = vunpack.c.l.b16 %v2734
    %v3120 = vunpack.c.l.b16 %v2735
    %v3121 = vunpack.c.l.b16 %v2736
    %v3122 = vunpack.c.l.b16 %v2737
    %v3123 = vunpack.c.l.b16 %v2738
    %v3124 = vunpack.c.l.b16 %v2739
    %v3125 = vunpack.c.l.b16 %v2740
    %v3126 = vunpack.c.l.b16 %v2741
    %v3127 = vunpack.c.l.b16 %v2742
    %v3128 = vunpack.c.l.b16 %v2743
    %v3129 = vunpack.c.l.b16 %v2744
    %v3130 = vunpack.c.l.b16 %v2745
    %v3131 = vunpack.c.l.b16 %v2746
    %v3132 = vunpack.c.l.b16 %v2747
    %v3133 = vunpack.c.l.b16 %v2748
    %v3134 = vunpack.c.l.b16 %v2749
    %v3135 = vunpack.c.l.b16 %v2750
    %v3136 = vunpack.c.l.b16 %v2751
    %v3137 = vunpack.c.l.b16 %v2752
    %v3138 = vunpack.c.l.b16 %v2753
    %v3139 = vunpack.c.l.b16 %v2754
    %v3140 = vunpack.c.l.b16 %v2755
    %v3141 = vunpack.c.l.b16 %v2756
    %v3142 = vunpack.c.l.b16 %v2757
    %v3143 = vunpack.c.l.b16 %v2758
    %v3144 = vunpack.c.l.b16 %v2759
    %v3145 = vunpack.c.l.b16 %v2760
    %v3146 = vunpack.c.l.b16 %v2761
    %v3147 = vunpack.c.l.b16 %v2762
    %v3148 = vunpack.c.l.b16 %v2763
    %v3149 = vunpack.c.l.b16 %v2764
    %v3150 = vunpack.c.l.b16 %v2765
    %v3151 = vunpack.c.l.b16 %v2766
    %v3152 = vunpack.c.l.b16 %v2767
    %v3153 = vunpack.c.l.b16 %v2768
    %v3154 = vunpack.c.l.b16 %v2769
    %v3155 = vunpack.c.l.b16 %v2770
    %v3156 = vunpack.c.l.b16 %v2771
    %v3157 = vunpack.c.l.b16 %v2772
    %v3158 = vunpack.c.l.b16 %v2773
    %v3159 = vunpack.c.l.b16 %v2774
    %v3160 = vunpack.c.l.b16 %v2775
    %v3161 = vunpack.c.l.b16 %v2776
    %v3162 = vunpack.c.l.b16 %v2777
    %v3163 = vunpack.c.l.b16 %v2778
    %v3164 = vunpack.c.l.b16 %v2779
    %v3165 = vunpack.c.l.b16 %v2780
    %v3166 = vunpack.c.l.b16 %v2781
    %v3167 = vunpack.c.l.b16 %v2782
    %v3168 = vunpack.c.l.b16 %v2783
    %v3169 = vunpack.c.l.b16 %v2784
    %v3170 = vunpack.c.l.b16 %v2785
    %v3171 = vunpack.c.l.b16 %v2786
    %v3172 = vunpack.c.l.b16 %v2787
    %v3173 = vunpack.c.l.b16 %v2788
    %v3174 = vunpack.c.l.b16 %v2789
    %v3175 = vunpack.c.l.b16 %v2790
    %v3176 = vunpack.c.l.b16 %v2791
    %v3177 = vunpack.c.l.b16 %v2792
    %v3178 = vunpack.c.l.b16 %v2793
    %v3179 = vunpack.c.l.b16 %v2794
    %v3180 = vunpack.c.l.b16 %v2795
    %v3181 = vunpack.c.l.b16 %v2796
    %v3182 = vunpack.c.l.b16 %v2797
    %v3183 = vunpack.c.l.b16 %v2798
    %v3184 = vunpack.c.l.b16 %v2799
    %v3185 = vunpack.c.l.b16 %v2800
    %v3186 = vunpack.c.l.b16 %v2801
    %v3187 = vpack.c.b16 %v3060, %v3059
    %v3188 = vpack.c.b16 %v3062, %v3061
    %v3189 = vpack.c.b16 %v3064, %v3063
    %v3190 = vpack.c.b16 %v3066, %v3065
    %v3191 = vpack.c.b16 %v3068, %v3067
    %v3192 = vpack.c.b16 %v3070, %v3069
    %v3193 = vpack.c.b16 %v3072, %v3071
    %v3194 = vpack.c.b16 %v3074, %v3073
    %v3195 = vpack.c.b16 %v3076, %v3075
    %v3196 = vpack.c.b16 %v3078, %v3077
    %v3197 = vpack.c.b16 %v3080, %v3079
    %v3198 = vpack.c.b16 %v3082, %v3081
    %v3199 = vpack.c.b16 %v3084, %v3083
    %v3200 = vpack.c.b16 %v3086, %v3085
    %v3201 = vpack.c.b16 %v3088, %v3087
    %v3202 = vpack.c.b16 %v3090, %v3089
    %v3203 = vpack.c.b16 %v3092, %v3091
    %v3204 = vpack.c.b16 %v3094, %v3093
    %v3205 = vpack.c.b16 %v3096, %v3095
    %v3206 = vpack.c.b16 %v3098, %v3097
    %v3207 = vpack.c.b16 %v3100, %v3099
    %v3208 = vpack.c.b16 %v3102, %v3101
    %v3209 = vpack.c.b16 %v3104, %v3103
    %v3210 = vpack.c.b16 %v3106, %v3105
    %v3211 = vpack.c.b16 %v3108, %v3107
    %v3212 = vpack.c.b16 %v3110, %v3109
    %v3213 = vpack.c.b16 %v3112, %v3111
    %v3214 = vpack.c.b16 %v3114, %v3113
    %v3215 = vpack.c.b16 %v3116, %v3115
    %v3216 = vpack.c.b16 %v3118, %v3117
    %v3217 = vpack.c.b16 %v3120, %v3119
    %v3218 = vpack.c.b16 %v3122, %v3121
    %v3219 = vpack.c.b16 %v3124, %v3123
    %v3220 = vpack.c.b16 %v3126, %v3125
    %v3221 = vpack.c.b16 %v3128, %v3127
    %v3222 = vpack.c.b16 %v3130, %v3129
    %v3223 = vpack.c.b16 %v3132, %v3131
    %v3224 = vpack.c.b16 %v3134, %v3133
    %v3225 = vpack.c.b16 %v3136, %v3135
    %v3226 = vpack.c.b16 %v3138, %v3137
    %v3227 = vpack.c.b16 %v3140, %v3139
    %v3228 = vpack.c.b16 %v3142, %v3141
    %v3229 = vpack.c.b16 %v3144, %v3143
    %v3230 = vpack.c.b16 %v3146, %v3145
    %v3231 = vpack.c.b16 %v3148, %v3147
    %v3232 = vpack.c.b16 %v3150, %v3149
    %v3233 = vpack.c.b16 %v3152, %v3151
    %v3234 = vpack.c.b16 %v3154, %v3153
    %v3235 = vpack.c.b16 %v3156, %v3155
    %v3236 = vpack.c.b16 %v3158, %v3157
    %v3237 = vpack.c.b16 %v3160, %v3159
    %v3238 = vpack.c.b16 %v3162, %v3161
    %v3239 = vpack.c.b16 %v3164, %v3163
    %v3240 = vpack.c.b16 %v3166, %v3165
    %v3241 = vpack.c.b16 %v3168, %v3167
    %v3242 = vpack.c.b16 %v3170, %v3169
    %v3243 = vpack.c.b16 %v3172, %v3171
    %v3244 = vpack.c.b16 %v3174, %v3173
    %v3245 = vpack.c.b16 %v3176, %v3175
    %v3246 = vpack.c.b16 %v3178, %v3177
    %v3247 = vpack.c.b16 %v3180, %v3179
    %v3248 = vpack.c.b16 %v3182, %v3181
    %v3249 = vpack.c.b16 %v3184, %v3183
    %v3250 = vpack.c.b16 %v3186, %v3185
    %3315 = vmatprep.subr.bf16.mxu0 0
    %3316 = vmatpush1.bf16.msra.mxu0 %v3187
    %3317 = vmatprep.subr.bf16.mxu0 0
    %3318 = vmatpush1.bf16.msra.mxu0 %v3188
    %3319 = vmatprep.subr.bf16.mxu0 0
    %3320 = vmatpush1.bf16.msra.mxu0 %v3189
    %3321 = vmatprep.subr.bf16.mxu0 0
    %3322 = vmatpush1.bf16.msra.mxu0 %v3190
    %3323 = vmatprep.subr.bf16.mxu0 0
    %3324 = vmatpush1.bf16.msra.mxu0 %v3191
    %3325 = vmatprep.subr.bf16.mxu0 0
    %3326 = vmatpush1.bf16.msra.mxu0 %v3192
    %3327 = vmatprep.subr.bf16.mxu0 0
    %3328 = vmatpush1.bf16.msra.mxu0 %v3193
    %3329 = vmatprep.subr.bf16.mxu0 0
    %3330 = vmatpush1.bf16.msra.mxu0 %v3194
    %3331 = vmatprep.subr.bf16.mxu0 0
    %3332 = vmatpush1.bf16.msra.mxu0 %v3195
    %3333 = vmatprep.subr.bf16.mxu0 0
    %3334 = vmatpush1.bf16.msra.mxu0 %v3196
    %3335 = vmatprep.subr.bf16.mxu0 0
    %3336 = vmatpush1.bf16.msra.mxu0 %v3197
    %3337 = vmatprep.subr.bf16.mxu0 0
    %3338 = vmatpush1.bf16.msra.mxu0 %v3198
    %3339 = vmatprep.subr.bf16.mxu0 0
    %3340 = vmatpush1.bf16.msra.mxu0 %v3199
    %3341 = vmatprep.subr.bf16.mxu0 0
    %3342 = vmatpush1.bf16.msra.mxu0 %v3200
    %3343 = vmatprep.subr.bf16.mxu0 0
    %3344 = vmatpush1.bf16.msra.mxu0 %v3201
    %3345 = vmatprep.subr.bf16.mxu0 0
    %3346 = vmatpush1.bf16.msra.mxu0 %v3202
    %3347 = vmatprep.mubr.bf16.mxu0 %v2643
    %3348 = vmatmul.mubr.bf16.gmra.mrb[0].mxu0 %v2642
    %v3349 = vpop.f32.mrb[0].mxu0
    %v3350 = vadd.f32 %v2901, %v3349
    %v3351 = vpop.f32.mrb[0].mxu0
    %v3352 = vpop.f32.mrb[0].mxu0
    %v3353 = vadd.f32 %v2904, %v3352
    %v3354 = vpop.f32.mrb[0].mxu0
    %3355 = vmatprep.mubr.bf16.mxu0 %v2651
    %3356 = vmatmul.mubr.bf16.gmra.mrb[0].mxu0 %v2650
    %v3357 = vpop.f32.mrb[0].mxu0
    %v3358 = vadd.f32 %v2909, %v3357
    %v3359 = vpop.f32.mrb[0].mxu0
    %v3360 = vpop.f32.mrb[0].mxu0
    %v3361 = vadd.f32 %v2912, %v3360
    %v3362 = vpop.f32.mrb[0].mxu0
    %3363 = vmatprep.mubr.bf16.mxu0 %v2659
    %3364 = vmatmul.mubr.bf16.gmra.mrb[0].mxu0 %v2658
    %v3365 = vpop.f32.mrb[0].mxu0
    %v3366 = vadd.f32 %v2917, %v3365
    %v3367 = vpop.f32.mrb[0].mxu0
    %v3368 = vpop.f32.mrb[0].mxu0
    %v3369 = vadd.f32 %v2920, %v3368
    %v3370 = vpop.f32.mrb[0].mxu0
    %3371 = vmatprep.mubr.bf16.mxu0 %v2667
    %3372 = vmatmul.mubr.bf16.gmra.mrb[0].mxu0 %v2666
    %v3373 = vpop.f32.mrb[0].mxu0
    %v3374 = vadd.f32 %v2925, %v3373
    %v3375 = vpop.f32.mrb[0].mxu0
    %v3376 = vpop.f32.mrb[0].mxu0
    %v3377 = vadd.f32 %v2928, %v3376
    %v3378 = vpop.f32.mrb[0].mxu0
    %3379 = vdwg.mxu0
    %3380 = vmatprep.subr.bf16.mxu0 0
    %3381 = vmatpush1.bf16.msra.mxu0 %v3203
    %3382 = vmatprep.subr.bf16.mxu0 0
    %3383 = vmatpush1.bf16.msra.mxu0 %v3204
    %3384 = vmatprep.subr.bf16.mxu0 0
    %3385 = vmatpush1.bf16.msra.mxu0 %v3205
    %3386 = vmatprep.subr.bf16.mxu0 0
    %3387 = vmatpush1.bf16.msra.mxu0 %v3206
    %3388 = vmatprep.subr.bf16.mxu0 0
    %3389 = vmatpush1.bf16.msra.mxu0 %v3207
    %3390 = vmatprep.subr.bf16.mxu0 0
    %3391 = vmatpush1.bf16.msra.mxu0 %v3208
    %3392 = vmatprep.subr.bf16.mxu0 0
    %3393 = vmatpush1.bf16.msra.mxu0 %v3209
    %3394 = vmatprep.subr.bf16.mxu0 0
    %3395 = vmatpush1.bf16.msra.mxu0 %v3210
    %3396 = vmatprep.subr.bf16.mxu0 0
    %3397 = vmatpush1.bf16.msra.mxu0 %v3211
    %3398 = vmatprep.subr.bf16.mxu0 0
    %3399 = vmatpush1.bf16.msra.mxu0 %v3212
    %3400 = vmatprep.subr.bf16.mxu0 0
    %3401 = vmatpush1.bf16.msra.mxu0 %v3213
    %3402 = vmatprep.subr.bf16.mxu0 0
    %3403 = vmatpush1.bf16.msra.mxu0 %v3214
    %3404 = vmatprep.subr.bf16.mxu0 0
    %3405 = vmatpush1.bf16.msra.mxu0 %v3215
    %3406 = vmatprep.subr.bf16.mxu0 0
    %3407 = vmatpush1.bf16.msra.mxu0 %v3216
    %3408 = vmatprep.subr.bf16.mxu0 0
    %3409 = vmatpush1.bf16.msra.mxu0 %v3217
    %3410 = vmatprep.subr.bf16.mxu0 0
    %3411 = vmatpush1.bf16.msra.mxu0 %v3218
    %3412 = vmatprep.mubr.bf16.mxu0 %v2645
    %3413 = vmatmul.mubr.bf16.gmra.mrb[0].mxu0 %v2644
    %v3414 = vpop.f32.mrb[0].mxu0
    %v3415 = vadd.f32 %v3350, %v3414
    %v3416 = vpop.f32.mrb[0].mxu0
    %v3417 = vpop.f32.mrb[0].mxu0
    %v3418 = vadd.f32 %v3353, %v3417
    %v3419 = vpop.f32.mrb[0].mxu0
    %3420 = vmatprep.mubr.bf16.mxu0 %v2653
    %3421 = vmatmul.mubr.bf16.gmra.mrb[0].mxu0 %v2652
    %v3422 = vpop.f32.mrb[0].mxu0
    %v3423 = vadd.f32 %v3358, %v3422
    %v3424 = vpop.f32.mrb[0].mxu0
    %v3425 = vpop.f32.mrb[0].mxu0
    %v3426 = vadd.f32 %v3361, %v3425
    %v3427 = vpop.f32.mrb[0].mxu0
    %3428 = vmatprep.mubr.bf16.mxu0 %v2661
    %3429 = vmatmul.mubr.bf16.gmra.mrb[0].mxu0 %v2660
    %v3430 = vpop.f32.mrb[0].mxu0
    %v3431 = vadd.f32 %v3366, %v3430
    %v3432 = vpop.f32.mrb[0].mxu0
    %v3433 = vpop.f32.mrb[0].mxu0
    %v3434 = vadd.f32 %v3369, %v3433
    %v3435 = vpop.f32.mrb[0].mxu0
    %3436 = vmatprep.mubr.bf16.mxu0 %v2669
    %3437 = vmatmul.mubr.bf16.gmra.mrb[0].mxu0 %v2668
    %v3438 = vpop.f32.mrb[0].mxu0
    %v3439 = vadd.f32 %v3374, %v3438
    %v3440 = vpop.f32.mrb[0].mxu0
    %v3441 = vpop.f32.mrb[0].mxu0
    %v3442 = vadd.f32 %v3377, %v3441
    %v3443 = vpop.f32.mrb[0].mxu0
    %3444 = vdwg.mxu0
    %3445 = vmatprep.subr.bf16.mxu0 0
    %3446 = vmatpush1.bf16.msra.mxu0 %v3219
    %3447 = vmatprep.subr.bf16.mxu0 0
    %3448 = vmatpush1.bf16.msra.mxu0 %v3220
    %3449 = vmatprep.subr.bf16.mxu0 0
    %3450 = vmatpush1.bf16.msra.mxu0 %v3221
    %3451 = vmatprep.subr.bf16.mxu0 0
    %3452 = vmatpush1.bf16.msra.mxu0 %v3222
    %3453 = vmatprep.subr.bf16.mxu0 0
    %3454 = vmatpush1.bf16.msra.mxu0 %v3223
    %3455 = vmatprep.subr.bf16.mxu0 0
    %3456 = vmatpush1.bf16.msra.mxu0 %v3224
    %3457 = vmatprep.subr.bf16.mxu0 0
    %3458 = vmatpush1.bf16.msra.mxu0 %v3225
    %3459 = vmatprep.subr.bf16.mxu0 0
    %3460 = vmatpush1.bf16.msra.mxu0 %v3226
    %3461 = vmatprep.subr.bf16.mxu0 0
    %3462 = vmatpush1.bf16.msra.mxu0 %v3227
    %3463 = vmatprep.subr.bf16.mxu0 0
    %3464 = vmatpush1.bf16.msra.mxu0 %v3228
    %3465 = vmatprep.subr.bf16.mxu0 0
    %3466 = vmatpush1.bf16.msra.mxu0 %v3229
    %3467 = vmatprep.subr.bf16.mxu0 0
    %3468 = vmatpush1.bf16.msra.mxu0 %v3230
    %3469 = vmatprep.subr.bf16.mxu0 0
    %3470 = vmatpush1.bf16.msra.mxu0 %v3231
    %3471 = vmatprep.subr.bf16.mxu0 0
    %3472 = vmatpush1.bf16.msra.mxu0 %v3232
    %3473 = vmatprep.subr.bf16.mxu0 0
    %3474 = vmatpush1.bf16.msra.mxu0 %v3233
    %3475 = vmatprep.subr.bf16.mxu0 0
    %3476 = vmatpush1.bf16.msra.mxu0 %v3234
    %3477 = vmatprep.mubr.bf16.mxu0 %v2647
    %3478 = vmatmul.mubr.bf16.gmra.mrb[0].mxu0 %v2646
    %v3479 = vpop.f32.mrb[0].mxu0
    %v3480 = vadd.f32 %v3415, %v3479
    %v3481 = vpop.f32.mrb[0].mxu0
    %v3482 = vpop.f32.mrb[0].mxu0
    %v3483 = vadd.f32 %v3418, %v3482
    %v3484 = vpop.f32.mrb[0].mxu0
    %3485 = vmatprep.mubr.bf16.mxu0 %v2655
    %3486 = vmatmul.mubr.bf16.gmra.mrb[0].mxu0 %v2654
    %v3487 = vpop.f32.mrb[0].mxu0
    %v3488 = vadd.f32 %v3423, %v3487
    %v3489 = vpop.f32.mrb[0].mxu0
    %v3490 = vpop.f32.mrb[0].mxu0
    %v3491 = vadd.f32 %v3426, %v3490
    %v3492 = vpop.f32.mrb[0].mxu0
    %3493 = vmatprep.mubr.bf16.mxu0 %v2663
    %3494 = vmatmul.mubr.bf16.gmra.mrb[0].mxu0 %v2662
    %v3495 = vpop.f32.mrb[0].mxu0
    %v3496 = vadd.f32 %v3431, %v3495
    %v3497 = vpop.f32.mrb[0].mxu0
    %v3498 = vpop.f32.mrb[0].mxu0
    %v3499 = vadd.f32 %v3434, %v3498
    %v3500 = vpop.f32.mrb[0].mxu0
    %3501 = vmatprep.mubr.bf16.mxu0 %v2671
    %3502 = vmatmul.mubr.bf16.gmra.mrb[0].mxu0 %v2670
    %v3503 = vpop.f32.mrb[0].mxu0
    %v3504 = vadd.f32 %v3439, %v3503
    %v3505 = vpop.f32.mrb[0].mxu0
    %v3506 = vpop.f32.mrb[0].mxu0
    %v3507 = vadd.f32 %v3442, %v3506
    %v3508 = vpop.f32.mrb[0].mxu0
    %3509 = vdwg.mxu0
    %3510 = vmatprep.subr.bf16.mxu0 0
    %3511 = vmatpush1.bf16.msra.mxu0 %v3235
    %3512 = vmatprep.subr.bf16.mxu0 0
    %3513 = vmatpush1.bf16.msra.mxu0 %v3236
    %3514 = vmatprep.subr.bf16.mxu0 0
    %3515 = vmatpush1.bf16.msra.mxu0 %v3237
    %3516 = vmatprep.subr.bf16.mxu0 0
    %3517 = vmatpush1.bf16.msra.mxu0 %v3238
    %3518 = vmatprep.subr.bf16.mxu0 0
    %3519 = vmatpush1.bf16.msra.mxu0 %v3239
    %3520 = vmatprep.subr.bf16.mxu0 0
    %3521 = vmatpush1.bf16.msra.mxu0 %v3240
    %3522 = vmatprep.subr.bf16.mxu0 0
    %3523 = vmatpush1.bf16.msra.mxu0 %v3241
    %3524 = vmatprep.subr.bf16.mxu0 0
    %3525 = vmatpush1.bf16.msra.mxu0 %v3242
    %3526 = vmatprep.subr.bf16.mxu0 0
    %3527 = vmatpush1.bf16.msra.mxu0 %v3243
    %3528 = vmatprep.subr.bf16.mxu0 0
    %3529 = vmatpush1.bf16.msra.mxu0 %v3244
    %3530 = vmatprep.subr.bf16.mxu0 0
    %3531 = vmatpush1.bf16.msra.mxu0 %v3245
    %3532 = vmatprep.subr.bf16.mxu0 0
    %3533 = vmatpush1.bf16.msra.mxu0 %v3246
    %3534 = vmatprep.subr.bf16.mxu0 0
    %3535 = vmatpush1.bf16.msra.mxu0 %v3247
    %3536 = vmatprep.subr.bf16.mxu0 0
    %3537 = vmatpush1.bf16.msra.mxu0 %v3248
    %3538 = vmatprep.subr.bf16.mxu0 0
    %3539 = vmatpush1.bf16.msra.mxu0 %v3249
    %3540 = vmatprep.subr.bf16.mxu0 0
    %3541 = vmatpush1.bf16.msra.mxu0 %v3250
    %3542 = vmatprep.mubr.bf16.mxu0 %v2649
    %3543 = vmatmul.mubr.bf16.gmra.mrb[0].mxu0 %v2648
    %v3544 = vpop.f32.mrb[0].mxu0
    %v3545 = vadd.f32 %v3480, %v3544
    %v3546 = vpop.f32.mrb[0].mxu0
    %v3547 = vpop.f32.mrb[0].mxu0
    %v3548 = vadd.f32 %v3483, %v3547
    %v3549 = vpop.f32.mrb[0].mxu0
    %3550 = vmatprep.mubr.bf16.mxu0 %v2657
    %3551 = vmatmul.mubr.bf16.gmra.mrb[0].mxu0 %v2656
    %v3552 = vpop.f32.mrb[0].mxu0
    %v3553 = vadd.f32 %v3488, %v3552
    %v3554 = vpop.f32.mrb[0].mxu0
    %v3555 = vpop.f32.mrb[0].mxu0
    %v3556 = vadd.f32 %v3491, %v3555
    %v3557 = vpop.f32.mrb[0].mxu0
    %3558 = vmatprep.mubr.bf16.mxu0 %v2665
    %3559 = vmatmul.mubr.bf16.gmra.mrb[0].mxu0 %v2664
    %v3560 = vpop.f32.mrb[0].mxu0
    %v3561 = vadd.f32 %v3496, %v3560
    %v3562 = vpop.f32.mrb[0].mxu0
    %v3563 = vpop.f32.mrb[0].mxu0
    %v3564 = vadd.f32 %v3499, %v3563
    %v3565 = vpop.f32.mrb[0].mxu0
    %3566 = vmatprep.mubr.bf16.mxu0 %v2673
    %3567 = vmatmul.mubr.bf16.gmra.mrb[0].mxu0 %v2672
    %v3568 = vpop.f32.mrb[0].mxu0
    %v3569 = vadd.f32 %v3504, %v3568
    %v3570 = vpop.f32.mrb[0].mxu0
    %v3571 = vpop.f32.mrb[0].mxu0
    %v3572 = vadd.f32 %v3507, %v3571
    %v3573 = vpop.f32.mrb[0].mxu0
    %3574 = vdwg.mxu0
    %v3575 = vld [vmem:[%s7] sm:$0x1]
    %v3577 = vlaneseq
    %v3578 = vshrl.u32 %v3577, 7
    %v3579 = vsub.s32 0, %v3578
    %v3580 = vrot.slane %v3575, %v3579
    %v3582 = vadd.f32 %v3545, %v3580
    %v3583 = vadd.f32 %v3548, %v3580
    %v3584 = vadd.f32 %v3553, %v3580
    %v3585 = vadd.f32 %v3556, %v3580
    %v3586 = vadd.f32 %v3561, %v3580
    %v3587 = vadd.f32 %v3564, %v3580
    %v3588 = vadd.f32 %v3569, %v3580
    %v3589 = vadd.f32 %v3572, %v3580
    %v3590 = vmax.f32 %v3582, 0.0
    %v3591 = vmax.f32 %v3583, 0.0
    %v3592 = vmax.f32 %v3584, 0.0
    %v3593 = vmax.f32 %v3585, 0.0
    %v3594 = vmax.f32 %v3586, 0.0
    %v3595 = vmax.f32 %v3587, 0.0
    %v3596 = vmax.f32 %v3588, 0.0
    %v3597 = vmax.f32 %v3589, 0.0
    %3598 = vst [vmem:[#allocation5] sm:$0xff] %v3590
    %3599 = vst [vmem:[#allocation5 + $0x8] sm:$0xff] %v3591
    %3600 = vst [vmem:[#allocation5 + $0x10] sm:$0xff] %v3592
    %3601 = vst [vmem:[#allocation5 + $0x18] sm:$0xff] %v3593
    %3602 = vst [vmem:[#allocation5 + $0x20] sm:$0xff] %v3594
    %3603 = vst [vmem:[#allocation5 + $0x28] sm:$0xff] %v3595
    %3604 = vst [vmem:[#allocation5 + $0x30] sm:$0xff] %v3596
    %3605 = vst [vmem:[#allocation5 + $0x38] sm:$0xff] %v3597
    // Predicated region
    $region34: #{encoder_forward.1} parent=1 // pred_check
      _
    $region35: #{encoder_forward.1} parent=1 // pred_check_branch
      %3607 = sbr.rel (0) target = $region37
    $region36: #{encoder_forward.1} parent=1 // pred_region
      %s3609 = ssub.s32 1024, 1024
      %3610 = vsyncadd [#allocation6], %s3609
      %s3611 = sshll.u32 [#allocation5], 4
      %s3612 = int_to_ptr.vmem [resolvable:$true] %s3611
      %3617 = dma.vmem_to_hbm [thread:$0]  %s3612, 1024, %s8, [#allocation6], 128, 128, 8
    $region37: #{encoder_forward.1} parent=1 // pred_fallthru
      _
    // Predicated region
    $region38: #{encoder_forward.1} parent=1 // pred_check
      _
    $region39: #{encoder_forward.1} parent=1 // pred_check_branch
      %3619 = sbr.rel (0) target = $region41
    $region40: #{encoder_forward.1} parent=1 // pred_region
      %3620 = dma.done [#allocation6], 1024
    $region41: #{encoder_forward.1} parent=1 // pred_fallthru
      _
    %3621 = vsyncpa [#allocation6], 1

</llo_original>
